<compile_context>
chip_gen: v5e
topology: v5e:2x2
jax: 0.10.0
libtpu: 0.0.40
codegen_flags: <defaults>
</compile_context>

<pallas_src>
import functools
import math

import jax
import jax.numpy as jnp
from jax.experimental import pallas as pl
from jax.experimental.pallas import tpu as pltpu

F_PAD = 128            # padded feature width (lane-dense); head h lives in lanes [h*64, h*64+64)
NEG_INF = -1e30        # additive softmax mask value for non-edges (f32)
EDGE_SENTINEL = -1e38  # anything below this in the packed slab means "no edge" (-inf sentinel)


# --------------------------------------------------------------------------- #
# Kernels
# --------------------------------------------------------------------------- #
def _proj_kernel(x_ref, w_ref, b_ref, mean_ref, scale_ref, beta_ref,
                 qs_ref, k_ref, v_ref, *, heads, d_slot, fuse_bn):
    """Fused [BN+ReLU (optional)] -> [Q | skip | K | V] projection for one row tile.

    K is written head-major and pre-transposed: (heads, 64, tile).
    V is written head-major: (heads, tile, 64). Both bf16.
    """
    x = x_ref[...]                                            # (T, 128) f32
    if fuse_bn:
        # BatchNorm + ReLU of the previous layer, fused into this projection.
        x = jnp.maximum((x - mean_ref[...]) * scale_ref[...] + beta_ref[...], 0.0)
    xb = x.astype(jnp.bfloat16)
    w = w_ref[...]                                            # (128, 512) bf16 (host pre-cast)
    p = jnp.dot(xb, w, preferred_element_type=jnp.float32) + b_ref[...]   # (T, 512) f32
    qs_ref[...] = p[:, : 2 * F_PAD]                           # [Q | skip] (f32)
    for h in range(heads):
        k_sl = p[:, 2 * F_PAD + h * d_slot: 2 * F_PAD + (h + 1) * d_slot]   # (T, 64)
        v_sl = p[:, 3 * F_PAD + h * d_slot: 3 * F_PAD + (h + 1) * d_slot]   # (T, 64)
        k_ref[h] = k_sl.T.astype(jnp.bfloat16)                # (64, T) — transposed once per node
        v_ref[h] = v_sl.astype(jnp.bfloat16)                  # (T, 64)


def _attn_kernel(qs_ref, k_ref, v_ref, slab_ref, we_ref, wesl_ref,
                 out_ref, stats_ref, *, heads, d_slot, n_real, tile_m):
    """TransformerConv for one tile of destination rows (heads processed sequentially)."""
    qs = qs_ref[...]                                          # (T, 256) f32
    q = qs[:, :F_PAD]                                         # (T, 128) (already pre-scaled by 1/sqrt(d))
    skip = qs[:, F_PAD:]                                      # (T, 128)
    q_bf = q.astype(jnp.bfloat16)

    # Packed bf16 slab: edge_attr value for edges, -inf sentinel for non-edges.
    slab = slab_ref[...].astype(jnp.float32)                  # (T, N)
    is_edge = slab > EDGE_SENTINEL                            # (T, N) bool
    ea = jnp.where(is_edge, slab, 0.0)                        # (T, N)

    # Per-head q . W_e  via one tiny MXU matmul against the head-slot-masked W_e.
    qe_all = jnp.dot(q_bf, wesl_ref[...],
                     preferred_element_type=jnp.float32)      # (T, 128); cols 0..heads-1 valid
    we = we_ref[...]                                          # (1, 128) f32

    outs = []
    for h in range(heads):
        kh = k_ref[h]                                         # (64, N) bf16, already transposed
        vh = v_ref[h]                                         # (N, 64) bf16
        qh = q_bf[:, h * d_slot:(h + 1) * d_slot]             # (T, 64)

        qk = jnp.dot(qh, kh, preferred_element_type=jnp.float32)          # (T, N)
        qe = qe_all[:, h:h + 1]                                            # (T, 1)
        scores = jnp.where(is_edge, qk + ea * qe, NEG_INF)                 # (T, N)

        # Masked softmax over source nodes.
        m = jnp.max(scores, axis=-1, keepdims=True)                        # (T, 1)
        p = jnp.exp(scores - m)                                            # (T, N)
        denom = jnp.sum(p, axis=-1, keepdims=True)
        # Rows with no incoming edge (incl. padded rows) -> zero aggregation.
        inv = jnp.where(m > 0.5 * NEG_INF, pl.reciprocal(denom, approx=True), 0.0)
        alpha = p * inv                                                    # (T, N)

        agg = jnp.dot(alpha.astype(jnp.bfloat16), vh,
                      preferred_element_type=jnp.float32)                  # (T, 64)
        ew = jnp.sum(alpha * ea, axis=-1, keepdims=True)                   # (T, 1)
        outs.append(agg + ew * we[:, h * d_slot:(h + 1) * d_slot])         # (T, 64)

    out = jnp.concatenate(outs, axis=-1) + skip                            # (T, 128)
    out_ref[...] = out

    # Partial BatchNorm statistics for this tile (padded rows masked out).
    row = pl.program_id(0) * tile_m + jax.lax.broadcasted_iota(jnp.int32, (tile_m, 1), 0)
    valid = (row < n_real).astype(jnp.float32)                             # (T, 1)
    s1 = jnp.sum(out * valid, axis=0, keepdims=True)                       # (1, 128)
    s2 = jnp.sum(out * out * valid, axis=0, keepdims=True)                 # (1, 128)
    stats_ref[...] = jnp.concatenate([s1, s2], axis=0)[None]               # (1, 2, 128)


def _bn_relu_kernel(x_ref, mean_ref, scale_ref, beta_ref, o_ref):
    x = x_ref[...]
    o_ref[...] = jnp.maximum((x - mean_ref[...]) * scale_ref[...] + beta_ref[...], 0.0)


# --------------------------------------------------------------------------- #
# pallas_call wrappers
# --------------------------------------------------------------------------- #
def _proj_call(x, lp, bn, *, n_pad, tile):
    heads = lp["heads"]
    d_slot = F_PAD // heads
    fuse_bn = bn is not None
    if bn is None:
        z = jnp.zeros((1, F_PAD), jnp.float32)
        mean, scale, beta = z, z, z          # unused (static flag skips them)
    else:
        mean, scale, beta = bn
    kernel = functools.partial(_proj_kernel, heads=heads, d_slot=d_slot, fuse_bn=fuse_bn)
    num_tiles = n_pad // tile
    return pl.pallas_call(
        kernel,
        grid=(num_tiles,),
        in_specs=[
            pl.BlockSpec((tile, F_PAD), lambda i: (i, 0)),
            pl.BlockSpec((F_PAD, 4 * F_PAD), lambda i: (0, 0)),   # bf16 weights, resident
            pl.BlockSpec((1, 4 * F_PAD), lambda i: (0, 0)),
            pl.BlockSpec((1, F_PAD), lambda i: (0, 0)),
            pl.BlockSpec((1, F_PAD), lambda i: (0, 0)),
            pl.BlockSpec((1, F_PAD), lambda i: (0, 0)),
        ],
        out_specs=(
            pl.BlockSpec((tile, 2 * F_PAD), lambda i: (i, 0)),            # [Q | skip] f32
            pl.BlockSpec((heads, d_slot, tile), lambda i: (0, 0, i)),     # K^T bf16 head-major
            pl.BlockSpec((heads, tile, d_slot), lambda i: (0, i, 0)),     # V   bf16 head-major
        ),
        out_shape=(
            jax.ShapeDtypeStruct((n_pad, 2 * F_PAD), jnp.float32),
            jax.ShapeDtypeStruct((heads, d_slot, n_pad), jnp.bfloat16),
            jax.ShapeDtypeStruct((heads, n_pad, d_slot), jnp.bfloat16),
        ),
        compiler_params=pltpu.CompilerParams(dimension_semantics=("parallel",)),
    )(x, lp["w_all"], lp["b_all"], mean, scale, beta)


def _attn_call(qs, k_hm, v_hm, slab, lp, *, n_real, n_pad, tile_m):
    heads = lp["heads"]
    d_slot = F_PAD // heads
    kernel = functools.partial(_attn_kernel, heads=heads, d_slot=d_slot,
                               n_real=n_real, tile_m=tile_m)
    num_tiles = n_pad // tile_m
    return pl.pallas_call(
        kernel,
        grid=(num_tiles,),
        in_specs=[
            pl.BlockSpec((tile_m, 2 * F_PAD), lambda i: (i, 0)),            # Q | skip tile
            pl.BlockSpec((heads, d_slot, n_pad), lambda i: (0, 0, 0)),      # K^T resident (bf16)
            pl.BlockSpec((heads, n_pad, d_slot), lambda i: (0, 0, 0)),      # V   resident (bf16)
            pl.BlockSpec((tile_m, n_pad), lambda i: (i, 0)),                # packed bf16 edge slab
            pl.BlockSpec((1, F_PAD), lambda i: (0, 0)),                     # W_e (value side, f32)
            pl.BlockSpec((F_PAD, F_PAD), lambda i: (0, 0)),                 # head-slot masked W_e (bf16)
        ],
        out_specs=(
            pl.BlockSpec((tile_m, F_PAD), lambda i: (i, 0)),
            pl.BlockSpec((1, 2, F_PAD), lambda i: (i, 0, 0)),
        ),
        out_shape=(
            jax.ShapeDtypeStruct((n_pad, F_PAD), jnp.float32),
            jax.ShapeDtypeStruct((num_tiles, 2, F_PAD), jnp.float32),
        ),
        compiler_params=pltpu.CompilerParams(
            dimension_semantics=("parallel",),
            vmem_limit_bytes=40 * 1024 * 1024),
    )(qs, k_hm, v_hm, slab, lp["we_pad"], lp["we_slot"])


def _bn_relu_call(x, mean, scale, beta, *, n_pad, tile):
    num_tiles = n_pad // tile
    return pl.pallas_call(
        _bn_relu_kernel,
        grid=(num_tiles,),
        in_specs=[
            pl.BlockSpec((tile, F_PAD), lambda i: (i, 0)),
            pl.BlockSpec((1, F_PAD), lambda i: (0, 0)),
            pl.BlockSpec((1, F_PAD), lambda i: (0, 0)),
            pl.BlockSpec((1, F_PAD), lambda i: (0, 0)),
        ],
        out_specs=pl.BlockSpec((tile, F_PAD), lambda i: (i, 0)),
        out_shape=jax.ShapeDtypeStruct((n_pad, F_PAD), jnp.float32),
        compiler_params=pltpu.CompilerParams(dimension_semantics=("parallel",)),
    )(x, mean, scale, beta)


# --------------------------------------------------------------------------- #
# Layer composition (training-mode BatchNorm: stats over the real rows)
# --------------------------------------------------------------------------- #
def _bn_params(stats, lp, n_real):
    s = jnp.sum(stats, axis=0)                                   # (2, 128)
    mean = s[0:1] / n_real
    var = jnp.maximum(s[1:2] / n_real - mean * mean, 0.0)
    scale = lp["gamma_pad"] * jax.lax.rsqrt(var + 1e-5)
    return mean, scale, lp["beta_pad"]


def _conv_layer(x_act, slab, lp, bn_prev, *, n_real, n_pad, proj_tile, attn_tile):
    """One TransformerConv layer: returns (pre-BN output, per-tile BN partial stats)."""
    qs, k_hm, v_hm = _proj_call(x_act, lp, bn_prev, n_pad=n_pad, tile=proj_tile)
    return _attn_call(qs, k_hm, v_hm, slab, lp,
                      n_real=n_real, n_pad=n_pad, tile_m=attn_tile)


def gcn_net_forward(x, edge_index, edge_attr, params_list, *, attn_tile=128):
    """Returns (x_ae, x_de) exactly like GCNNet.forward (training-mode BN)."""
    n_real = x.shape[0]
    n_pad = ((n_real + attn_tile - 1) // attn_tile) * attn_tile
    # Larger row tiles for the cheap projection / BN kernels (per-step overhead amortization).
    proj_tile = 512 if n_pad % 512 == 0 else (256 if n_pad % 256 == 0 else 128)

    src, dst = edge_index[0], edge_index[1]
    # Packed edge slab (glue): edge_attr value for edges, -inf sentinel otherwise.
    # NOTE: duplicate (multi-)edges collapse to the last one (simple graphs only).
    slab = jnp.full((n_pad, n_pad), -jnp.inf, jnp.float32)
    slab = slab.at[dst, src].set(edge_attr[:, 0]).astype(jnp.bfloat16)

    x0 = jnp.zeros((n_pad, F_PAD), jnp.float32).at[:n_real, :x.shape[1]].set(x)

    p1, p2, p3, p4 = params_list
    kw = dict(n_real=n_real, n_pad=n_pad, proj_tile=proj_tile, attn_tile=attn_tile)

    # Layer 1 (raw input; no fused BN).
    pre1, st1 = _conv_layer(x0, slab, p1, None, **kw)
    # Layer 2: BN1 + ReLU fused into the projection.
    pre2, st2 = _conv_layer(pre1, slab, p2, _bn_params(st1, p1, n_real), **kw)
    x_ae_pad = _bn_relu_call(pre2, *_bn_params(st2, p2, n_real), n_pad=n_pad, tile=proj_tile)
    # Layer 3 consumes the already-activated x_ae (which is also returned).
    pre3, st3 = _conv_layer(x_ae_pad, slab, p3, None, **kw)
    # Layer 4: BN3 + ReLU fused into the projection.
    pre4, st4 = _conv_layer(pre3, slab, p4, _bn_params(st3, p3, n_real), **kw)
    x_de_pad = _bn_relu_call(pre4, *_bn_params(st4, p4, n_real), n_pad=n_pad, tile=proj_tile)

    x_ae = x_ae_pad[:n_real][:, p2["out_pos"]]
    x_de = x_de_pad[:n_real][:, p4["out_pos"]]
    return x_ae, x_de


# --------------------------------------------------------------------------- #
# Deterministic parameter construction (synthetic init; the PyTorch
# initialize_weights() is a no-op for TransformerConv since it has no .weight).
# --------------------------------------------------------------------------- #
def _glorot(key, shape):
    fan_in, fan_out = shape
    limit = math.sqrt(6.0 / (fan_in + fan_out))
    return jax.random.uniform(key, shape, jnp.float32, -limit, limit)


def head_positions(heads, head_dim):
    d_slot = F_PAD // heads
    return jnp.array([h * d_slot + d for h in range(heads) for d in range(head_dim)],
                     dtype=jnp.int32)


def make_layer_params(key, in_ch, head_dim, in_pos, *, heads=2, edge_dim=1):
    out = heads * head_dim
    d_slot = F_PAD // heads
    out_pos = head_positions(heads, head_dim)
    ks = jax.random.split(key, 5)
    inv_sqrt_d = 1.0 / math.sqrt(head_dim)
    # Fold the 1/sqrt(d) softmax scale into W_q (query bias is zero-init here;
    # a nonzero query bias would need the same scaling).
    wq = _glorot(ks[0], (in_ch, out)) * inv_sqrt_d
    wk = _glorot(ks[1], (in_ch, out))
    wv = _glorot(ks[2], (in_ch, out))
    wsk = _glorot(ks[3], (in_ch, out))
    we = _glorot(ks[4], (edge_dim, out))

    def pad_w(w):
        return jnp.zeros((F_PAD, F_PAD), jnp.float32).at[
            in_pos[:, None], out_pos[None, :]].set(w)

    def pad_v(v):
        return jnp.zeros((1, F_PAD), jnp.float32).at[0, out_pos].set(v)

    # Column layout [Q | skip | K | V]; weights pre-cast to bf16 (no per-step cast).
    w_all = jnp.concatenate([pad_w(wq), pad_w(wsk), pad_w(wk), pad_w(wv)],
                            axis=1).astype(jnp.bfloat16)
    b_all = jnp.zeros((1, 4 * F_PAD), jnp.float32)

    we_pad = pad_v(we[0])                                     # (1, 128) f32, value-side (unscaled)
    # Head-slot-masked W_e for the per-head q.W_e scores term (MXU-friendly).
    we_slot = jnp.zeros((F_PAD, F_PAD), jnp.float32)
    for h in range(heads):
        we_slot = we_slot.at[h * d_slot:(h + 1) * d_slot, h].set(
            we_pad[0, h * d_slot:(h + 1) * d_slot])
    we_slot = we_slot.astype(jnp.bfloat16)

    return dict(w_all=w_all, b_all=b_all, we_pad=we_pad, we_slot=we_slot,
                gamma_pad=pad_v(jnp.ones((out,), jnp.float32)),
                beta_pad=pad_v(jnp.zeros((out,), jnp.float32)),
                heads=heads, head_dim=head_dim, out_pos=out_pos)


if __name__ == "__main__":
    # Small, deterministic example consistent with the module.
    N = 200                # nodes (non-multiple of tile -> exercises padding path)
    IN_CH = 8              # in_channels
    HID_CH = 16            # hidden_channels
    OUT_CH = 8             # out_channels
    HEADS = 2

    key = jax.random.PRNGKey(0)
    k_x, k_e, k1, k2, k3, k4 = jax.random.split(key, 6)

    x = jax.random.normal(k_x, (N, IN_CH), jnp.float32)

    # Deterministic graph: each node receives edges from its two predecessors (ring).
    src = jnp.concatenate([jnp.arange(N), jnp.arange(N)])
    dst = jnp.concatenate([(jnp.arange(N) + 1) % N, (jnp.arange(N) + 2) % N])
    edge_index = jnp.stack([src, dst]).astype(jnp.int32)             # (2, E)
    edge_attr = jax.random.uniform(k_e, (edge_index.shape[1], 1), jnp.float32)

    in_pos0 = jnp.arange(IN_CH, dtype=jnp.int32)
    p1 = make_layer_params(k1, IN_CH,  HID_CH // 2, in_pos0,        heads=HEADS)
    p2 = make_layer_params(k2, HID_CH, OUT_CH // 2, p1["out_pos"],  heads=HEADS)
    p3 = make_layer_params(k3, OUT_CH, HID_CH // 2, p2["out_pos"],  heads=HEADS)
    p4 = make_layer_params(k4, HID_CH, IN_CH // 2,  p3["out_pos"],  heads=HEADS)
    params_list = [p1, p2, p3, p4]

    fwd = jax.jit(lambda xx, ei, eattr: gcn_net_forward(xx, ei, eattr, params_list))
    x_ae, x_de = fwd(x, edge_index, edge_attr)
    jax.block_until_ready((x_ae, x_de))

    assert x_ae.shape == (N, OUT_CH) and x_de.shape == (N, IN_CH)
    assert bool(jnp.all(jnp.isfinite(x_ae))) and bool(jnp.all(jnp.isfinite(x_de)))
    print("KERNEL_OK")
</pallas_src>

<mosaic_0001>
module attributes {stable_mosaic.version = 11 : i64} {
  func.func @_proj_kernel(%arg0: i32, %arg1: memref<256x128xf32, #tpu.memory_space<vmem>>, %arg2: memref<128x512xbf16, #tpu.memory_space<vmem>>, %arg3: memref<1x512xf32, #tpu.memory_space<vmem>>, %arg4: memref<1x128xf32, #tpu.memory_space<vmem>>, %arg5: memref<1x128xf32, #tpu.memory_space<vmem>>, %arg6: memref<1x128xf32, #tpu.memory_space<vmem>>, %arg7: memref<256x256xf32, #tpu.memory_space<vmem>>, %arg8: memref<2x64x256xbf16, #tpu.memory_space<vmem>>, %arg9: memref<2x256x64xbf16, #tpu.memory_space<vmem>>) attributes {dimension_semantics = [#tpu.dimension_semantics<parallel>], iteration_bounds = array<i64: 1>, scalar_prefetch = 0 : i64, scratch_operands = 0 : i64, tpu.core_type = #tpu.core_type<tc>, window_params = [{transform_indices = @transform_0, window_bounds = array<i64: 256, 128>}, {pipeline_mode = #tpu.pipeline_mode<synchronous>, transform_indices = @transform_1, window_bounds = array<i64: 128, 512>}, {pipeline_mode = #tpu.pipeline_mode<synchronous>, transform_indices = @transform_2, window_bounds = array<i64: 1, 512>}, {pipeline_mode = #tpu.pipeline_mode<synchronous>, transform_indices = @transform_3, window_bounds = array<i64: 1, 128>}, {pipeline_mode = #tpu.pipeline_mode<synchronous>, transform_indices = @transform_4, window_bounds = array<i64: 1, 128>}, {pipeline_mode = #tpu.pipeline_mode<synchronous>, transform_indices = @transform_5, window_bounds = array<i64: 1, 128>}, {transform_indices = @transform_6, window_bounds = array<i64: 256, 256>}, {transform_indices = @transform_7, window_bounds = array<i64: 2, 64, 256>}, {transform_indices = @transform_8, window_bounds = array<i64: 2, 256, 64>}]} {
    %c0 = arith.constant 0 : index
    %c0_0 = arith.constant 0 : index
    %0 = vector.load %arg1[%c0, %c0_0] : memref<256x128xf32, #tpu.memory_space<vmem>>, vector<256x128xf32>
    %1 = arith.truncf %0 : vector<256x128xf32> to vector<256x128xbf16>
    %c0_1 = arith.constant 0 : index
    %c0_2 = arith.constant 0 : index
    %2 = vector.load %arg2[%c0_1, %c0_2] : memref<128x512xbf16, #tpu.memory_space<vmem>>, vector<128x512xbf16>
    %cst = arith.constant dense<0.000000e+00> : vector<256x512xf32>
    %3 = tpu.matmul %1, %2, %cst {dimension_numbers = #tpu.dot_dimension_numbers<[1], [0], [0], [1], [0, 0, 1, 1], [], []>} : vector<256x128xbf16>, vector<128x512xbf16>, vector<256x512xf32> -> vector<256x512xf32>
    %c0_3 = arith.constant 0 : index
    %c0_4 = arith.constant 0 : index
    %4 = vector.load %arg3[%c0_3, %c0_4] : memref<1x512xf32, #tpu.memory_space<vmem>>, vector<1x512xf32>
    %5 = vector.broadcast %4 : vector<1x512xf32> to vector<256x512xf32>
    %6 = arith.addf %3, %5 : vector<256x512xf32>
    %7 = vector.extract_strided_slice %6 {offsets = [0, 0], sizes = [256, 256], strides = [1, 1]} : vector<256x512xf32> to vector<256x256xf32>
    %c0_5 = arith.constant 0 : index
    %c0_6 = arith.constant 0 : index
    %8 = vector.load %arg7[%c0_5, %c0_6] : memref<256x256xf32, #tpu.memory_space<vmem>>, vector<256x256xf32>
    tpu.vector_store %arg7[%c0_5, %c0_6], %7 {strides = array<i32>} : memref<256x256xf32, #tpu.memory_space<vmem>>, vector<256x256xf32>,
    %9 = vector.extract_strided_slice %6 {offsets = [0, 256], sizes = [256, 64], strides = [1, 1]} : vector<256x512xf32> to vector<256x64xf32>
    %10 = vector.extract_strided_slice %6 {offsets = [0, 384], sizes = [256, 64], strides = [1, 1]} : vector<256x512xf32> to vector<256x64xf32>
    %11 = tpu.transpose %9, [1, 0] : vector<256x64xf32> -> vector<64x256xf32>
    %12 = arith.truncf %11 : vector<64x256xf32> to vector<64x256xbf16>
    %c0_7 = arith.constant 0 : index
    %c0_8 = arith.constant 0 : index
    %c0_9 = arith.constant 0 : index
    %13 = vector.load %arg8[%c0_7, %c0_8, %c0_9] : memref<2x64x256xbf16, #tpu.memory_space<vmem>>, vector<1x64x256xbf16>
    %14 = vector.shape_cast %13 : vector<1x64x256xbf16> to vector<64x256xbf16>
    %15 = vector.shape_cast %12 : vector<64x256xbf16> to vector<1x64x256xbf16>
    tpu.vector_store %arg8[%c0_7, %c0_8, %c0_9], %15 {strides = array<i32>} : memref<2x64x256xbf16, #tpu.memory_space<vmem>>, vector<1x64x256xbf16>,
    %16 = arith.truncf %10 : vector<256x64xf32> to vector<256x64xbf16>
    %c0_10 = arith.constant 0 : index
    %c0_11 = arith.constant 0 : index
    %c0_12 = arith.constant 0 : index
    %17 = vector.load %arg9[%c0_10, %c0_11, %c0_12] : memref<2x256x64xbf16, #tpu.memory_space<vmem>>, vector<1x256x64xbf16>
    %18 = vector.shape_cast %17 : vector<1x256x64xbf16> to vector<256x64xbf16>
    %19 = vector.shape_cast %16 : vector<256x64xbf16> to vector<1x256x64xbf16>
    tpu.vector_store %arg9[%c0_10, %c0_11, %c0_12], %19 {strides = array<i32>} : memref<2x256x64xbf16, #tpu.memory_space<vmem>>, vector<1x256x64xbf16>,
    %20 = vector.extract_strided_slice %6 {offsets = [0, 320], sizes = [256, 64], strides = [1, 1]} : vector<256x512xf32> to vector<256x64xf32>
    %21 = vector.extract_strided_slice %6 {offsets = [0, 448], sizes = [256, 64], strides = [1, 1]} : vector<256x512xf32> to vector<256x64xf32>
    %22 = tpu.transpose %20, [1, 0] : vector<256x64xf32> -> vector<64x256xf32>
    %23 = arith.truncf %22 : vector<64x256xf32> to vector<64x256xbf16>
    %c1 = arith.constant 1 : index
    %c0_13 = arith.constant 0 : index
    %c0_14 = arith.constant 0 : index
    %24 = vector.load %arg8[%c1, %c0_13, %c0_14] : memref<2x64x256xbf16, #tpu.memory_space<vmem>>, vector<1x64x256xbf16>
    %25 = vector.shape_cast %24 : vector<1x64x256xbf16> to vector<64x256xbf16>
    %26 = vector.shape_cast %23 : vector<64x256xbf16> to vector<1x64x256xbf16>
    tpu.vector_store %arg8[%c1, %c0_13, %c0_14], %26 {strides = array<i32>} : memref<2x64x256xbf16, #tpu.memory_space<vmem>>, vector<1x64x256xbf16>,
    %27 = arith.truncf %21 : vector<256x64xf32> to vector<256x64xbf16>
    %c1_15 = arith.constant 1 : index
    %c0_16 = arith.constant 0 : index
    %c0_17 = arith.constant 0 : index
    %28 = vector.load %arg9[%c1_15, %c0_16, %c0_17] : memref<2x256x64xbf16, #tpu.memory_space<vmem>>, vector<1x256x64xbf16>
    %29 = vector.shape_cast %28 : vector<1x256x64xbf16> to vector<256x64xbf16>
    %30 = vector.shape_cast %27 : vector<256x64xbf16> to vector<1x256x64xbf16>
    tpu.vector_store %arg9[%c1_15, %c0_16, %c0_17], %30 {strides = array<i32>} : memref<2x256x64xbf16, #tpu.memory_space<vmem>>, vector<1x256x64xbf16>,
    return
  }
  func.func @transform_0(%arg0: i32) -> (i32, i32) {
    %c0_i32 = arith.constant 0 : i32
    %c0_i32_0 = arith.constant 0 : i32
    return %arg0, %c0_i32 : i32, i32
  }
  func.func @transform_1(%arg0: i32) -> (i32, i32) {
    %c0_i32 = arith.constant 0 : i32
    %c0_i32_0 = arith.constant 0 : i32
    %c0_i32_1 = arith.constant 0 : i32
    return %c0_i32, %c0_i32_0 : i32, i32
  }
  func.func @transform_2(%arg0: i32) -> (i32, i32) {
    %c0_i32 = arith.constant 0 : i32
    %c0_i32_0 = arith.constant 0 : i32
    %c0_i32_1 = arith.constant 0 : i32
    return %c0_i32, %c0_i32_0 : i32, i32
  }
  func.func @transform_3(%arg0: i32) -> (i32, i32) {
    %c0_i32 = arith.constant 0 : i32
    %c0_i32_0 = arith.constant 0 : i32
    %c0_i32_1 = arith.constant 0 : i32
    return %c0_i32, %c0_i32_0 : i32, i32
  }
  func.func @transform_4(%arg0: i32) -> (i32, i32) {
    %c0_i32 = arith.constant 0 : i32
    %c0_i32_0 = arith.constant 0 : i32
    %c0_i32_1 = arith.constant 0 : i32
    return %c0_i32, %c0_i32_0 : i32, i32
  }
  func.func @transform_5(%arg0: i32) -> (i32, i32) {
    %c0_i32 = arith.constant 0 : i32
    %c0_i32_0 = arith.constant 0 : i32
    %c0_i32_1 = arith.constant 0 : i32
    return %c0_i32, %c0_i32_0 : i32, i32
  }
  func.func @transform_6(%arg0: i32) -> (i32, i32) {
    %c0_i32 = arith.constant 0 : i32
    %c0_i32_0 = arith.constant 0 : i32
    return %arg0, %c0_i32 : i32, i32
  }
  func.func @transform_7(%arg0: i32) -> (i32, i32, i32) {
    %c0_i32 = arith.constant 0 : i32
    %c0_i32_0 = arith.constant 0 : i32
    %c0_i32_1 = arith.constant 0 : i32
    return %c0_i32, %c0_i32_0, %arg0 : i32, i32, i32
  }
  func.func @transform_8(%arg0: i32) -> (i32, i32, i32) {
    %c0_i32 = arith.constant 0 : i32
    %c0_i32_0 = arith.constant 0 : i32
    %c0_i32_1 = arith.constant 0 : i32
    return %c0_i32, %arg0, %c0_i32_0 : i32, i32, i32
  }
}

module attributes {stable_mosaic.version = 11 : i64} {
  func.func @_attn_kernel(%arg0: i32, %arg1: memref<128x256xf32, #tpu.memory_space<vmem>>, %arg2: memref<2x64x256xbf16, #tpu.memory_space<vmem>>, %arg3: memref<2x256x64xbf16, #tpu.memory_space<vmem>>, %arg4: memref<128x256xbf16, #tpu.memory_space<vmem>>, %arg5: memref<1x128xf32, #tpu.memory_space<vmem>>, %arg6: memref<128x128xbf16, #tpu.memory_space<vmem>>, %arg7: memref<128x128xf32, #tpu.memory_space<vmem>>, %arg8: memref<1x2x128xf32, #tpu.memory_space<vmem>>) attributes {dimension_semantics = [#tpu.dimension_semantics<parallel>], iteration_bounds = array<i64: 2>, scalar_prefetch = 0 : i64, scratch_operands = 0 : i64, tpu.core_type = #tpu.core_type<tc>, window_params = [{transform_indices = @transform_0, window_bounds = array<i64: 128, 256>}, {pipeline_mode = #tpu.pipeline_mode<synchronous>, transform_indices = @transform_1, window_bounds = array<i64: 2, 64, 256>}, {pipeline_mode = #tpu.pipeline_mode<synchronous>, transform_indices = @transform_2, window_bounds = array<i64: 2, 256, 64>}, {transform_indices = @transform_3, window_bounds = array<i64: 128, 256>}, {pipeline_mode = #tpu.pipeline_mode<synchronous>, transform_indices = @transform_4, window_bounds = array<i64: 1, 128>}, {pipeline_mode = #tpu.pipeline_mode<synchronous>, transform_indices = @transform_5, window_bounds = array<i64: 128, 128>}, {transform_indices = @transform_6, window_bounds = array<i64: 128, 128>}, {transform_indices = @transform_7, window_bounds = array<i64: 1, 2, 128>}]} {
    %c0 = arith.constant 0 : index
    %c0_0 = arith.constant 0 : index
    %0 = vector.load %arg1[%c0, %c0_0] : memref<128x256xf32, #tpu.memory_space<vmem>>, vector<128x256xf32>
    %1 = vector.extract_strided_slice %0 {offsets = [0, 0], sizes = [128, 128], strides = [1, 1]} : vector<128x256xf32> to vector<128x128xf32>
    %2 = vector.extract_strided_slice %0 {offsets = [0, 128], sizes = [128, 128], strides = [1, 1]} : vector<128x256xf32> to vector<128x128xf32>
    %3 = arith.truncf %1 : vector<128x128xf32> to vector<128x128xbf16>
    %c0_1 = arith.constant 0 : index
    %c0_2 = arith.constant 0 : index
    %4 = vector.load %arg4[%c0_1, %c0_2] : memref<128x256xbf16, #tpu.memory_space<vmem>>, vector<128x256xbf16>
    %5 = arith.extf %4 : vector<128x256xbf16> to vector<128x256xf32>
    %cst = arith.constant -9.99999968E+37 : f32
    %6 = vector.broadcast %cst : f32 to vector<128x256xf32>
    %7 = arith.cmpf ogt, %5, %6 : vector<128x256xf32>
    %cst_3 = arith.constant 0.000000e+00 : f32
    %8 = vector.broadcast %cst_3 : f32 to vector<128x256xf32>
    %9 = arith.select %7, %5, %8 : vector<128x256xi1>, vector<128x256xf32>
    %c0_4 = arith.constant 0 : index
    %c0_5 = arith.constant 0 : index
    %10 = vector.load %arg6[%c0_4, %c0_5] : memref<128x128xbf16, #tpu.memory_space<vmem>>, vector<128x128xbf16>
    %cst_6 = arith.constant dense<0.000000e+00> : vector<128x128xf32>
    %11 = tpu.matmul %3, %10, %cst_6 {dimension_numbers = #tpu.dot_dimension_numbers<[1], [0], [0], [1], [0, 0, 1, 1], [], []>} : vector<128x128xbf16>, vector<128x128xbf16>, vector<128x128xf32> -> vector<128x128xf32>
    %c0_7 = arith.constant 0 : index
    %c0_8 = arith.constant 0 : index
    %12 = vector.load %arg5[%c0_7, %c0_8] : memref<1x128xf32, #tpu.memory_space<vmem>>, vector<1x128xf32>
    %c0_9 = arith.constant 0 : index
    %c0_10 = arith.constant 0 : index
    %c0_11 = arith.constant 0 : index
    %13 = vector.load %arg2[%c0_9, %c0_10, %c0_11] : memref<2x64x256xbf16, #tpu.memory_space<vmem>>, vector<1x64x256xbf16>
    %14 = vector.shape_cast %13 : vector<1x64x256xbf16> to vector<64x256xbf16>
    %c0_12 = arith.constant 0 : index
    %c0_13 = arith.constant 0 : index
    %c0_14 = arith.constant 0 : index
    %15 = vector.load %arg3[%c0_12, %c0_13, %c0_14] : memref<2x256x64xbf16, #tpu.memory_space<vmem>>, vector<1x256x64xbf16>
    %16 = vector.shape_cast %15 : vector<1x256x64xbf16> to vector<256x64xbf16>
    %17 = vector.extract_strided_slice %3 {offsets = [0, 0], sizes = [128, 64], strides = [1, 1]} : vector<128x128xbf16> to vector<128x64xbf16>
    %cst_15 = arith.constant dense<0.000000e+00> : vector<128x256xf32>
    %18 = tpu.matmul %17, %14, %cst_15 {dimension_numbers = #tpu.dot_dimension_numbers<[1], [0], [0], [1], [0, 0, 1, 1], [], []>} : vector<128x64xbf16>, vector<64x256xbf16>, vector<128x256xf32> -> vector<128x256xf32>
    %19 = vector.extract_strided_slice %11 {offsets = [0, 0], sizes = [128, 1], strides = [1, 1]} : vector<128x128xf32> to vector<128x1xf32>
    %20 = vector.broadcast %19 : vector<128x1xf32> to vector<128x256xf32>
    %21 = arith.mulf %9, %20 : vector<128x256xf32>
    %22 = arith.addf %18, %21 : vector<128x256xf32>
    %cst_16 = arith.constant -1.000000e+30 : f32
    %23 = vector.broadcast %cst_16 : f32 to vector<128x256xf32>
    %24 = arith.select %7, %22, %23 : vector<128x256xi1>, vector<128x256xf32>
    %cst_17 = arith.constant dense<0xFF800000> : vector<128xf32>
    %25 = vector.multi_reduction <maximumf>, %24, %cst_17 [1] : vector<128x256xf32> to vector<128xf32>
    %26 = vector.shape_cast %25 : vector<128xf32> to vector<128x1xf32>
    %27 = vector.broadcast %26 : vector<128x1xf32> to vector<128x256xf32>
    %28 = arith.subf %24, %27 : vector<128x256xf32>
    %29 = math.exp %28 : vector<128x256xf32>
    %cst_18 = arith.constant dense<0.000000e+00> : vector<128xf32>
    %30 = vector.multi_reduction <add>, %29, %cst_18 [1] : vector<128x256xf32> to vector<128xf32>
    %31 = vector.shape_cast %30 : vector<128xf32> to vector<128x1xf32>
    %cst_19 = arith.constant -5.000000e+29 : f32
    %32 = vector.broadcast %cst_19 : f32 to vector<128x1xf32>
    %33 = arith.cmpf ogt, %26, %32 : vector<128x1xf32>
    %34 = tpu.reciprocal %31 {approx = true} : vector<128x1xf32> -> vector<128x1xf32>
    %cst_20 = arith.constant 0.000000e+00 : f32
    %35 = vector.broadcast %cst_20 : f32 to vector<128x1xf32>
    %36 = arith.select %33, %34, %35 : vector<128x1xi1>, vector<128x1xf32>
    %37 = vector.broadcast %36 : vector<128x1xf32> to vector<128x256xf32>
    %38 = arith.mulf %29, %37 : vector<128x256xf32>
    %39 = arith.truncf %38 : vector<128x256xf32> to vector<128x256xbf16>
    %cst_21 = arith.constant dense<0.000000e+00> : vector<128x64xf32>
    %40 = tpu.matmul %39, %16, %cst_21 {dimension_numbers = #tpu.dot_dimension_numbers<[1], [0], [0], [1], [0, 0, 1, 1], [], []>} : vector<128x256xbf16>, vector<256x64xbf16>, vector<128x64xf32> -> vector<128x64xf32>
    %41 = arith.mulf %38, %9 : vector<128x256xf32>
    %cst_22 = arith.constant dense<0.000000e+00> : vector<128xf32>
    %42 = vector.multi_reduction <add>, %41, %cst_22 [1] : vector<128x256xf32> to vector<128xf32>
    %43 = vector.shape_cast %42 : vector<128xf32> to vector<128x1xf32>
    %44 = vector.extract_strided_slice %12 {offsets = [0, 0], sizes = [1, 64], strides = [1, 1]} : vector<1x128xf32> to vector<1x64xf32>
    %45 = vector.broadcast %43 : vector<128x1xf32> to vector<128x64xf32>
    %46 = vector.broadcast %44 : vector<1x64xf32> to vector<128x64xf32>
    %47 = arith.mulf %45, %46 : vector<128x64xf32>
    %48 = arith.addf %40, %47 : vector<128x64xf32>
    %c1 = arith.constant 1 : index
    %c0_23 = arith.constant 0 : index
    %c0_24 = arith.constant 0 : index
    %49 = vector.load %arg2[%c1, %c0_23, %c0_24] : memref<2x64x256xbf16, #tpu.memory_space<vmem>>, vector<1x64x256xbf16>
    %50 = vector.shape_cast %49 : vector<1x64x256xbf16> to vector<64x256xbf16>
    %c1_25 = arith.constant 1 : index
    %c0_26 = arith.constant 0 : index
    %c0_27 = arith.constant 0 : index
    %51 = vector.load %arg3[%c1_25, %c0_26, %c0_27] : memref<2x256x64xbf16, #tpu.memory_space<vmem>>, vector<1x256x64xbf16>
    %52 = vector.shape_cast %51 : vector<1x256x64xbf16> to vector<256x64xbf16>
    %53 = vector.extract_strided_slice %3 {offsets = [0, 64], sizes = [128, 64], strides = [1, 1]} : vector<128x128xbf16> to vector<128x64xbf16>
    %cst_28 = arith.constant dense<0.000000e+00> : vector<128x256xf32>
    %54 = tpu.matmul %53, %50, %cst_28 {dimension_numbers = #tpu.dot_dimension_numbers<[1], [0], [0], [1], [0, 0, 1, 1], [], []>} : vector<128x64xbf16>, vector<64x256xbf16>, vector<128x256xf32> -> vector<128x256xf32>
    %55 = vector.extract_strided_slice %11 {offsets = [0, 1], sizes = [128, 1], strides = [1, 1]} : vector<128x128xf32> to vector<128x1xf32>
    %56 = vector.broadcast %55 : vector<128x1xf32> to vector<128x256xf32>
    %57 = arith.mulf %9, %56 : vector<128x256xf32>
    %58 = arith.addf %54, %57 : vector<128x256xf32>
    %cst_29 = arith.constant -1.000000e+30 : f32
    %59 = vector.broadcast %cst_29 : f32 to vector<128x256xf32>
    %60 = arith.select %7, %58, %59 : vector<128x256xi1>, vector<128x256xf32>
    %cst_30 = arith.constant dense<0xFF800000> : vector<128xf32>
    %61 = vector.multi_reduction <maximumf>, %60, %cst_30 [1] : vector<128x256xf32> to vector<128xf32>
    %62 = vector.shape_cast %61 : vector<128xf32> to vector<128x1xf32>
    %63 = vector.broadcast %62 : vector<128x1xf32> to vector<128x256xf32>
    %64 = arith.subf %60, %63 : vector<128x256xf32>
    %65 = math.exp %64 : vector<128x256xf32>
    %cst_31 = arith.constant dense<0.000000e+00> : vector<128xf32>
    %66 = vector.multi_reduction <add>, %65, %cst_31 [1] : vector<128x256xf32> to vector<128xf32>
    %67 = vector.shape_cast %66 : vector<128xf32> to vector<128x1xf32>
    %cst_32 = arith.constant -5.000000e+29 : f32
    %68 = vector.broadcast %cst_32 : f32 to vector<128x1xf32>
    %69 = arith.cmpf ogt, %62, %68 : vector<128x1xf32>
    %70 = tpu.reciprocal %67 {approx = true} : vector<128x1xf32> -> vector<128x1xf32>
    %cst_33 = arith.constant 0.000000e+00 : f32
    %71 = vector.broadcast %cst_33 : f32 to vector<128x1xf32>
    %72 = arith.select %69, %70, %71 : vector<128x1xi1>, vector<128x1xf32>
    %73 = vector.broadcast %72 : vector<128x1xf32> to vector<128x256xf32>
    %74 = arith.mulf %65, %73 : vector<128x256xf32>
    %75 = arith.truncf %74 : vector<128x256xf32> to vector<128x256xbf16>
    %cst_34 = arith.constant dense<0.000000e+00> : vector<128x64xf32>
    %76 = tpu.matmul %75, %52, %cst_34 {dimension_numbers = #tpu.dot_dimension_numbers<[1], [0], [0], [1], [0, 0, 1, 1], [], []>} : vector<128x256xbf16>, vector<256x64xbf16>, vector<128x64xf32> -> vector<128x64xf32>
    %77 = arith.mulf %74, %9 : vector<128x256xf32>
    %cst_35 = arith.constant dense<0.000000e+00> : vector<128xf32>
    %78 = vector.multi_reduction <add>, %77, %cst_35 [1] : vector<128x256xf32> to vector<128xf32>
    %79 = vector.shape_cast %78 : vector<128xf32> to vector<128x1xf32>
    %80 = vector.extract_strided_slice %12 {offsets = [0, 64], sizes = [1, 64], strides = [1, 1]} : vector<1x128xf32> to vector<1x64xf32>
    %81 = vector.broadcast %79 : vector<128x1xf32> to vector<128x64xf32>
    %82 = vector.broadcast %80 : vector<1x64xf32> to vector<128x64xf32>
    %83 = arith.mulf %81, %82 : vector<128x64xf32>
    %84 = arith.addf %76, %83 : vector<128x64xf32>
    %85 = tpu.concatenate %48, %84 in 1 : vector<128x64xf32>, vector<128x64xf32> -> vector<128x128xf32>
    %86 = arith.addf %85, %2 : vector<128x128xf32>
    %c0_36 = arith.constant 0 : index
    %c0_37 = arith.constant 0 : index
    %87 = vector.load %arg7[%c0_36, %c0_37] : memref<128x128xf32, #tpu.memory_space<vmem>>, vector<128x128xf32>
    tpu.vector_store %arg7[%c0_36, %c0_37], %86 {strides = array<i32>} : memref<128x128xf32, #tpu.memory_space<vmem>>, vector<128x128xf32>,
    %c128_i32 = arith.constant 128 : i32
    %88 = arith.muli %arg0, %c128_i32 : i32
    %89 = tpu.iota {dimensions = array<i32: 0>} : vector<128x1xi32>
    %90 = vector.broadcast %88 : i32 to vector<128x1xi32>
    %91 = arith.addi %90, %89 : vector<128x1xi32>
    %c200_i32 = arith.constant 200 : i32
    %92 = vector.broadcast %c200_i32 : i32 to vector<128x1xi32>
    %93 = arith.cmpi slt, %91, %92 : vector<128x1xi32>
    %94 = arith.extui %93 : vector<128x1xi1> to vector<128x1xi32>
    %95 = arith.sitofp %94 : vector<128x1xi32> to vector<128x1xf32>
    %96 = vector.broadcast %95 : vector<128x1xf32> to vector<128x128xf32>
    %97 = arith.mulf %86, %96 : vector<128x128xf32>
    %cst_38 = arith.constant dense<0.000000e+00> : vector<128xf32>
    %98 = vector.multi_reduction <add>, %97, %cst_38 [0] : vector<128x128xf32> to vector<128xf32>
    %99 = vector.shape_cast %98 : vector<128xf32> to vector<1x128xf32>
    %100 = arith.mulf %86, %86 : vector<128x128xf32>
    %101 = vector.broadcast %95 : vector<128x1xf32> to vector<128x128xf32>
    %102 = arith.mulf %100, %101 : vector<128x128xf32>
    %cst_39 = arith.constant dense<0.000000e+00> : vector<128xf32>
    %103 = vector.multi_reduction <add>, %102, %cst_39 [0] : vector<128x128xf32> to vector<128xf32>
    %104 = vector.shape_cast %103 : vector<128xf32> to vector<1x128xf32>
    %105 = tpu.concatenate %99, %104 in 0 : vector<1x128xf32>, vector<1x128xf32> -> vector<2x128xf32>
    %106 = vector.shape_cast %105 : vector<2x128xf32> to vector<1x2x128xf32>
    %c0_40 = arith.constant 0 : index
    %c0_41 = arith.constant 0 : index
    %c0_42 = arith.constant 0 : index
    %107 = vector.load %arg8[%c0_40, %c0_41, %c0_42] : memref<1x2x128xf32, #tpu.memory_space<vmem>>, vector<1x2x128xf32>
    tpu.vector_store %arg8[%c0_40, %c0_41, %c0_42], %106 {strides = array<i32>} : memref<1x2x128xf32, #tpu.memory_space<vmem>>, vector<1x2x128xf32>,
    return
  }
  func.func @transform_0(%arg0: i32) -> (i32, i32) {
    %c0_i32 = arith.constant 0 : i32
    %c0_i32_0 = arith.constant 0 : i32
    return %arg0, %c0_i32 : i32, i32
  }
  func.func @transform_1(%arg0: i32) -> (i32, i32, i32) {
    %c0_i32 = arith.constant 0 : i32
    %c0_i32_0 = arith.constant 0 : i32
    %c0_i32_1 = arith.constant 0 : i32
    %c0_i32_2 = arith.constant 0 : i32
    return %c0_i32, %c0_i32_0, %c0_i32_1 : i32, i32, i32
  }
  func.func @transform_2(%arg0: i32) -> (i32, i32, i32) {
    %c0_i32 = arith.constant 0 : i32
    %c0_i32_0 = arith.constant 0 : i32
    %c0_i32_1 = arith.constant 0 : i32
    %c0_i32_2 = arith.constant 0 : i32
    return %c0_i32, %c0_i32_0, %c0_i32_1 : i32, i32, i32
  }
  func.func @transform_3(%arg0: i32) -> (i32, i32) {
    %c0_i32 = arith.constant 0 : i32
    %c0_i32_0 = arith.constant 0 : i32
    return %arg0, %c0_i32 : i32, i32
  }
  func.func @transform_4(%arg0: i32) -> (i32, i32) {
    %c0_i32 = arith.constant 0 : i32
    %c0_i32_0 = arith.constant 0 : i32
    %c0_i32_1 = arith.constant 0 : i32
    return %c0_i32, %c0_i32_0 : i32, i32
  }
  func.func @transform_5(%arg0: i32) -> (i32, i32) {
    %c0_i32 = arith.constant 0 : i32
    %c0_i32_0 = arith.constant 0 : i32
    %c0_i32_1 = arith.constant 0 : i32
    return %c0_i32, %c0_i32_0 : i32, i32
  }
  func.func @transform_6(%arg0: i32) -> (i32, i32) {
    %c0_i32 = arith.constant 0 : i32
    %c0_i32_0 = arith.constant 0 : i32
    return %arg0, %c0_i32 : i32, i32
  }
  func.func @transform_7(%arg0: i32) -> (i32, i32, i32) {
    %c0_i32 = arith.constant 0 : i32
    %c0_i32_0 = arith.constant 0 : i32
    %c0_i32_1 = arith.constant 0 : i32
    return %arg0, %c0_i32, %c0_i32_0 : i32, i32, i32
  }
}

module attributes {stable_mosaic.version = 11 : i64} {
  func.func @_proj_kernel(%arg0: i32, %arg1: memref<256x128xf32, #tpu.memory_space<vmem>>, %arg2: memref<128x512xbf16, #tpu.memory_space<vmem>>, %arg3: memref<1x512xf32, #tpu.memory_space<vmem>>, %arg4: memref<1x128xf32, #tpu.memory_space<vmem>>, %arg5: memref<1x128xf32, #tpu.memory_space<vmem>>, %arg6: memref<1x128xf32, #tpu.memory_space<vmem>>, %arg7: memref<256x256xf32, #tpu.memory_space<vmem>>, %arg8: memref<2x64x256xbf16, #tpu.memory_space<vmem>>, %arg9: memref<2x256x64xbf16, #tpu.memory_space<vmem>>) attributes {dimension_semantics = [#tpu.dimension_semantics<parallel>], iteration_bounds = array<i64: 1>, scalar_prefetch = 0 : i64, scratch_operands = 0 : i64, tpu.core_type = #tpu.core_type<tc>, window_params = [{transform_indices = @transform_0, window_bounds = array<i64: 256, 128>}, {pipeline_mode = #tpu.pipeline_mode<synchronous>, transform_indices = @transform_1, window_bounds = array<i64: 128, 512>}, {pipeline_mode = #tpu.pipeline_mode<synchronous>, transform_indices = @transform_2, window_bounds = array<i64: 1, 512>}, {pipeline_mode = #tpu.pipeline_mode<synchronous>, transform_indices = @transform_3, window_bounds = array<i64: 1, 128>}, {pipeline_mode = #tpu.pipeline_mode<synchronous>, transform_indices = @transform_4, window_bounds = array<i64: 1, 128>}, {pipeline_mode = #tpu.pipeline_mode<synchronous>, transform_indices = @transform_5, window_bounds = array<i64: 1, 128>}, {transform_indices = @transform_6, window_bounds = array<i64: 256, 256>}, {transform_indices = @transform_7, window_bounds = array<i64: 2, 64, 256>}, {transform_indices = @transform_8, window_bounds = array<i64: 2, 256, 64>}]} {
    %c0 = arith.constant 0 : index
    %c0_0 = arith.constant 0 : index
    %0 = vector.load %arg1[%c0, %c0_0] : memref<256x128xf32, #tpu.memory_space<vmem>>, vector<256x128xf32>
    %c0_1 = arith.constant 0 : index
    %c0_2 = arith.constant 0 : index
    %1 = vector.load %arg4[%c0_1, %c0_2] : memref<1x128xf32, #tpu.memory_space<vmem>>, vector<1x128xf32>
    %2 = vector.broadcast %1 : vector<1x128xf32> to vector<256x128xf32>
    %3 = arith.subf %0, %2 : vector<256x128xf32>
    %c0_3 = arith.constant 0 : index
    %c0_4 = arith.constant 0 : index
    %4 = vector.load %arg5[%c0_3, %c0_4] : memref<1x128xf32, #tpu.memory_space<vmem>>, vector<1x128xf32>
    %5 = vector.broadcast %4 : vector<1x128xf32> to vector<256x128xf32>
    %6 = arith.mulf %3, %5 : vector<256x128xf32>
    %c0_5 = arith.constant 0 : index
    %c0_6 = arith.constant 0 : index
    %7 = vector.load %arg6[%c0_5, %c0_6] : memref<1x128xf32, #tpu.memory_space<vmem>>, vector<1x128xf32>
    %8 = vector.broadcast %7 : vector<1x128xf32> to vector<256x128xf32>
    %9 = arith.addf %6, %8 : vector<256x128xf32>
    %cst = arith.constant 0.000000e+00 : f32
    %10 = vector.broadcast %cst : f32 to vector<256x128xf32>
    %11 = arith.maximumf %9, %10 : vector<256x128xf32>
    %12 = arith.truncf %11 : vector<256x128xf32> to vector<256x128xbf16>
    %c0_7 = arith.constant 0 : index
    %c0_8 = arith.constant 0 : index
    %13 = vector.load %arg2[%c0_7, %c0_8] : memref<128x512xbf16, #tpu.memory_space<vmem>>, vector<128x512xbf16>
    %cst_9 = arith.constant dense<0.000000e+00> : vector<256x512xf32>
    %14 = tpu.matmul %12, %13, %cst_9 {dimension_numbers = #tpu.dot_dimension_numbers<[1], [0], [0], [1], [0, 0, 1, 1], [], []>} : vector<256x128xbf16>, vector<128x512xbf16>, vector<256x512xf32> -> vector<256x512xf32>
    %c0_10 = arith.constant 0 : index
    %c0_11 = arith.constant 0 : index
    %15 = vector.load %arg3[%c0_10, %c0_11] : memref<1x512xf32, #tpu.memory_space<vmem>>, vector<1x512xf32>
    %16 = vector.broadcast %15 : vector<1x512xf32> to vector<256x512xf32>
    %17 = arith.addf %14, %16 : vector<256x512xf32>
    %18 = vector.extract_strided_slice %17 {offsets = [0, 0], sizes = [256, 256], strides = [1, 1]} : vector<256x512xf32> to vector<256x256xf32>
    %c0_12 = arith.constant 0 : index
    %c0_13 = arith.constant 0 : index
    %19 = vector.load %arg7[%c0_12, %c0_13] : memref<256x256xf32, #tpu.memory_space<vmem>>, vector<256x256xf32>
    tpu.vector_store %arg7[%c0_12, %c0_13], %18 {strides = array<i32>} : memref<256x256xf32, #tpu.memory_space<vmem>>, vector<256x256xf32>,
    %20 = vector.extract_strided_slice %17 {offsets = [0, 256], sizes = [256, 64], strides = [1, 1]} : vector<256x512xf32> to vector<256x64xf32>
    %21 = vector.extract_strided_slice %17 {offsets = [0, 384], sizes = [256, 64], strides = [1, 1]} : vector<256x512xf32> to vector<256x64xf32>
    %22 = tpu.transpose %20, [1, 0] : vector<256x64xf32> -> vector<64x256xf32>
    %23 = arith.truncf %22 : vector<64x256xf32> to vector<64x256xbf16>
    %c0_14 = arith.constant 0 : index
    %c0_15 = arith.constant 0 : index
    %c0_16 = arith.constant 0 : index
    %24 = vector.load %arg8[%c0_14, %c0_15, %c0_16] : memref<2x64x256xbf16, #tpu.memory_space<vmem>>, vector<1x64x256xbf16>
    %25 = vector.shape_cast %24 : vector<1x64x256xbf16> to vector<64x256xbf16>
    %26 = vector.shape_cast %23 : vector<64x256xbf16> to vector<1x64x256xbf16>
    tpu.vector_store %arg8[%c0_14, %c0_15, %c0_16], %26 {strides = array<i32>} : memref<2x64x256xbf16, #tpu.memory_space<vmem>>, vector<1x64x256xbf16>,
    %27 = arith.truncf %21 : vector<256x64xf32> to vector<256x64xbf16>
    %c0_17 = arith.constant 0 : index
    %c0_18 = arith.constant 0 : index
    %c0_19 = arith.constant 0 : index
    %28 = vector.load %arg9[%c0_17, %c0_18, %c0_19] : memref<2x256x64xbf16, #tpu.memory_space<vmem>>, vector<1x256x64xbf16>
    %29 = vector.shape_cast %28 : vector<1x256x64xbf16> to vector<256x64xbf16>
    %30 = vector.shape_cast %27 : vector<256x64xbf16> to vector<1x256x64xbf16>
    tpu.vector_store %arg9[%c0_17, %c0_18, %c0_19], %30 {strides = array<i32>} : memref<2x256x64xbf16, #tpu.memory_space<vmem>>, vector<1x256x64xbf16>,
    %31 = vector.extract_strided_slice %17 {offsets = [0, 320], sizes = [256, 64], strides = [1, 1]} : vector<256x512xf32> to vector<256x64xf32>
    %32 = vector.extract_strided_slice %17 {offsets = [0, 448], sizes = [256, 64], strides = [1, 1]} : vector<256x512xf32> to vector<256x64xf32>
    %33 = tpu.transpose %31, [1, 0] : vector<256x64xf32> -> vector<64x256xf32>
    %34 = arith.truncf %33 : vector<64x256xf32> to vector<64x256xbf16>
    %c1 = arith.constant 1 : index
    %c0_20 = arith.constant 0 : index
    %c0_21 = arith.constant 0 : index
    %35 = vector.load %arg8[%c1, %c0_20, %c0_21] : memref<2x64x256xbf16, #tpu.memory_space<vmem>>, vector<1x64x256xbf16>
    %36 = vector.shape_cast %35 : vector<1x64x256xbf16> to vector<64x256xbf16>
    %37 = vector.shape_cast %34 : vector<64x256xbf16> to vector<1x64x256xbf16>
    tpu.vector_store %arg8[%c1, %c0_20, %c0_21], %37 {strides = array<i32>} : memref<2x64x256xbf16, #tpu.memory_space<vmem>>, vector<1x64x256xbf16>,
    %38 = arith.truncf %32 : vector<256x64xf32> to vector<256x64xbf16>
    %c1_22 = arith.constant 1 : index
    %c0_23 = arith.constant 0 : index
    %c0_24 = arith.constant 0 : index
    %39 = vector.load %arg9[%c1_22, %c0_23, %c0_24] : memref<2x256x64xbf16, #tpu.memory_space<vmem>>, vector<1x256x64xbf16>
    %40 = vector.shape_cast %39 : vector<1x256x64xbf16> to vector<256x64xbf16>
    %41 = vector.shape_cast %38 : vector<256x64xbf16> to vector<1x256x64xbf16>
    tpu.vector_store %arg9[%c1_22, %c0_23, %c0_24], %41 {strides = array<i32>} : memref<2x256x64xbf16, #tpu.memory_space<vmem>>, vector<1x256x64xbf16>,
    return
  }
  func.func @transform_0(%arg0: i32) -> (i32, i32) {
    %c0_i32 = arith.constant 0 : i32
    %c0_i32_0 = arith.constant 0 : i32
    return %arg0, %c0_i32 : i32, i32
  }
  func.func @transform_1(%arg0: i32) -> (i32, i32) {
    %c0_i32 = arith.constant 0 : i32
    %c0_i32_0 = arith.constant 0 : i32
    %c0_i32_1 = arith.constant 0 : i32
    return %c0_i32, %c0_i32_0 : i32, i32
  }
  func.func @transform_2(%arg0: i32) -> (i32, i32) {
    %c0_i32 = arith.constant 0 : i32
    %c0_i32_0 = arith.constant 0 : i32
    %c0_i32_1 = arith.constant 0 : i32
    return %c0_i32, %c0_i32_0 : i32, i32
  }
  func.func @transform_3(%arg0: i32) -> (i32, i32) {
    %c0_i32 = arith.constant 0 : i32
    %c0_i32_0 = arith.constant 0 : i32
    %c0_i32_1 = arith.constant 0 : i32
    return %c0_i32, %c0_i32_0 : i32, i32
  }
  func.func @transform_4(%arg0: i32) -> (i32, i32) {
    %c0_i32 = arith.constant 0 : i32
    %c0_i32_0 = arith.constant 0 : i32
    %c0_i32_1 = arith.constant 0 : i32
    return %c0_i32, %c0_i32_0 : i32, i32
  }
  func.func @transform_5(%arg0: i32) -> (i32, i32) {
    %c0_i32 = arith.constant 0 : i32
    %c0_i32_0 = arith.constant 0 : i32
    %c0_i32_1 = arith.constant 0 : i32
    return %c0_i32, %c0_i32_0 : i32, i32
  }
  func.func @transform_6(%arg0: i32) -> (i32, i32) {
    %c0_i32 = arith.constant 0 : i32
    %c0_i32_0 = arith.constant 0 : i32
    return %arg0, %c0_i32 : i32, i32
  }
  func.func @transform_7(%arg0: i32) -> (i32, i32, i32) {
    %c0_i32 = arith.constant 0 : i32
    %c0_i32_0 = arith.constant 0 : i32
    %c0_i32_1 = arith.constant 0 : i32
    return %c0_i32, %c0_i32_0, %arg0 : i32, i32, i32
  }
  func.func @transform_8(%arg0: i32) -> (i32, i32, i32) {
    %c0_i32 = arith.constant 0 : i32
    %c0_i32_0 = arith.constant 0 : i32
    %c0_i32_1 = arith.constant 0 : i32
    return %c0_i32, %arg0, %c0_i32_0 : i32, i32, i32
  }
}

module attributes {stable_mosaic.version = 11 : i64} {
  func.func @_bn_relu_kernel(%arg0: i32, %arg1: memref<256x128xf32, #tpu.memory_space<vmem>>, %arg2: memref<1x128xf32, #tpu.memory_space<vmem>>, %arg3: memref<1x128xf32, #tpu.memory_space<vmem>>, %arg4: memref<1x128xf32, #tpu.memory_space<vmem>>, %arg5: memref<256x128xf32, #tpu.memory_space<vmem>>) attributes {dimension_semantics = [#tpu.dimension_semantics<parallel>], iteration_bounds = array<i64: 1>, scalar_prefetch = 0 : i64, scratch_operands = 0 : i64, tpu.core_type = #tpu.core_type<tc>, window_params = [{transform_indices = @transform_0, window_bounds = array<i64: 256, 128>}, {pipeline_mode = #tpu.pipeline_mode<synchronous>, transform_indices = @transform_1, window_bounds = array<i64: 1, 128>}, {pipeline_mode = #tpu.pipeline_mode<synchronous>, transform_indices = @transform_2, window_bounds = array<i64: 1, 128>}, {pipeline_mode = #tpu.pipeline_mode<synchronous>, transform_indices = @transform_3, window_bounds = array<i64: 1, 128>}, {transform_indices = @transform_4, window_bounds = array<i64: 256, 128>}]} {
    %c0 = arith.constant 0 : index
    %c0_0 = arith.constant 0 : index
    %0 = vector.load %arg1[%c0, %c0_0] : memref<256x128xf32, #tpu.memory_space<vmem>>, vector<256x128xf32>
    %c0_1 = arith.constant 0 : index
    %c0_2 = arith.constant 0 : index
    %1 = vector.load %arg2[%c0_1, %c0_2] : memref<1x128xf32, #tpu.memory_space<vmem>>, vector<1x128xf32>
    %2 = vector.broadcast %1 : vector<1x128xf32> to vector<256x128xf32>
    %3 = arith.subf %0, %2 : vector<256x128xf32>
    %c0_3 = arith.constant 0 : index
    %c0_4 = arith.constant 0 : index
    %4 = vector.load %arg3[%c0_3, %c0_4] : memref<1x128xf32, #tpu.memory_space<vmem>>, vector<1x128xf32>
    %5 = vector.broadcast %4 : vector<1x128xf32> to vector<256x128xf32>
    %6 = arith.mulf %3, %5 : vector<256x128xf32>
    %c0_5 = arith.constant 0 : index
    %c0_6 = arith.constant 0 : index
    %7 = vector.load %arg4[%c0_5, %c0_6] : memref<1x128xf32, #tpu.memory_space<vmem>>, vector<1x128xf32>
    %8 = vector.broadcast %7 : vector<1x128xf32> to vector<256x128xf32>
    %9 = arith.addf %6, %8 : vector<256x128xf32>
    %cst = arith.constant 0.000000e+00 : f32
    %10 = vector.broadcast %cst : f32 to vector<256x128xf32>
    %11 = arith.maximumf %9, %10 : vector<256x128xf32>
    %c0_7 = arith.constant 0 : index
    %c0_8 = arith.constant 0 : index
    %12 = vector.load %arg5[%c0_7, %c0_8] : memref<256x128xf32, #tpu.memory_space<vmem>>, vector<256x128xf32>
    tpu.vector_store %arg5[%c0_7, %c0_8], %11 {strides = array<i32>} : memref<256x128xf32, #tpu.memory_space<vmem>>, vector<256x128xf32>,
    return
  }
  func.func @transform_0(%arg0: i32) -> (i32, i32) {
    %c0_i32 = arith.constant 0 : i32
    %c0_i32_0 = arith.constant 0 : i32
    return %arg0, %c0_i32 : i32, i32
  }
  func.func @transform_1(%arg0: i32) -> (i32, i32) {
    %c0_i32 = arith.constant 0 : i32
    %c0_i32_0 = arith.constant 0 : i32
    %c0_i32_1 = arith.constant 0 : i32
    return %c0_i32, %c0_i32_0 : i32, i32
  }
  func.func @transform_2(%arg0: i32) -> (i32, i32) {
    %c0_i32 = arith.constant 0 : i32
    %c0_i32_0 = arith.constant 0 : i32
    %c0_i32_1 = arith.constant 0 : i32
    return %c0_i32, %c0_i32_0 : i32, i32
  }
  func.func @transform_3(%arg0: i32) -> (i32, i32) {
    %c0_i32 = arith.constant 0 : i32
    %c0_i32_0 = arith.constant 0 : i32
    %c0_i32_1 = arith.constant 0 : i32
    return %c0_i32, %c0_i32_0 : i32, i32
  }
  func.func @transform_4(%arg0: i32) -> (i32, i32) {
    %c0_i32 = arith.constant 0 : i32
    %c0_i32_0 = arith.constant 0 : i32
    return %arg0, %c0_i32 : i32, i32
  }
}

</mosaic_0001>

<llo_original>
// kernel: _lambda_.10
$region0: #{_lambda_.10}
  #allocation0 [shape = 'u32[]', space=smem, size = 0x4, offset = 0x4, fixed_abs, tag = 'smem constant byte address 0x4 - core index']
  #allocation1 [shape = 'u32[72,128]{1,0:T(1,128)}', space=vmem, size = 0x9000, scoped, tag = 'internal scratch']
  %s0 = inlined_call_operand.vmem [shape: f32[256,128], index: 0, kind: input, shape index: {}]
  %s1 = inlined_call_operand.vmem [shape: bf16[128,512], index: 1, kind: input, shape index: {}]
  %s2 = inlined_call_operand.vmem [shape: f32[1,512], index: 2, kind: input, shape index: {}]
  %s3 = inlined_call_operand.vmem [shape: f32[1,128], index: 3, kind: input, shape index: {}, may-alias: {3,4,5}]
  %s4 = inlined_call_operand.vmem [shape: f32[1,128], index: 4, kind: input, shape index: {}, may-alias: {3,4,5}]
  %s5 = inlined_call_operand.vmem [shape: f32[1,128], index: 5, kind: input, shape index: {}, may-alias: {3,4,5}]
  %s6 = inlined_call_operand.vmem [shape: f32[256,256], index: 6, kind: output, shape index: {0}]
  %s7 = inlined_call_operand.vmem [shape: bf16[2,64,256], index: 7, kind: output, shape index: {1}]
  %s8 = inlined_call_operand.vmem [shape: bf16[2,256,64], index: 8, kind: output, shape index: {2}]
  %9 = xla_tuple %s6, %s7, %s8
  %s10 = sld [smem:[#allocation0]]
  $region50: #{_lambda_.10} parent=0
    _
  %s12 = ssub.s32 1, %s10
  %s13 = scalar_select 0, %s12, %s10
  // Predicated region
  $region2: #{_lambda_.10} parent=0 // pred_check
    _
  $region3: #{_lambda_.10} parent=0 // pred_check_branch
    %15 = sbr.rel (0) target = $region5
  $region4: #{_lambda_.10} parent=0 // pred_region
    _
  $region5: #{_lambda_.10} parent=0 // pred_fallthru
    _
  // Predicated region
  $region6: #{_lambda_.10} parent=0 // pred_check
    _
  $region7: #{_lambda_.10} parent=0 // pred_check_branch
    %17 = sbr.rel (0) target = $region9
  $region8: #{_lambda_.10} parent=0 // pred_region
    _
  $region9: #{_lambda_.10} parent=0 // pred_fallthru
    _
  // Predicated region
  $region10: #{_lambda_.10} parent=0 // pred_check
    _
  $region11: #{_lambda_.10} parent=0 // pred_check_branch
    %19 = sbr.rel (0) target = $region13
  $region12: #{_lambda_.10} parent=0 // pred_region
    _
  $region13: #{_lambda_.10} parent=0 // pred_fallthru
    _
  // Predicated region
  $region14: #{_lambda_.10} parent=0 // pred_check
    _
  $region15: #{_lambda_.10} parent=0 // pred_check_branch
    %21 = sbr.rel (0) target = $region17
  $region16: #{_lambda_.10} parent=0 // pred_region
    _
  $region17: #{_lambda_.10} parent=0 // pred_fallthru
    _
  // Predicated region
  $region18: #{_lambda_.10} parent=0 // pred_check
    _
  $region19: #{_lambda_.10} parent=0 // pred_check_branch
    %23 = sbr.rel (0) target = $region21
  $region20: #{_lambda_.10} parent=0 // pred_region
    _
  $region21: #{_lambda_.10} parent=0 // pred_fallthru
    _
  // Predicated region
  $region22: #{_lambda_.10} parent=0 // pred_check
    _
  $region23: #{_lambda_.10} parent=0 // pred_check_branch
    %25 = sbr.rel (0) target = $region25
  $region24: #{_lambda_.10} parent=0 // pred_region
    _
  $region25: #{_lambda_.10} parent=0 // pred_fallthru
    _
  %v26 = vld [vmem:[%s0] sm:$0xff]
  %v27 = vld [vmem:[%s0 + $0x8] sm:$0xff]
  %v28 = vld [vmem:[%s0 + $0x10] sm:$0xff]
  %v29 = vld [vmem:[%s0 + $0x18] sm:$0xff]
  %v30 = vld [vmem:[%s0 + $0x20] sm:$0xff]
  %v31 = vld [vmem:[%s0 + $0x28] sm:$0xff]
  %v32 = vld [vmem:[%s0 + $0x30] sm:$0xff]
  %v33 = vld [vmem:[%s0 + $0x38] sm:$0xff]
  %v34 = vld [vmem:[%s0 + $0x40] sm:$0xff]
  %v35 = vld [vmem:[%s0 + $0x48] sm:$0xff]
  %v36 = vld [vmem:[%s0 + $0x50] sm:$0xff]
  %v37 = vld [vmem:[%s0 + $0x58] sm:$0xff]
  %v38 = vld [vmem:[%s0 + $0x60] sm:$0xff]
  %v39 = vld [vmem:[%s0 + $0x68] sm:$0xff]
  %v40 = vld [vmem:[%s0 + $0x70] sm:$0xff]
  %v41 = vld [vmem:[%s0 + $0x78] sm:$0xff]
  %v42 = vld [vmem:[%s0 + $0x80] sm:$0xff]
  %v43 = vld [vmem:[%s0 + $0x88] sm:$0xff]
  %v44 = vld [vmem:[%s0 + $0x90] sm:$0xff]
  %v45 = vld [vmem:[%s0 + $0x98] sm:$0xff]
  %v46 = vld [vmem:[%s0 + $0xa0] sm:$0xff]
  %v47 = vld [vmem:[%s0 + $0xa8] sm:$0xff]
  %v48 = vld [vmem:[%s0 + $0xb0] sm:$0xff]
  %v49 = vld [vmem:[%s0 + $0xb8] sm:$0xff]
  %v50 = vld [vmem:[%s0 + $0xc0] sm:$0xff]
  %v51 = vld [vmem:[%s0 + $0xc8] sm:$0xff]
  %v52 = vld [vmem:[%s0 + $0xd0] sm:$0xff]
  %v53 = vld [vmem:[%s0 + $0xd8] sm:$0xff]
  %v54 = vld [vmem:[%s0 + $0xe0] sm:$0xff]
  %v55 = vld [vmem:[%s0 + $0xe8] sm:$0xff]
  %v56 = vld [vmem:[%s0 + $0xf0] sm:$0xff]
  %v57 = vld [vmem:[%s0 + $0xf8] sm:$0xff]
  %v58 = vpack.c.bf16 %v27, %v26
  %v59 = vpack.c.bf16 %v29, %v28
  %v60 = vpack.c.bf16 %v31, %v30
  %v61 = vpack.c.bf16 %v33, %v32
  %v62 = vpack.c.bf16 %v35, %v34
  %v63 = vpack.c.bf16 %v37, %v36
  %v64 = vpack.c.bf16 %v39, %v38
  %v65 = vpack.c.bf16 %v41, %v40
  %v66 = vpack.c.bf16 %v43, %v42
  %v67 = vpack.c.bf16 %v45, %v44
  %v68 = vpack.c.bf16 %v47, %v46
  %v69 = vpack.c.bf16 %v49, %v48
  %v70 = vpack.c.bf16 %v51, %v50
  %v71 = vpack.c.bf16 %v53, %v52
  %v72 = vpack.c.bf16 %v55, %v54
  %v73 = vpack.c.bf16 %v57, %v56
  %v74 = vld [vmem:[%s1] sm:$0xff]
  %v75 = vld [vmem:[%s1 + $0x8] sm:$0xff]
  %v76 = vld [vmem:[%s1 + $0x10] sm:$0xff]
  %v77 = vld [vmem:[%s1 + $0x18] sm:$0xff]
  %v78 = vld [vmem:[%s1 + $0x20] sm:$0xff]
  %v79 = vld [vmem:[%s1 + $0x28] sm:$0xff]
  %v80 = vld [vmem:[%s1 + $0x30] sm:$0xff]
  %v81 = vld [vmem:[%s1 + $0x38] sm:$0xff]
  %v82 = vld [vmem:[%s1 + $0x40] sm:$0xff]
  %v83 = vld [vmem:[%s1 + $0x48] sm:$0xff]
  %v84 = vld [vmem:[%s1 + $0x50] sm:$0xff]
  %v85 = vld [vmem:[%s1 + $0x58] sm:$0xff]
  %v86 = vld [vmem:[%s1 + $0x60] sm:$0xff]
  %v87 = vld [vmem:[%s1 + $0x68] sm:$0xff]
  %v88 = vld [vmem:[%s1 + $0x70] sm:$0xff]
  %v89 = vld [vmem:[%s1 + $0x78] sm:$0xff]
  %v90 = vld [vmem:[%s1 + $0x80] sm:$0xff]
  %v91 = vld [vmem:[%s1 + $0x88] sm:$0xff]
  %v92 = vld [vmem:[%s1 + $0x90] sm:$0xff]
  %v93 = vld [vmem:[%s1 + $0x98] sm:$0xff]
  %v94 = vld [vmem:[%s1 + $0xa0] sm:$0xff]
  %v95 = vld [vmem:[%s1 + $0xa8] sm:$0xff]
  %v96 = vld [vmem:[%s1 + $0xb0] sm:$0xff]
  %v97 = vld [vmem:[%s1 + $0xb8] sm:$0xff]
  %v98 = vld [vmem:[%s1 + $0xc0] sm:$0xff]
  %v99 = vld [vmem:[%s1 + $0xc8] sm:$0xff]
  %v100 = vld [vmem:[%s1 + $0xd0] sm:$0xff]
  %v101 = vld [vmem:[%s1 + $0xd8] sm:$0xff]
  %v102 = vld [vmem:[%s1 + $0xe0] sm:$0xff]
  %v103 = vld [vmem:[%s1 + $0xe8] sm:$0xff]
  %v104 = vld [vmem:[%s1 + $0xf0] sm:$0xff]
  %v105 = vld [vmem:[%s1 + $0xf8] sm:$0xff]
  %v106 = vld [vmem:[%s2] sm:$0xf]
  %v108 = vperm.slane %v106, 0
  %v109 = vperm.slane %v106, 1
  %v110 = vperm.slane %v106, 2
  %v111 = vperm.slane %v106, 3
  %v148 = vunpack.c.l.b16 %v74
  %v149 = vunpack.c.h.b16 %v74
  %v150 = vunpack.c.l.b16 %v75
  %v151 = vunpack.c.h.b16 %v75
  %v152 = vunpack.c.l.b16 %v76
  %v153 = vunpack.c.h.b16 %v76
  %v154 = vunpack.c.l.b16 %v77
  %v155 = vunpack.c.h.b16 %v77
  %v156 = vunpack.c.l.b16 %v78
  %v157 = vunpack.c.h.b16 %v78
  %v158 = vunpack.c.l.b16 %v79
  %v159 = vunpack.c.h.b16 %v79
  %v160 = vunpack.c.l.b16 %v80
  %v161 = vunpack.c.h.b16 %v80
  %v162 = vunpack.c.l.b16 %v81
  %v163 = vunpack.c.h.b16 %v81
  %v164 = vunpack.c.l.b16 %v82
  %v165 = vunpack.c.h.b16 %v82
  %v166 = vunpack.c.l.b16 %v83
  %v167 = vunpack.c.h.b16 %v83
  %v168 = vunpack.c.l.b16 %v84
  %v169 = vunpack.c.h.b16 %v84
  %v170 = vunpack.c.l.b16 %v85
  %v171 = vunpack.c.h.b16 %v85
  %v172 = vunpack.c.l.b16 %v86
  %v173 = vunpack.c.h.b16 %v86
  %v174 = vunpack.c.l.b16 %v87
  %v175 = vunpack.c.h.b16 %v87
  %v176 = vunpack.c.l.b16 %v88
  %v177 = vunpack.c.h.b16 %v88
  %v178 = vunpack.c.l.b16 %v89
  %v179 = vunpack.c.h.b16 %v89
  %v180 = vunpack.c.l.b16 %v90
  %v181 = vunpack.c.h.b16 %v90
  %v182 = vunpack.c.l.b16 %v91
  %v183 = vunpack.c.h.b16 %v91
  %v184 = vunpack.c.l.b16 %v92
  %v185 = vunpack.c.h.b16 %v92
  %v186 = vunpack.c.l.b16 %v93
  %v187 = vunpack.c.h.b16 %v93
  %v188 = vunpack.c.l.b16 %v94
  %v189 = vunpack.c.h.b16 %v94
  %v190 = vunpack.c.l.b16 %v95
  %v191 = vunpack.c.h.b16 %v95
  %v192 = vunpack.c.l.b16 %v96
  %v193 = vunpack.c.h.b16 %v96
  %v194 = vunpack.c.l.b16 %v97
  %v195 = vunpack.c.h.b16 %v97
  %v196 = vunpack.c.l.b16 %v98
  %v197 = vunpack.c.h.b16 %v98
  %v198 = vunpack.c.l.b16 %v99
  %v199 = vunpack.c.h.b16 %v99
  %v200 = vunpack.c.l.b16 %v100
  %v201 = vunpack.c.h.b16 %v100
  %v202 = vunpack.c.l.b16 %v101
  %v203 = vunpack.c.h.b16 %v101
  %v204 = vunpack.c.l.b16 %v102
  %v205 = vunpack.c.h.b16 %v102
  %v206 = vunpack.c.l.b16 %v103
  %v207 = vunpack.c.h.b16 %v103
  %v208 = vunpack.c.l.b16 %v104
  %v209 = vunpack.c.h.b16 %v104
  %v210 = vunpack.c.l.b16 %v105
  %v211 = vunpack.c.h.b16 %v105
  %v212 = vpack.c.b16 %v152, %v148
  %v213 = vpack.c.b16 %v153, %v149
  %v214 = vpack.c.b16 %v154, %v150
  %v215 = vpack.c.b16 %v155, %v151
  %v216 = vpack.c.b16 %v160, %v156
  %v217 = vpack.c.b16 %v161, %v157
  %v218 = vpack.c.b16 %v162, %v158
  %v219 = vpack.c.b16 %v163, %v159
  %v220 = vpack.c.b16 %v168, %v164
  %v221 = vpack.c.b16 %v169, %v165
  %v222 = vpack.c.b16 %v170, %v166
  %v223 = vpack.c.b16 %v171, %v167
  %v224 = vpack.c.b16 %v176, %v172
  %v225 = vpack.c.b16 %v177, %v173
  %v226 = vpack.c.b16 %v178, %v174
  %v227 = vpack.c.b16 %v179, %v175
  %v228 = vpack.c.b16 %v184, %v180
  %v229 = vpack.c.b16 %v185, %v181
  %v230 = vpack.c.b16 %v186, %v182
  %v231 = vpack.c.b16 %v187, %v183
  %v232 = vpack.c.b16 %v192, %v188
  %v233 = vpack.c.b16 %v193, %v189
  %v234 = vpack.c.b16 %v194, %v190
  %v235 = vpack.c.b16 %v195, %v191
  %v236 = vpack.c.b16 %v200, %v196
  %v237 = vpack.c.b16 %v201, %v197
  %v238 = vpack.c.b16 %v202, %v198
  %v239 = vpack.c.b16 %v203, %v199
  %v240 = vpack.c.b16 %v208, %v204
  %v241 = vpack.c.b16 %v209, %v205
  %v242 = vpack.c.b16 %v210, %v206
  %v243 = vpack.c.b16 %v211, %v207
  %276 = vmatpush.bf16.msra.mxu0 %v240
  %277 = vmatpush.bf16.msra.mxu0 %v236
  %278 = vmatpush.bf16.msra.mxu0 %v232
  %279 = vmatpush.bf16.msra.mxu0 %v228
  %280 = vmatpush.bf16.msra.mxu0 %v224
  %281 = vmatpush.bf16.msra.mxu0 %v220
  %282 = vmatpush.bf16.msra.mxu0 %v216
  %283 = vmatpush.bf16.msra.mxu0 %v212
  %284 = vmatmul.bf16.gmra.mxu0 %v58
  %v285 = vpop.f32.mrf.mxu0
  %v286 = vadd.f32 %v108, %v285
  %v287 = vpop.f32.mrf.mxu0
  %v288 = vadd.f32 %v108, %v287
  %289 = vmatmul.bf16.gmra.mxu0 %v59
  %v290 = vpop.f32.mrf.mxu0
  %v291 = vadd.f32 %v108, %v290
  %v292 = vpop.f32.mrf.mxu0
  %v293 = vadd.f32 %v108, %v292
  %294 = vmatmul.bf16.gmra.mxu0 %v60
  %v295 = vpop.f32.mrf.mxu0
  %v296 = vadd.f32 %v108, %v295
  %v297 = vpop.f32.mrf.mxu0
  %v298 = vadd.f32 %v108, %v297
  %299 = vmatmul.bf16.gmra.mxu0 %v61
  %v300 = vpop.f32.mrf.mxu0
  %v301 = vadd.f32 %v108, %v300
  %v302 = vpop.f32.mrf.mxu0
  %v303 = vadd.f32 %v108, %v302
  %304 = vmatmul.bf16.gmra.mxu0 %v62
  %v305 = vpop.f32.mrf.mxu0
  %v306 = vadd.f32 %v108, %v305
  %v307 = vpop.f32.mrf.mxu0
  %v308 = vadd.f32 %v108, %v307
  %309 = vmatmul.bf16.gmra.mxu0 %v63
  %v310 = vpop.f32.mrf.mxu0
  %v311 = vadd.f32 %v108, %v310
  %v312 = vpop.f32.mrf.mxu0
  %v313 = vadd.f32 %v108, %v312
  %314 = vmatmul.bf16.gmra.mxu0 %v64
  %v315 = vpop.f32.mrf.mxu0
  %v316 = vadd.f32 %v108, %v315
  %v317 = vpop.f32.mrf.mxu0
  %v318 = vadd.f32 %v108, %v317
  %319 = vmatmul.bf16.gmra.mxu0 %v65
  %v320 = vpop.f32.mrf.mxu0
  %v321 = vadd.f32 %v108, %v320
  %v322 = vpop.f32.mrf.mxu0
  %v323 = vadd.f32 %v108, %v322
  %324 = vmatmul.bf16.gmra.mxu0 %v66
  %v325 = vpop.f32.mrf.mxu0
  %v326 = vadd.f32 %v108, %v325
  %v327 = vpop.f32.mrf.mxu0
  %v328 = vadd.f32 %v108, %v327
  %329 = vmatmul.bf16.gmra.mxu0 %v67
  %v330 = vpop.f32.mrf.mxu0
  %v331 = vadd.f32 %v108, %v330
  %v332 = vpop.f32.mrf.mxu0
  %v333 = vadd.f32 %v108, %v332
  %334 = vmatmul.bf16.gmra.mxu0 %v68
  %v335 = vpop.f32.mrf.mxu0
  %v336 = vadd.f32 %v108, %v335
  %v337 = vpop.f32.mrf.mxu0
  %v338 = vadd.f32 %v108, %v337
  %339 = vmatmul.bf16.gmra.mxu0 %v69
  %v340 = vpop.f32.mrf.mxu0
  %v341 = vadd.f32 %v108, %v340
  %v342 = vpop.f32.mrf.mxu0
  %v343 = vadd.f32 %v108, %v342
  %344 = vmatmul.bf16.gmra.mxu0 %v70
  %v345 = vpop.f32.mrf.mxu0
  %v346 = vadd.f32 %v108, %v345
  %v347 = vpop.f32.mrf.mxu0
  %v348 = vadd.f32 %v108, %v347
  %349 = vmatmul.bf16.gmra.mxu0 %v71
  %v350 = vpop.f32.mrf.mxu0
  %v351 = vadd.f32 %v108, %v350
  %v352 = vpop.f32.mrf.mxu0
  %v353 = vadd.f32 %v108, %v352
  %354 = vmatmul.bf16.gmra.mxu0 %v72
  %v355 = vpop.f32.mrf.mxu0
  %v356 = vadd.f32 %v108, %v355
  %v357 = vpop.f32.mrf.mxu0
  %v358 = vadd.f32 %v108, %v357
  %359 = vmatmul.bf16.gmra.mxu0 %v73
  %v360 = vpop.f32.mrf.mxu0
  %v361 = vadd.f32 %v108, %v360
  %v362 = vpop.f32.mrf.mxu0
  %v363 = vadd.f32 %v108, %v362
  %364 = vdwg.mxu0
  %365 = vmatpush.bf16.msra.mxu0 %v241
  %366 = vmatpush.bf16.msra.mxu0 %v237
  %367 = vmatpush.bf16.msra.mxu0 %v233
  %368 = vmatpush.bf16.msra.mxu0 %v229
  %369 = vmatpush.bf16.msra.mxu0 %v225
  %370 = vmatpush.bf16.msra.mxu0 %v221
  %371 = vmatpush.bf16.msra.mxu0 %v217
  %372 = vmatpush.bf16.msra.mxu0 %v213
  %373 = vmatmul.bf16.gmra.mxu0 %v58
  %v374 = vpop.f32.mrf.mxu0
  %v375 = vadd.f32 %v109, %v374
  %v376 = vpop.f32.mrf.mxu0
  %v377 = vadd.f32 %v109, %v376
  %378 = vmatmul.bf16.gmra.mxu0 %v59
  %v379 = vpop.f32.mrf.mxu0
  %v380 = vadd.f32 %v109, %v379
  %v381 = vpop.f32.mrf.mxu0
  %v382 = vadd.f32 %v109, %v381
  %383 = vmatmul.bf16.gmra.mxu0 %v60
  %v384 = vpop.f32.mrf.mxu0
  %v385 = vadd.f32 %v109, %v384
  %v386 = vpop.f32.mrf.mxu0
  %v387 = vadd.f32 %v109, %v386
  %388 = vmatmul.bf16.gmra.mxu0 %v61
  %v389 = vpop.f32.mrf.mxu0
  %v390 = vadd.f32 %v109, %v389
  %v391 = vpop.f32.mrf.mxu0
  %v392 = vadd.f32 %v109, %v391
  %393 = vmatmul.bf16.gmra.mxu0 %v62
  %v394 = vpop.f32.mrf.mxu0
  %v395 = vadd.f32 %v109, %v394
  %v396 = vpop.f32.mrf.mxu0
  %v397 = vadd.f32 %v109, %v396
  %398 = vmatmul.bf16.gmra.mxu0 %v63
  %v399 = vpop.f32.mrf.mxu0
  %v400 = vadd.f32 %v109, %v399
  %v401 = vpop.f32.mrf.mxu0
  %v402 = vadd.f32 %v109, %v401
  %403 = vmatmul.bf16.gmra.mxu0 %v64
  %v404 = vpop.f32.mrf.mxu0
  %v405 = vadd.f32 %v109, %v404
  %v406 = vpop.f32.mrf.mxu0
  %v407 = vadd.f32 %v109, %v406
  %408 = vmatmul.bf16.gmra.mxu0 %v65
  %v409 = vpop.f32.mrf.mxu0
  %v410 = vadd.f32 %v109, %v409
  %v411 = vpop.f32.mrf.mxu0
  %v412 = vadd.f32 %v109, %v411
  %413 = vmatmul.bf16.gmra.mxu0 %v66
  %v414 = vpop.f32.mrf.mxu0
  %v415 = vadd.f32 %v109, %v414
  %v416 = vpop.f32.mrf.mxu0
  %v417 = vadd.f32 %v109, %v416
  %418 = vmatmul.bf16.gmra.mxu0 %v67
  %v419 = vpop.f32.mrf.mxu0
  %v420 = vadd.f32 %v109, %v419
  %v421 = vpop.f32.mrf.mxu0
  %v422 = vadd.f32 %v109, %v421
  %423 = vmatmul.bf16.gmra.mxu0 %v68
  %v424 = vpop.f32.mrf.mxu0
  %v425 = vadd.f32 %v109, %v424
  %v426 = vpop.f32.mrf.mxu0
  %v427 = vadd.f32 %v109, %v426
  %428 = vmatmul.bf16.gmra.mxu0 %v69
  %v429 = vpop.f32.mrf.mxu0
  %v430 = vadd.f32 %v109, %v429
  %v431 = vpop.f32.mrf.mxu0
  %v432 = vadd.f32 %v109, %v431
  %433 = vmatmul.bf16.gmra.mxu0 %v70
  %v434 = vpop.f32.mrf.mxu0
  %v435 = vadd.f32 %v109, %v434
  %v436 = vpop.f32.mrf.mxu0
  %v437 = vadd.f32 %v109, %v436
  %438 = vmatmul.bf16.gmra.mxu0 %v71
  %v439 = vpop.f32.mrf.mxu0
  %v440 = vadd.f32 %v109, %v439
  %v441 = vpop.f32.mrf.mxu0
  %v442 = vadd.f32 %v109, %v441
  %443 = vmatmul.bf16.gmra.mxu0 %v72
  %v444 = vpop.f32.mrf.mxu0
  %v445 = vadd.f32 %v109, %v444
  %v446 = vpop.f32.mrf.mxu0
  %v447 = vadd.f32 %v109, %v446
  %448 = vmatmul.bf16.gmra.mxu0 %v73
  %v449 = vpop.f32.mrf.mxu0
  %v450 = vadd.f32 %v109, %v449
  %v451 = vpop.f32.mrf.mxu0
  %v452 = vadd.f32 %v109, %v451
  %453 = vdwg.mxu0
  %454 = vmatpush.bf16.msra.mxu0 %v242
  %455 = vmatpush.bf16.msra.mxu0 %v238
  %456 = vmatpush.bf16.msra.mxu0 %v234
  %457 = vmatpush.bf16.msra.mxu0 %v230
  %458 = vmatpush.bf16.msra.mxu0 %v226
  %459 = vmatpush.bf16.msra.mxu0 %v222
  %460 = vmatpush.bf16.msra.mxu0 %v218
  %461 = vmatpush.bf16.msra.mxu0 %v214
  %462 = vmatmul.bf16.gmra.mxu0 %v58
  %v463 = vpop.f32.mrf.mxu0
  %v464 = vadd.f32 %v110, %v463
  %v465 = vpop.f32.mrf.mxu0
  %v466 = vadd.f32 %v110, %v465
  %467 = vmatmul.bf16.gmra.mxu0 %v59
  %v468 = vpop.f32.mrf.mxu0
  %v469 = vadd.f32 %v110, %v468
  %v470 = vpop.f32.mrf.mxu0
  %v471 = vadd.f32 %v110, %v470
  %472 = vmatmul.bf16.gmra.mxu0 %v60
  %v473 = vpop.f32.mrf.mxu0
  %v474 = vadd.f32 %v110, %v473
  %v475 = vpop.f32.mrf.mxu0
  %v476 = vadd.f32 %v110, %v475
  %477 = vmatmul.bf16.gmra.mxu0 %v61
  %v478 = vpop.f32.mrf.mxu0
  %v479 = vadd.f32 %v110, %v478
  %v480 = vpop.f32.mrf.mxu0
  %v481 = vadd.f32 %v110, %v480
  %482 = vmatmul.bf16.gmra.mxu0 %v62
  %v483 = vpop.f32.mrf.mxu0
  %v484 = vadd.f32 %v110, %v483
  %v485 = vpop.f32.mrf.mxu0
  %v486 = vadd.f32 %v110, %v485
  %487 = vmatmul.bf16.gmra.mxu0 %v63
  %v488 = vpop.f32.mrf.mxu0
  %v489 = vadd.f32 %v110, %v488
  %v490 = vpop.f32.mrf.mxu0
  %v491 = vadd.f32 %v110, %v490
  %492 = vmatmul.bf16.gmra.mxu0 %v64
  %v493 = vpop.f32.mrf.mxu0
  %v494 = vadd.f32 %v110, %v493
  %v495 = vpop.f32.mrf.mxu0
  %v496 = vadd.f32 %v110, %v495
  %497 = vmatmul.bf16.gmra.mxu0 %v65
  %v498 = vpop.f32.mrf.mxu0
  %v499 = vadd.f32 %v110, %v498
  %v500 = vpop.f32.mrf.mxu0
  %v501 = vadd.f32 %v110, %v500
  %502 = vmatmul.bf16.gmra.mxu0 %v66
  %v503 = vpop.f32.mrf.mxu0
  %v504 = vadd.f32 %v110, %v503
  %v505 = vpop.f32.mrf.mxu0
  %v506 = vadd.f32 %v110, %v505
  %507 = vmatmul.bf16.gmra.mxu0 %v67
  %v508 = vpop.f32.mrf.mxu0
  %v509 = vadd.f32 %v110, %v508
  %v510 = vpop.f32.mrf.mxu0
  %v511 = vadd.f32 %v110, %v510
  %512 = vmatmul.bf16.gmra.mxu0 %v68
  %v513 = vpop.f32.mrf.mxu0
  %v514 = vadd.f32 %v110, %v513
  %v515 = vpop.f32.mrf.mxu0
  %v516 = vadd.f32 %v110, %v515
  %517 = vmatmul.bf16.gmra.mxu0 %v69
  %v518 = vpop.f32.mrf.mxu0
  %v519 = vadd.f32 %v110, %v518
  %v520 = vpop.f32.mrf.mxu0
  %v521 = vadd.f32 %v110, %v520
  %522 = vmatmul.bf16.gmra.mxu0 %v70
  %v523 = vpop.f32.mrf.mxu0
  %v524 = vadd.f32 %v110, %v523
  %v525 = vpop.f32.mrf.mxu0
  %v526 = vadd.f32 %v110, %v525
  %527 = vmatmul.bf16.gmra.mxu0 %v71
  %v528 = vpop.f32.mrf.mxu0
  %v529 = vadd.f32 %v110, %v528
  %v530 = vpop.f32.mrf.mxu0
  %v531 = vadd.f32 %v110, %v530
  %532 = vmatmul.bf16.gmra.mxu0 %v72
  %v533 = vpop.f32.mrf.mxu0
  %v534 = vadd.f32 %v110, %v533
  %v535 = vpop.f32.mrf.mxu0
  %v536 = vadd.f32 %v110, %v535
  %537 = vmatmul.bf16.gmra.mxu0 %v73
  %v538 = vpop.f32.mrf.mxu0
  %v539 = vadd.f32 %v110, %v538
  %v540 = vpop.f32.mrf.mxu0
  %v541 = vadd.f32 %v110, %v540
  %542 = vdwg.mxu0
  %543 = vmatpush.bf16.msra.mxu0 %v243
  %544 = vmatpush.bf16.msra.mxu0 %v239
  %545 = vmatpush.bf16.msra.mxu0 %v235
  %546 = vmatpush.bf16.msra.mxu0 %v231
  %547 = vmatpush.bf16.msra.mxu0 %v227
  %548 = vmatpush.bf16.msra.mxu0 %v223
  %549 = vmatpush.bf16.msra.mxu0 %v219
  %550 = vmatpush.bf16.msra.mxu0 %v215
  %551 = vmatmul.bf16.gmra.mxu0 %v58
  %v552 = vpop.f32.mrf.mxu0
  %v553 = vadd.f32 %v111, %v552
  %v554 = vpop.f32.mrf.mxu0
  %v555 = vadd.f32 %v111, %v554
  %556 = vmatmul.bf16.gmra.mxu0 %v59
  %v557 = vpop.f32.mrf.mxu0
  %v558 = vadd.f32 %v111, %v557
  %v559 = vpop.f32.mrf.mxu0
  %v560 = vadd.f32 %v111, %v559
  %561 = vmatmul.bf16.gmra.mxu0 %v60
  %v562 = vpop.f32.mrf.mxu0
  %v563 = vadd.f32 %v111, %v562
  %v564 = vpop.f32.mrf.mxu0
  %v565 = vadd.f32 %v111, %v564
  %566 = vmatmul.bf16.gmra.mxu0 %v61
  %v567 = vpop.f32.mrf.mxu0
  %v568 = vadd.f32 %v111, %v567
  %v569 = vpop.f32.mrf.mxu0
  %v570 = vadd.f32 %v111, %v569
  %571 = vmatmul.bf16.gmra.mxu0 %v62
  %v572 = vpop.f32.mrf.mxu0
  %v573 = vadd.f32 %v111, %v572
  %v574 = vpop.f32.mrf.mxu0
  %v575 = vadd.f32 %v111, %v574
  %576 = vmatmul.bf16.gmra.mxu0 %v63
  %v577 = vpop.f32.mrf.mxu0
  %v578 = vadd.f32 %v111, %v577
  %v579 = vpop.f32.mrf.mxu0
  %v580 = vadd.f32 %v111, %v579
  %581 = vmatmul.bf16.gmra.mxu0 %v64
  %v582 = vpop.f32.mrf.mxu0
  %v583 = vadd.f32 %v111, %v582
  %v584 = vpop.f32.mrf.mxu0
  %v585 = vadd.f32 %v111, %v584
  %586 = vmatmul.bf16.gmra.mxu0 %v65
  %v587 = vpop.f32.mrf.mxu0
  %v588 = vadd.f32 %v111, %v587
  %v589 = vpop.f32.mrf.mxu0
  %v590 = vadd.f32 %v111, %v589
  %591 = vmatmul.bf16.gmra.mxu0 %v66
  %v592 = vpop.f32.mrf.mxu0
  %v593 = vadd.f32 %v111, %v592
  %v594 = vpop.f32.mrf.mxu0
  %v595 = vadd.f32 %v111, %v594
  %596 = vmatmul.bf16.gmra.mxu0 %v67
  %v597 = vpop.f32.mrf.mxu0
  %v598 = vadd.f32 %v111, %v597
  %v599 = vpop.f32.mrf.mxu0
  %v600 = vadd.f32 %v111, %v599
  %601 = vmatmul.bf16.gmra.mxu0 %v68
  %v602 = vpop.f32.mrf.mxu0
  %v603 = vadd.f32 %v111, %v602
  %v604 = vpop.f32.mrf.mxu0
  %v605 = vadd.f32 %v111, %v604
  %606 = vmatmul.bf16.gmra.mxu0 %v69
  %v607 = vpop.f32.mrf.mxu0
  %v608 = vadd.f32 %v111, %v607
  %v609 = vpop.f32.mrf.mxu0
  %v610 = vadd.f32 %v111, %v609
  %611 = vmatmul.bf16.gmra.mxu0 %v70
  %v612 = vpop.f32.mrf.mxu0
  %v613 = vadd.f32 %v111, %v612
  %v614 = vpop.f32.mrf.mxu0
  %v615 = vadd.f32 %v111, %v614
  %616 = vmatmul.bf16.gmra.mxu0 %v71
  %v617 = vpop.f32.mrf.mxu0
  %v618 = vadd.f32 %v111, %v617
  %v619 = vpop.f32.mrf.mxu0
  %v620 = vadd.f32 %v111, %v619
  %621 = vmatmul.bf16.gmra.mxu0 %v72
  %v622 = vpop.f32.mrf.mxu0
  %v623 = vadd.f32 %v111, %v622
  %v624 = vpop.f32.mrf.mxu0
  %v625 = vadd.f32 %v111, %v624
  %626 = vmatmul.bf16.gmra.mxu0 %v73
  %v627 = vpop.f32.mrf.mxu0
  %v628 = vadd.f32 %v111, %v627
  %v629 = vpop.f32.mrf.mxu0
  %v630 = vadd.f32 %v111, %v629
  %631 = vdwg.mxu0
  %632 = vst [vmem:[%s6] sm:$0xff] %v286
  %633 = vst [vmem:[%s6 + $0x8] sm:$0xff] %v375
  %634 = vst [vmem:[%s6 + $0x10] sm:$0xff] %v288
  %635 = vst [vmem:[%s6 + $0x18] sm:$0xff] %v377
  %636 = vst [vmem:[%s6 + $0x20] sm:$0xff] %v291
  %637 = vst [vmem:[%s6 + $0x28] sm:$0xff] %v380
  %638 = vst [vmem:[%s6 + $0x30] sm:$0xff] %v293
  %639 = vst [vmem:[%s6 + $0x38] sm:$0xff] %v382
  %640 = vst [vmem:[%s6 + $0x40] sm:$0xff] %v296
  %641 = vst [vmem:[%s6 + $0x48] sm:$0xff] %v385
  %642 = vst [vmem:[%s6 + $0x50] sm:$0xff] %v298
  %643 = vst [vmem:[%s6 + $0x58] sm:$0xff] %v387
  %644 = vst [vmem:[%s6 + $0x60] sm:$0xff] %v301
  %645 = vst [vmem:[%s6 + $0x68] sm:$0xff] %v390
  %646 = vst [vmem:[%s6 + $0x70] sm:$0xff] %v303
  %647 = vst [vmem:[%s6 + $0x78] sm:$0xff] %v392
  %648 = vst [vmem:[%s6 + $0x80] sm:$0xff] %v306
  %649 = vst [vmem:[%s6 + $0x88] sm:$0xff] %v395
  %650 = vst [vmem:[%s6 + $0x90] sm:$0xff] %v308
  %651 = vst [vmem:[%s6 + $0x98] sm:$0xff] %v397
  %652 = vst [vmem:[%s6 + $0xa0] sm:$0xff] %v311
  %653 = vst [vmem:[%s6 + $0xa8] sm:$0xff] %v400
  %654 = vst [vmem:[%s6 + $0xb0] sm:$0xff] %v313
  %655 = vst [vmem:[%s6 + $0xb8] sm:$0xff] %v402
  %656 = vst [vmem:[%s6 + $0xc0] sm:$0xff] %v316
  %657 = vst [vmem:[%s6 + $0xc8] sm:$0xff] %v405
  %658 = vst [vmem:[%s6 + $0xd0] sm:$0xff] %v318
  %659 = vst [vmem:[%s6 + $0xd8] sm:$0xff] %v407
  %660 = vst [vmem:[%s6 + $0xe0] sm:$0xff] %v321
  %661 = vst [vmem:[%s6 + $0xe8] sm:$0xff] %v410
  %662 = vst [vmem:[%s6 + $0xf0] sm:$0xff] %v323
  %663 = vst [vmem:[%s6 + $0xf8] sm:$0xff] %v412
  %664 = vst [vmem:[%s6 + $0x100] sm:$0xff] %v326
  %665 = vst [vmem:[%s6 + $0x108] sm:$0xff] %v415
  %666 = vst [vmem:[%s6 + $0x110] sm:$0xff] %v328
  %667 = vst [vmem:[%s6 + $0x118] sm:$0xff] %v417
  %668 = vst [vmem:[%s6 + $0x120] sm:$0xff] %v331
  %669 = vst [vmem:[%s6 + $0x128] sm:$0xff] %v420
  %670 = vst [vmem:[%s6 + $0x130] sm:$0xff] %v333
  %671 = vst [vmem:[%s6 + $0x138] sm:$0xff] %v422
  %672 = vst [vmem:[%s6 + $0x140] sm:$0xff] %v336
  %673 = vst [vmem:[%s6 + $0x148] sm:$0xff] %v425
  %674 = vst [vmem:[%s6 + $0x150] sm:$0xff] %v338
  %675 = vst [vmem:[%s6 + $0x158] sm:$0xff] %v427
  %676 = vst [vmem:[%s6 + $0x160] sm:$0xff] %v341
  %677 = vst [vmem:[%s6 + $0x168] sm:$0xff] %v430
  %678 = vst [vmem:[%s6 + $0x170] sm:$0xff] %v343
  %679 = vst [vmem:[%s6 + $0x178] sm:$0xff] %v432
  %680 = vst [vmem:[%s6 + $0x180] sm:$0xff] %v346
  %681 = vst [vmem:[%s6 + $0x188] sm:$0xff] %v435
  %682 = vst [vmem:[%s6 + $0x190] sm:$0xff] %v348
  %683 = vst [vmem:[%s6 + $0x198] sm:$0xff] %v437
  %684 = vst [vmem:[%s6 + $0x1a0] sm:$0xff] %v351
  %685 = vst [vmem:[%s6 + $0x1a8] sm:$0xff] %v440
  %686 = vst [vmem:[%s6 + $0x1b0] sm:$0xff] %v353
  %687 = vst [vmem:[%s6 + $0x1b8] sm:$0xff] %v442
  %688 = vst [vmem:[%s6 + $0x1c0] sm:$0xff] %v356
  %689 = vst [vmem:[%s6 + $0x1c8] sm:$0xff] %v445
  %690 = vst [vmem:[%s6 + $0x1d0] sm:$0xff] %v358
  %691 = vst [vmem:[%s6 + $0x1d8] sm:$0xff] %v447
  %692 = vst [vmem:[%s6 + $0x1e0] sm:$0xff] %v361
  %693 = vst [vmem:[%s6 + $0x1e8] sm:$0xff] %v450
  %694 = vst [vmem:[%s6 + $0x1f0] sm:$0xff] %v363
  %695 = vst [vmem:[%s6 + $0x1f8] sm:$0xff] %v452
  %696 = vxpose.xlu0.b32.start [1/16] %v464, 128
  %697 = vxpose.xlu0.b32.cont [2/16] %v466, 128
  %698 = vxpose.xlu0.b32.cont [3/16] %v469, 128
  %699 = vxpose.xlu0.b32.cont [4/16] %v471, 128
  %700 = vxpose.xlu0.b32.cont [5/16] %v474, 128
  %701 = vxpose.xlu0.b32.cont [6/16] %v476, 128
  %702 = vxpose.xlu0.b32.cont [7/16] %v479, 128
  %703 = vxpose.xlu0.b32.cont [8/16] %v481, 128
  %704 = vxpose.xlu0.b32.cont [9/16] %v484, 128
  %705 = vxpose.xlu0.b32.cont [10/16] %v486, 128
  %706 = vxpose.xlu0.b32.cont [11/16] %v489, 128
  %707 = vxpose.xlu0.b32.cont [12/16] %v491, 128
  %708 = vxpose.xlu0.b32.cont [13/16] %v494, 128
  %709 = vxpose.xlu0.b32.cont [14/16] %v496, 128
  %710 = vxpose.xlu0.b32.cont [15/16] %v499, 128
  %711 = vxpose.xlu0.b32.end [16/16] %v501, 128
  %v712 = vpop.trf.xlu0
  %v713 = vpop.trf.xlu0
  %v714 = vpop.trf.xlu0
  %v715 = vpop.trf.xlu0
  %v716 = vpop.trf.xlu0
  %v717 = vpop.trf.xlu0
  %v718 = vpop.trf.xlu0
  %v719 = vpop.trf.xlu0
  %v720 = vpop.trf.xlu0
  %v721 = vpop.trf.xlu0
  %v722 = vpop.trf.xlu0
  %v723 = vpop.trf.xlu0
  %v724 = vpop.trf.xlu0
  %v725 = vpop.trf.xlu0
  %v726 = vpop.trf.xlu0
  %v727 = vpop.trf.xlu0
  %728 = vxpose.xlu0.b32.start [1/16] %v504, 128
  %729 = vxpose.xlu0.b32.cont [2/16] %v506, 128
  %730 = vxpose.xlu0.b32.cont [3/16] %v509, 128
  %731 = vxpose.xlu0.b32.cont [4/16] %v511, 128
  %732 = vxpose.xlu0.b32.cont [5/16] %v514, 128
  %733 = vxpose.xlu0.b32.cont [6/16] %v516, 128
  %734 = vxpose.xlu0.b32.cont [7/16] %v519, 128
  %735 = vxpose.xlu0.b32.cont [8/16] %v521, 128
  %736 = vxpose.xlu0.b32.cont [9/16] %v524, 128
  %737 = vxpose.xlu0.b32.cont [10/16] %v526, 128
  %738 = vxpose.xlu0.b32.cont [11/16] %v529, 128
  %739 = vxpose.xlu0.b32.cont [12/16] %v531, 128
  %740 = vxpose.xlu0.b32.cont [13/16] %v534, 128
  %741 = vxpose.xlu0.b32.cont [14/16] %v536, 128
  %742 = vxpose.xlu0.b32.cont [15/16] %v539, 128
  %743 = vxpose.xlu0.b32.end [16/16] %v541, 128
  %v744 = vpop.trf.xlu0
  %v745 = vpop.trf.xlu0
  %v746 = vpop.trf.xlu0
  %v747 = vpop.trf.xlu0
  %v748 = vpop.trf.xlu0
  %v749 = vpop.trf.xlu0
  %v750 = vpop.trf.xlu0
  %v751 = vpop.trf.xlu0
  %v752 = vpop.trf.xlu0
  %v753 = vpop.trf.xlu0
  %v754 = vpop.trf.xlu0
  %v755 = vpop.trf.xlu0
  %v756 = vpop.trf.xlu0
  %v757 = vpop.trf.xlu0
  %v758 = vpop.trf.xlu0
  %v759 = vpop.trf.xlu0
  %v760 = vpack.c.bf16 %v744, %v712
  %v761 = vpack.c.bf16 %v745, %v713
  %v762 = vpack.c.bf16 %v746, %v714
  %v763 = vpack.c.bf16 %v747, %v715
  %v764 = vpack.c.bf16 %v748, %v716
  %v765 = vpack.c.bf16 %v749, %v717
  %v766 = vpack.c.bf16 %v750, %v718
  %v767 = vpack.c.bf16 %v751, %v719
  %768 = vst [vmem:[%s7] sm:$0xff] %v760
  %769 = vst [vmem:[%s7 + $0x8] sm:$0xff] %v761
  %770 = vst [vmem:[%s7 + $0x10] sm:$0xff] %v762
  %771 = vst [vmem:[%s7 + $0x18] sm:$0xff] %v763
  %772 = vst [vmem:[%s7 + $0x20] sm:$0xff] %v764
  %773 = vst [vmem:[%s7 + $0x28] sm:$0xff] %v765
  %774 = vst [vmem:[%s7 + $0x30] sm:$0xff] %v766
  %775 = vst [vmem:[%s7 + $0x38] sm:$0xff] %v767
  %v776 = vpack.c.bf16 %v553, %v553
  %v777 = vpack.c.bf16 %v555, %v555
  %v778 = vpack.c.bf16 %v558, %v558
  %v779 = vpack.c.bf16 %v560, %v560
  %v780 = vpack.c.bf16 %v563, %v563
  %v781 = vpack.c.bf16 %v565, %v565
  %v782 = vpack.c.bf16 %v568, %v568
  %v783 = vpack.c.bf16 %v570, %v570
  %v784 = vpack.c.bf16 %v573, %v573
  %v785 = vpack.c.bf16 %v575, %v575
  %v786 = vpack.c.bf16 %v578, %v578
  %v787 = vpack.c.bf16 %v580, %v580
  %v788 = vpack.c.bf16 %v583, %v583
  %v789 = vpack.c.bf16 %v585, %v585
  %v790 = vpack.c.bf16 %v588, %v588
  %v791 = vpack.c.bf16 %v590, %v590
  %v792 = vpack.c.bf16 %v593, %v593
  %v793 = vpack.c.bf16 %v595, %v595
  %v794 = vpack.c.bf16 %v598, %v598
  %v795 = vpack.c.bf16 %v600, %v600
  %v796 = vpack.c.bf16 %v603, %v603
  %v797 = vpack.c.bf16 %v605, %v605
  %v798 = vpack.c.bf16 %v608, %v608
  %v799 = vpack.c.bf16 %v610, %v610
  %v800 = vpack.c.bf16 %v613, %v613
  %v801 = vpack.c.bf16 %v615, %v615
  %v802 = vpack.c.bf16 %v618, %v618
  %v803 = vpack.c.bf16 %v620, %v620
  %v804 = vpack.c.bf16 %v623, %v623
  %v805 = vpack.c.bf16 %v625, %v625
  %v806 = vpack.c.bf16 %v628, %v628
  %v807 = vpack.c.bf16 %v630, %v630
  %vm808 = vcmask 519168
  %809 = vst.msk [vmem:[%s8] sm:$0xf] %vm808, %v776
  %810 = vst.msk [vmem:[%s8 + $0x4] sm:$0xf] %vm808, %v777
  %811 = vst.msk [vmem:[%s8 + $0x8] sm:$0xf] %vm808, %v778
  %812 = vst.msk [vmem:[%s8 + $0xc] sm:$0xf] %vm808, %v779
  %813 = vst.msk [vmem:[%s8 + $0x10] sm:$0xf] %vm808, %v780
  %814 = vst.msk [vmem:[%s8 + $0x14] sm:$0xf] %vm808, %v781
  %815 = vst.msk [vmem:[%s8 + $0x18] sm:$0xf] %vm808, %v782
  %816 = vst.msk [vmem:[%s8 + $0x1c] sm:$0xf] %vm808, %v783
  %817 = vst.msk [vmem:[%s8 + $0x20] sm:$0xf] %vm808, %v784
  %818 = vst.msk [vmem:[%s8 + $0x24] sm:$0xf] %vm808, %v785
  %819 = vst.msk [vmem:[%s8 + $0x28] sm:$0xf] %vm808, %v786
  %820 = vst.msk [vmem:[%s8 + $0x2c] sm:$0xf] %vm808, %v787
  %821 = vst.msk [vmem:[%s8 + $0x30] sm:$0xf] %vm808, %v788
  %822 = vst.msk [vmem:[%s8 + $0x34] sm:$0xf] %vm808, %v789
  %823 = vst.msk [vmem:[%s8 + $0x38] sm:$0xf] %vm808, %v790
  %824 = vst.msk [vmem:[%s8 + $0x3c] sm:$0xf] %vm808, %v791
  %825 = vst.msk [vmem:[%s8 + $0x40] sm:$0xf] %vm808, %v792
  %826 = vst.msk [vmem:[%s8 + $0x44] sm:$0xf] %vm808, %v793
  %827 = vst.msk [vmem:[%s8 + $0x48] sm:$0xf] %vm808, %v794
  %828 = vst.msk [vmem:[%s8 + $0x4c] sm:$0xf] %vm808, %v795
  %829 = vst.msk [vmem:[%s8 + $0x50] sm:$0xf] %vm808, %v796
  %830 = vst.msk [vmem:[%s8 + $0x54] sm:$0xf] %vm808, %v797
  %831 = vst.msk [vmem:[%s8 + $0x58] sm:$0xf] %vm808, %v798
  %832 = vst.msk [vmem:[%s8 + $0x5c] sm:$0xf] %vm808, %v799
  %833 = vst.msk [vmem:[%s8 + $0x60] sm:$0xf] %vm808, %v800
  %834 = vst.msk [vmem:[%s8 + $0x64] sm:$0xf] %vm808, %v801
  %835 = vst.msk [vmem:[%s8 + $0x68] sm:$0xf] %vm808, %v802
  %836 = vst.msk [vmem:[%s8 + $0x6c] sm:$0xf] %vm808, %v803
  %837 = vst.msk [vmem:[%s8 + $0x70] sm:$0xf] %vm808, %v804
  %838 = vst.msk [vmem:[%s8 + $0x74] sm:$0xf] %vm808, %v805
  %839 = vst.msk [vmem:[%s8 + $0x78] sm:$0xf] %vm808, %v806
  %840 = vst.msk [vmem:[%s8 + $0x7c] sm:$0xf] %vm808, %v807
  %873 = vrot.lane.b32.xlu0 %v464, 64
  %v874 = vpop.permute.xlu0 %873
  %875 = vrot.lane.b32.xlu0 %v466, 64
  %v876 = vpop.permute.xlu0 %875
  %877 = vrot.lane.b32.xlu0 %v469, 64
  %v878 = vpop.permute.xlu0 %877
  %879 = vrot.lane.b32.xlu0 %v471, 64
  %v880 = vpop.permute.xlu0 %879
  %881 = vrot.lane.b32.xlu0 %v474, 64
  %v882 = vpop.permute.xlu0 %881
  %883 = vrot.lane.b32.xlu0 %v476, 64
  %v884 = vpop.permute.xlu0 %883
  %885 = vrot.lane.b32.xlu0 %v479, 64
  %v886 = vpop.permute.xlu0 %885
  %887 = vrot.lane.b32.xlu0 %v481, 64
  %v888 = vpop.permute.xlu0 %887
  %889 = vrot.lane.b32.xlu0 %v484, 64
  %v890 = vpop.permute.xlu0 %889
  %891 = vrot.lane.b32.xlu0 %v486, 64
  %v892 = vpop.permute.xlu0 %891
  %893 = vrot.lane.b32.xlu0 %v489, 64
  %v894 = vpop.permute.xlu0 %893
  %895 = vrot.lane.b32.xlu0 %v491, 64
  %v896 = vpop.permute.xlu0 %895
  %897 = vrot.lane.b32.xlu0 %v494, 64
  %v898 = vpop.permute.xlu0 %897
  %899 = vrot.lane.b32.xlu0 %v496, 64
  %v900 = vpop.permute.xlu0 %899
  %901 = vrot.lane.b32.xlu0 %v499, 64
  %v902 = vpop.permute.xlu0 %901
  %903 = vrot.lane.b32.xlu0 %v501, 64
  %v904 = vpop.permute.xlu0 %903
  %905 = vrot.lane.b32.xlu0 %v504, 64
  %v906 = vpop.permute.xlu0 %905
  %907 = vrot.lane.b32.xlu0 %v506, 64
  %v908 = vpop.permute.xlu0 %907
  %909 = vrot.lane.b32.xlu0 %v509, 64
  %v910 = vpop.permute.xlu0 %909
  %911 = vrot.lane.b32.xlu0 %v511, 64
  %v912 = vpop.permute.xlu0 %911
  %913 = vrot.lane.b32.xlu0 %v514, 64
  %v914 = vpop.permute.xlu0 %913
  %915 = vrot.lane.b32.xlu0 %v516, 64
  %v916 = vpop.permute.xlu0 %915
  %917 = vrot.lane.b32.xlu0 %v519, 64
  %v918 = vpop.permute.xlu0 %917
  %919 = vrot.lane.b32.xlu0 %v521, 64
  %v920 = vpop.permute.xlu0 %919
  %921 = vrot.lane.b32.xlu0 %v524, 64
  %v922 = vpop.permute.xlu0 %921
  %923 = vrot.lane.b32.xlu0 %v526, 64
  %v924 = vpop.permute.xlu0 %923
  %925 = vrot.lane.b32.xlu0 %v529, 64
  %v926 = vpop.permute.xlu0 %925
  %927 = vrot.lane.b32.xlu0 %v531, 64
  %v928 = vpop.permute.xlu0 %927
  %929 = vrot.lane.b32.xlu0 %v534, 64
  %v930 = vpop.permute.xlu0 %929
  %931 = vrot.lane.b32.xlu0 %v536, 64
  %v932 = vpop.permute.xlu0 %931
  %933 = vrot.lane.b32.xlu0 %v539, 64
  %v934 = vpop.permute.xlu0 %933
  %935 = vrot.lane.b32.xlu0 %v541, 64
  %v936 = vpop.permute.xlu0 %935
  %969 = vxpose.xlu0.b32.start [1/16] %v874, 128
  %970 = vxpose.xlu0.b32.cont [2/16] %v876, 128
  %971 = vxpose.xlu0.b32.cont [3/16] %v878, 128
  %972 = vxpose.xlu0.b32.cont [4/16] %v880, 128
  %973 = vxpose.xlu0.b32.cont [5/16] %v882, 128
  %974 = vxpose.xlu0.b32.cont [6/16] %v884, 128
  %975 = vxpose.xlu0.b32.cont [7/16] %v886, 128
  %976 = vxpose.xlu0.b32.cont [8/16] %v888, 128
  %977 = vxpose.xlu0.b32.cont [9/16] %v890, 128
  %978 = vxpose.xlu0.b32.cont [10/16] %v892, 128
  %979 = vxpose.xlu0.b32.cont [11/16] %v894, 128
  %980 = vxpose.xlu0.b32.cont [12/16] %v896, 128
  %981 = vxpose.xlu0.b32.cont [13/16] %v898, 128
  %982 = vxpose.xlu0.b32.cont [14/16] %v900, 128
  %983 = vxpose.xlu0.b32.cont [15/16] %v902, 128
  %984 = vxpose.xlu0.b32.end [16/16] %v904, 128
  %v985 = vpop.trf.xlu0
  %v986 = vpop.trf.xlu0
  %v987 = vpop.trf.xlu0
  %v988 = vpop.trf.xlu0
  %v989 = vpop.trf.xlu0
  %v990 = vpop.trf.xlu0
  %v991 = vpop.trf.xlu0
  %v992 = vpop.trf.xlu0
  %v993 = vpop.trf.xlu0
  %v994 = vpop.trf.xlu0
  %v995 = vpop.trf.xlu0
  %v996 = vpop.trf.xlu0
  %v997 = vpop.trf.xlu0
  %v998 = vpop.trf.xlu0
  %v999 = vpop.trf.xlu0
  %v1000 = vpop.trf.xlu0
  %1001 = vxpose.xlu0.b32.start [1/16] %v906, 128
  %1002 = vxpose.xlu0.b32.cont [2/16] %v908, 128
  %1003 = vxpose.xlu0.b32.cont [3/16] %v910, 128
  %1004 = vxpose.xlu0.b32.cont [4/16] %v912, 128
  %1005 = vxpose.xlu0.b32.cont [5/16] %v914, 128
  %1006 = vxpose.xlu0.b32.cont [6/16] %v916, 128
  %1007 = vxpose.xlu0.b32.cont [7/16] %v918, 128
  %1008 = vxpose.xlu0.b32.cont [8/16] %v920, 128
  %1009 = vxpose.xlu0.b32.cont [9/16] %v922, 128
  %1010 = vxpose.xlu0.b32.cont [10/16] %v924, 128
  %1011 = vxpose.xlu0.b32.cont [11/16] %v926, 128
  %1012 = vxpose.xlu0.b32.cont [12/16] %v928, 128
  %1013 = vxpose.xlu0.b32.cont [13/16] %v930, 128
  %1014 = vxpose.xlu0.b32.cont [14/16] %v932, 128
  %1015 = vxpose.xlu0.b32.cont [15/16] %v934, 128
  %1016 = vxpose.xlu0.b32.end [16/16] %v936, 128
  %v1017 = vpop.trf.xlu0
  %v1018 = vpop.trf.xlu0
  %v1019 = vpop.trf.xlu0
  %v1020 = vpop.trf.xlu0
  %v1021 = vpop.trf.xlu0
  %v1022 = vpop.trf.xlu0
  %v1023 = vpop.trf.xlu0
  %v1024 = vpop.trf.xlu0
  %v1025 = vpop.trf.xlu0
  %v1026 = vpop.trf.xlu0
  %v1027 = vpop.trf.xlu0
  %v1028 = vpop.trf.xlu0
  %v1029 = vpop.trf.xlu0
  %v1030 = vpop.trf.xlu0
  %v1031 = vpop.trf.xlu0
  %v1032 = vpop.trf.xlu0
  %v1033 = vpack.c.bf16 %v1017, %v985
  %v1034 = vpack.c.bf16 %v1018, %v986
  %v1035 = vpack.c.bf16 %v1019, %v987
  %v1036 = vpack.c.bf16 %v1020, %v988
  %v1037 = vpack.c.bf16 %v1021, %v989
  %v1038 = vpack.c.bf16 %v1022, %v990
  %v1039 = vpack.c.bf16 %v1023, %v991
  %v1040 = vpack.c.bf16 %v1024, %v992
  %s1041 = scalar_lea.vmem %s7, 64
  %1042 = vst [vmem:[%s1041] sm:$0xff] %v1033
  %1043 = vst [vmem:[%s1041 + $0x8] sm:$0xff] %v1034
  %1044 = vst [vmem:[%s1041 + $0x10] sm:$0xff] %v1035
  %1045 = vst [vmem:[%s1041 + $0x18] sm:$0xff] %v1036
  %1046 = vst [vmem:[%s1041 + $0x20] sm:$0xff] %v1037
  %1047 = vst [vmem:[%s1041 + $0x28] sm:$0xff] %v1038
  %1048 = vst [vmem:[%s1041 + $0x30] sm:$0xff] %v1039
  %1049 = vst [vmem:[%s1041 + $0x38] sm:$0xff] %v1040
  %1082 = vrot.lane.b32.xlu0 %v776, 64
  %v1083 = vpop.permute.xlu0 %1082
  %1084 = vrot.lane.b32.xlu0 %v777, 64
  %v1085 = vpop.permute.xlu0 %1084
  %1086 = vrot.lane.b32.xlu0 %v778, 64
  %v1087 = vpop.permute.xlu0 %1086
  %1088 = vrot.lane.b32.xlu0 %v779, 64
  %v1089 = vpop.permute.xlu0 %1088
  %1090 = vrot.lane.b32.xlu0 %v780, 64
  %v1091 = vpop.permute.xlu0 %1090
  %1092 = vrot.lane.b32.xlu0 %v781, 64
  %v1093 = vpop.permute.xlu0 %1092
  %1094 = vrot.lane.b32.xlu0 %v782, 64
  %v1095 = vpop.permute.xlu0 %1094
  %1096 = vrot.lane.b32.xlu0 %v783, 64
  %v1097 = vpop.permute.xlu0 %1096
  %1098 = vrot.lane.b32.xlu0 %v784, 64
  %v1099 = vpop.permute.xlu0 %1098
  %1100 = vrot.lane.b32.xlu0 %v785, 64
  %v1101 = vpop.permute.xlu0 %1100
  %1102 = vrot.lane.b32.xlu0 %v786, 64
  %v1103 = vpop.permute.xlu0 %1102
  %1104 = vrot.lane.b32.xlu0 %v787, 64
  %v1105 = vpop.permute.xlu0 %1104
  %1106 = vrot.lane.b32.xlu0 %v788, 64
  %v1107 = vpop.permute.xlu0 %1106
  %1108 = vrot.lane.b32.xlu0 %v789, 64
  %v1109 = vpop.permute.xlu0 %1108
  %1110 = vrot.lane.b32.xlu0 %v790, 64
  %v1111 = vpop.permute.xlu0 %1110
  %1112 = vrot.lane.b32.xlu0 %v791, 64
  %v1113 = vpop.permute.xlu0 %1112
  %1114 = vrot.lane.b32.xlu0 %v792, 64
  %v1115 = vpop.permute.xlu0 %1114
  %1116 = vrot.lane.b32.xlu0 %v793, 64
  %v1117 = vpop.permute.xlu0 %1116
  %1118 = vrot.lane.b32.xlu0 %v794, 64
  %v1119 = vpop.permute.xlu0 %1118
  %1120 = vrot.lane.b32.xlu0 %v795, 64
  %v1121 = vpop.permute.xlu0 %1120
  %1122 = vrot.lane.b32.xlu0 %v796, 64
  %v1123 = vpop.permute.xlu0 %1122
  %1124 = vrot.lane.b32.xlu0 %v797, 64
  %v1125 = vpop.permute.xlu0 %1124
  %1126 = vrot.lane.b32.xlu0 %v798, 64
  %v1127 = vpop.permute.xlu0 %1126
  %1128 = vrot.lane.b32.xlu0 %v799, 64
  %v1129 = vpop.permute.xlu0 %1128
  %1130 = vrot.lane.b32.xlu0 %v800, 64
  %v1131 = vpop.permute.xlu0 %1130
  %1132 = vrot.lane.b32.xlu0 %v801, 64
  %v1133 = vpop.permute.xlu0 %1132
  %1134 = vrot.lane.b32.xlu0 %v802, 64
  %v1135 = vpop.permute.xlu0 %1134
  %1136 = vrot.lane.b32.xlu0 %v803, 64
  %v1137 = vpop.permute.xlu0 %1136
  %1138 = vrot.lane.b32.xlu0 %v804, 64
  %v1139 = vpop.permute.xlu0 %1138
  %1140 = vrot.lane.b32.xlu0 %v805, 64
  %v1141 = vpop.permute.xlu0 %1140
  %1142 = vrot.lane.b32.xlu0 %v806, 64
  %v1143 = vpop.permute.xlu0 %1142
  %1144 = vrot.lane.b32.xlu0 %v807, 64
  %v1145 = vpop.permute.xlu0 %1144
  %s1178 = scalar_lea.vmem %s8, 128
  %1179 = vst.msk [vmem:[%s1178] sm:$0xf] %vm808, %v1083
  %1180 = vst.msk [vmem:[%s1178 + $0x4] sm:$0xf] %vm808, %v1085
  %1181 = vst.msk [vmem:[%s1178 + $0x8] sm:$0xf] %vm808, %v1087
  %1182 = vst.msk [vmem:[%s1178 + $0xc] sm:$0xf] %vm808, %v1089
  %1183 = vst.msk [vmem:[%s1178 + $0x10] sm:$0xf] %vm808, %v1091
  %1184 = vst.msk [vmem:[%s1178 + $0x14] sm:$0xf] %vm808, %v1093
  %1185 = vst.msk [vmem:[%s1178 + $0x18] sm:$0xf] %vm808, %v1095
  %1186 = vst.msk [vmem:[%s1178 + $0x1c] sm:$0xf] %vm808, %v1097
  %1187 = vst.msk [vmem:[%s1178 + $0x20] sm:$0xf] %vm808, %v1099
  %1188 = vst.msk [vmem:[%s1178 + $0x24] sm:$0xf] %vm808, %v1101
  %1189 = vst.msk [vmem:[%s1178 + $0x28] sm:$0xf] %vm808, %v1103
  %1190 = vst.msk [vmem:[%s1178 + $0x2c] sm:$0xf] %vm808, %v1105
  %1191 = vst.msk [vmem:[%s1178 + $0x30] sm:$0xf] %vm808, %v1107
  %1192 = vst.msk [vmem:[%s1178 + $0x34] sm:$0xf] %vm808, %v1109
  %1193 = vst.msk [vmem:[%s1178 + $0x38] sm:$0xf] %vm808, %v1111
  %1194 = vst.msk [vmem:[%s1178 + $0x3c] sm:$0xf] %vm808, %v1113
  %1195 = vst.msk [vmem:[%s1178 + $0x40] sm:$0xf] %vm808, %v1115
  %1196 = vst.msk [vmem:[%s1178 + $0x44] sm:$0xf] %vm808, %v1117
  %1197 = vst.msk [vmem:[%s1178 + $0x48] sm:$0xf] %vm808, %v1119
  %1198 = vst.msk [vmem:[%s1178 + $0x4c] sm:$0xf] %vm808, %v1121
  %1199 = vst.msk [vmem:[%s1178 + $0x50] sm:$0xf] %vm808, %v1123
  %1200 = vst.msk [vmem:[%s1178 + $0x54] sm:$0xf] %vm808, %v1125
  %1201 = vst.msk [vmem:[%s1178 + $0x58] sm:$0xf] %vm808, %v1127
  %1202 = vst.msk [vmem:[%s1178 + $0x5c] sm:$0xf] %vm808, %v1129
  %1203 = vst.msk [vmem:[%s1178 + $0x60] sm:$0xf] %vm808, %v1131
  %1204 = vst.msk [vmem:[%s1178 + $0x64] sm:$0xf] %vm808, %v1133
  %1205 = vst.msk [vmem:[%s1178 + $0x68] sm:$0xf] %vm808, %v1135
  %1206 = vst.msk [vmem:[%s1178 + $0x6c] sm:$0xf] %vm808, %v1137
  %1207 = vst.msk [vmem:[%s1178 + $0x70] sm:$0xf] %vm808, %v1139
  %1208 = vst.msk [vmem:[%s1178 + $0x74] sm:$0xf] %vm808, %v1141
  %1209 = vst.msk [vmem:[%s1178 + $0x78] sm:$0xf] %vm808, %v1143
  %1210 = vst.msk [vmem:[%s1178 + $0x7c] sm:$0xf] %vm808, %v1145
  // Predicated region
  $region26: #{_lambda_.10} parent=0 // pred_check
    _
  $region27: #{_lambda_.10} parent=0 // pred_check_branch
    %1212 = sbr.rel (0) target = $region29
  $region28: #{_lambda_.10} parent=0 // pred_region
    _
  $region29: #{_lambda_.10} parent=0 // pred_fallthru
    _
  // Predicated region
  $region30: #{_lambda_.10} parent=0 // pred_check
    _
  $region31: #{_lambda_.10} parent=0 // pred_check_branch
    %1214 = sbr.rel (0) target = $region33
  $region32: #{_lambda_.10} parent=0 // pred_region
    _
  $region33: #{_lambda_.10} parent=0 // pred_fallthru
    _
  // Predicated region
  $region34: #{_lambda_.10} parent=0 // pred_check
    _
  $region35: #{_lambda_.10} parent=0 // pred_check_branch
    %1216 = sbr.rel (0) target = $region37
  $region36: #{_lambda_.10} parent=0 // pred_region
    _
  $region37: #{_lambda_.10} parent=0 // pred_fallthru
    _
  // Predicated region
  $region38: #{_lambda_.10} parent=0 // pred_check
    _
  $region39: #{_lambda_.10} parent=0 // pred_check_branch
    %1218 = sbr.rel (0) target = $region41
  $region40: #{_lambda_.10} parent=0 // pred_region
    _
  $region41: #{_lambda_.10} parent=0 // pred_fallthru
    _
  // Predicated region
  $region42: #{_lambda_.10} parent=0 // pred_check
    _
  $region43: #{_lambda_.10} parent=0 // pred_check_branch
    %1220 = sbr.rel (0) target = $region45
  $region44: #{_lambda_.10} parent=0 // pred_region
    _
  $region45: #{_lambda_.10} parent=0 // pred_fallthru
    _
  // Predicated region
  $region46: #{_lambda_.10} parent=0 // pred_check
    _
  $region47: #{_lambda_.10} parent=0 // pred_check_branch
    %1222 = sbr.rel (0) target = $region49
  $region48: #{_lambda_.10} parent=0 // pred_region
    _
  $region49: #{_lambda_.10} parent=0 // pred_fallthru
    _

// kernel: _lambda_.14
$region0: #{_lambda_.14}
  #allocation0 [shape = 'u32[]', space=smem, size = 0x4, offset = 0x4, fixed_abs, tag = 'smem constant byte address 0x4 - core index']
  #allocation1 [shape = 'u32[72,128]{1,0:T(1,128)}', space=vmem, size = 0x9000, scoped, tag = 'internal scratch']
  %s0 = inlined_call_operand.vmem [shape: f32[256,128], index: 0, kind: input, shape index: {}]
  %s1 = inlined_call_operand.vmem [shape: f32[1,128], index: 1, kind: input, shape index: {}]
  %s2 = inlined_call_operand.vmem [shape: f32[1,128], index: 2, kind: input, shape index: {}]
  %s3 = inlined_call_operand.vmem [shape: f32[1,128], index: 3, kind: input, shape index: {}]
  %s4 = inlined_call_operand.vmem [shape: f32[256,128], index: 4, kind: output, shape index: {}]
  %s5 = sld [smem:[#allocation0]]
  $region26: #{_lambda_.14} parent=0
    _
  %s7 = ssub.s32 1, %s5
  %s8 = scalar_select 0, %s7, %s5
  // Predicated region
  $region2: #{_lambda_.14} parent=0 // pred_check
    _
  $region3: #{_lambda_.14} parent=0 // pred_check_branch
    %10 = sbr.rel (0) target = $region5
  $region4: #{_lambda_.14} parent=0 // pred_region
    _
  $region5: #{_lambda_.14} parent=0 // pred_fallthru
    _
  // Predicated region
  $region6: #{_lambda_.14} parent=0 // pred_check
    _
  $region7: #{_lambda_.14} parent=0 // pred_check_branch
    %12 = sbr.rel (0) target = $region9
  $region8: #{_lambda_.14} parent=0 // pred_region
    _
  $region9: #{_lambda_.14} parent=0 // pred_fallthru
    _
  // Predicated region
  $region10: #{_lambda_.14} parent=0 // pred_check
    _
  $region11: #{_lambda_.14} parent=0 // pred_check_branch
    %14 = sbr.rel (0) target = $region13
  $region12: #{_lambda_.14} parent=0 // pred_region
    _
  $region13: #{_lambda_.14} parent=0 // pred_fallthru
    _
  // Predicated region
  $region14: #{_lambda_.14} parent=0 // pred_check
    _
  $region15: #{_lambda_.14} parent=0 // pred_check_branch
    %16 = sbr.rel (0) target = $region17
  $region16: #{_lambda_.14} parent=0 // pred_region
    _
  $region17: #{_lambda_.14} parent=0 // pred_fallthru
    _
  %v17 = vld [vmem:[%s0] sm:$0xff]
  %v18 = vld [vmem:[%s0 + $0x8] sm:$0xff]
  %v19 = vld [vmem:[%s0 + $0x10] sm:$0xff]
  %v20 = vld [vmem:[%s0 + $0x18] sm:$0xff]
  %v21 = vld [vmem:[%s0 + $0x20] sm:$0xff]
  %v22 = vld [vmem:[%s0 + $0x28] sm:$0xff]
  %v23 = vld [vmem:[%s0 + $0x30] sm:$0xff]
  %v24 = vld [vmem:[%s0 + $0x38] sm:$0xff]
  %v25 = vld [vmem:[%s0 + $0x40] sm:$0xff]
  %v26 = vld [vmem:[%s0 + $0x48] sm:$0xff]
  %v27 = vld [vmem:[%s0 + $0x50] sm:$0xff]
  %v28 = vld [vmem:[%s0 + $0x58] sm:$0xff]
  %v29 = vld [vmem:[%s0 + $0x60] sm:$0xff]
  %v30 = vld [vmem:[%s0 + $0x68] sm:$0xff]
  %v31 = vld [vmem:[%s0 + $0x70] sm:$0xff]
  %v32 = vld [vmem:[%s0 + $0x78] sm:$0xff]
  %v33 = vld [vmem:[%s0 + $0x80] sm:$0xff]
  %v34 = vld [vmem:[%s0 + $0x88] sm:$0xff]
  %v35 = vld [vmem:[%s0 + $0x90] sm:$0xff]
  %v36 = vld [vmem:[%s0 + $0x98] sm:$0xff]
  %v37 = vld [vmem:[%s0 + $0xa0] sm:$0xff]
  %v38 = vld [vmem:[%s0 + $0xa8] sm:$0xff]
  %v39 = vld [vmem:[%s0 + $0xb0] sm:$0xff]
  %v40 = vld [vmem:[%s0 + $0xb8] sm:$0xff]
  %v41 = vld [vmem:[%s0 + $0xc0] sm:$0xff]
  %v42 = vld [vmem:[%s0 + $0xc8] sm:$0xff]
  %v43 = vld [vmem:[%s0 + $0xd0] sm:$0xff]
  %v44 = vld [vmem:[%s0 + $0xd8] sm:$0xff]
  %v45 = vld [vmem:[%s0 + $0xe0] sm:$0xff]
  %v46 = vld [vmem:[%s0 + $0xe8] sm:$0xff]
  %v47 = vld [vmem:[%s0 + $0xf0] sm:$0xff]
  %v48 = vld [vmem:[%s0 + $0xf8] sm:$0xff]
  %v49 = vld [vmem:[%s1] sm:$0x1]
  %v51 = vperm.slane %v49, 0
  %v53 = vsub.f32 %v17, %v51
  %v54 = vsub.f32 %v18, %v51
  %v55 = vsub.f32 %v19, %v51
  %v56 = vsub.f32 %v20, %v51
  %v57 = vsub.f32 %v21, %v51
  %v58 = vsub.f32 %v22, %v51
  %v59 = vsub.f32 %v23, %v51
  %v60 = vsub.f32 %v24, %v51
  %v61 = vsub.f32 %v25, %v51
  %v62 = vsub.f32 %v26, %v51
  %v63 = vsub.f32 %v27, %v51
  %v64 = vsub.f32 %v28, %v51
  %v65 = vsub.f32 %v29, %v51
  %v66 = vsub.f32 %v30, %v51
  %v67 = vsub.f32 %v31, %v51
  %v68 = vsub.f32 %v32, %v51
  %v69 = vsub.f32 %v33, %v51
  %v70 = vsub.f32 %v34, %v51
  %v71 = vsub.f32 %v35, %v51
  %v72 = vsub.f32 %v36, %v51
  %v73 = vsub.f32 %v37, %v51
  %v74 = vsub.f32 %v38, %v51
  %v75 = vsub.f32 %v39, %v51
  %v76 = vsub.f32 %v40, %v51
  %v77 = vsub.f32 %v41, %v51
  %v78 = vsub.f32 %v42, %v51
  %v79 = vsub.f32 %v43, %v51
  %v80 = vsub.f32 %v44, %v51
  %v81 = vsub.f32 %v45, %v51
  %v82 = vsub.f32 %v46, %v51
  %v83 = vsub.f32 %v47, %v51
  %v84 = vsub.f32 %v48, %v51
  %v85 = vld [vmem:[%s2] sm:$0x1]
  %v87 = vperm.slane %v85, 0
  %v89 = vmul.f32 %v53, %v87
  %v90 = vmul.f32 %v54, %v87
  %v91 = vmul.f32 %v55, %v87
  %v92 = vmul.f32 %v56, %v87
  %v93 = vmul.f32 %v57, %v87
  %v94 = vmul.f32 %v58, %v87
  %v95 = vmul.f32 %v59, %v87
  %v96 = vmul.f32 %v60, %v87
  %v97 = vmul.f32 %v61, %v87
  %v98 = vmul.f32 %v62, %v87
  %v99 = vmul.f32 %v63, %v87
  %v100 = vmul.f32 %v64, %v87
  %v101 = vmul.f32 %v65, %v87
  %v102 = vmul.f32 %v66, %v87
  %v103 = vmul.f32 %v67, %v87
  %v104 = vmul.f32 %v68, %v87
  %v105 = vmul.f32 %v69, %v87
  %v106 = vmul.f32 %v70, %v87
  %v107 = vmul.f32 %v71, %v87
  %v108 = vmul.f32 %v72, %v87
  %v109 = vmul.f32 %v73, %v87
  %v110 = vmul.f32 %v74, %v87
  %v111 = vmul.f32 %v75, %v87
  %v112 = vmul.f32 %v76, %v87
  %v113 = vmul.f32 %v77, %v87
  %v114 = vmul.f32 %v78, %v87
  %v115 = vmul.f32 %v79, %v87
  %v116 = vmul.f32 %v80, %v87
  %v117 = vmul.f32 %v81, %v87
  %v118 = vmul.f32 %v82, %v87
  %v119 = vmul.f32 %v83, %v87
  %v120 = vmul.f32 %v84, %v87
  %v121 = vld [vmem:[%s3] sm:$0x1]
  %v123 = vperm.slane %v121, 0
  %v125 = vadd.f32 %v89, %v123
  %v126 = vadd.f32 %v90, %v123
  %v127 = vadd.f32 %v91, %v123
  %v128 = vadd.f32 %v92, %v123
  %v129 = vadd.f32 %v93, %v123
  %v130 = vadd.f32 %v94, %v123
  %v131 = vadd.f32 %v95, %v123
  %v132 = vadd.f32 %v96, %v123
  %v133 = vadd.f32 %v97, %v123
  %v134 = vadd.f32 %v98, %v123
  %v135 = vadd.f32 %v99, %v123
  %v136 = vadd.f32 %v100, %v123
  %v137 = vadd.f32 %v101, %v123
  %v138 = vadd.f32 %v102, %v123
  %v139 = vadd.f32 %v103, %v123
  %v140 = vadd.f32 %v104, %v123
  %v141 = vadd.f32 %v105, %v123
  %v142 = vadd.f32 %v106, %v123
  %v143 = vadd.f32 %v107, %v123
  %v144 = vadd.f32 %v108, %v123
  %v145 = vadd.f32 %v109, %v123
  %v146 = vadd.f32 %v110, %v123
  %v147 = vadd.f32 %v111, %v123
  %v148 = vadd.f32 %v112, %v123
  %v149 = vadd.f32 %v113, %v123
  %v150 = vadd.f32 %v114, %v123
  %v151 = vadd.f32 %v115, %v123
  %v152 = vadd.f32 %v116, %v123
  %v153 = vadd.f32 %v117, %v123
  %v154 = vadd.f32 %v118, %v123
  %v155 = vadd.f32 %v119, %v123
  %v156 = vadd.f32 %v120, %v123
  %v157 = vmax.f32 %v125, 0.0
  %v158 = vmax.f32 %v126, 0.0
  %v159 = vmax.f32 %v127, 0.0
  %v160 = vmax.f32 %v128, 0.0
  %v161 = vmax.f32 %v129, 0.0
  %v162 = vmax.f32 %v130, 0.0
  %v163 = vmax.f32 %v131, 0.0
  %v164 = vmax.f32 %v132, 0.0
  %v165 = vmax.f32 %v133, 0.0
  %v166 = vmax.f32 %v134, 0.0
  %v167 = vmax.f32 %v135, 0.0
  %v168 = vmax.f32 %v136, 0.0
  %v169 = vmax.f32 %v137, 0.0
  %v170 = vmax.f32 %v138, 0.0
  %v171 = vmax.f32 %v139, 0.0
  %v172 = vmax.f32 %v140, 0.0
  %v173 = vmax.f32 %v141, 0.0
  %v174 = vmax.f32 %v142, 0.0
  %v175 = vmax.f32 %v143, 0.0
  %v176 = vmax.f32 %v144, 0.0
  %v177 = vmax.f32 %v145, 0.0
  %v178 = vmax.f32 %v146, 0.0
  %v179 = vmax.f32 %v147, 0.0
  %v180 = vmax.f32 %v148, 0.0
  %v181 = vmax.f32 %v149, 0.0
  %v182 = vmax.f32 %v150, 0.0
  %v183 = vmax.f32 %v151, 0.0
  %v184 = vmax.f32 %v152, 0.0
  %v185 = vmax.f32 %v153, 0.0
  %v186 = vmax.f32 %v154, 0.0
  %v187 = vmax.f32 %v155, 0.0
  %v188 = vmax.f32 %v156, 0.0
  %189 = vst [vmem:[%s4] sm:$0xff] %v157
  %190 = vst [vmem:[%s4 + $0x8] sm:$0xff] %v158
  %191 = vst [vmem:[%s4 + $0x10] sm:$0xff] %v159
  %192 = vst [vmem:[%s4 + $0x18] sm:$0xff] %v160
  %193 = vst [vmem:[%s4 + $0x20] sm:$0xff] %v161
  %194 = vst [vmem:[%s4 + $0x28] sm:$0xff] %v162
  %195 = vst [vmem:[%s4 + $0x30] sm:$0xff] %v163
  %196 = vst [vmem:[%s4 + $0x38] sm:$0xff] %v164
  %197 = vst [vmem:[%s4 + $0x40] sm:$0xff] %v165
  %198 = vst [vmem:[%s4 + $0x48] sm:$0xff] %v166
  %199 = vst [vmem:[%s4 + $0x50] sm:$0xff] %v167
  %200 = vst [vmem:[%s4 + $0x58] sm:$0xff] %v168
  %201 = vst [vmem:[%s4 + $0x60] sm:$0xff] %v169
  %202 = vst [vmem:[%s4 + $0x68] sm:$0xff] %v170
  %203 = vst [vmem:[%s4 + $0x70] sm:$0xff] %v171
  %204 = vst [vmem:[%s4 + $0x78] sm:$0xff] %v172
  %205 = vst [vmem:[%s4 + $0x80] sm:$0xff] %v173
  %206 = vst [vmem:[%s4 + $0x88] sm:$0xff] %v174
  %207 = vst [vmem:[%s4 + $0x90] sm:$0xff] %v175
  %208 = vst [vmem:[%s4 + $0x98] sm:$0xff] %v176
  %209 = vst [vmem:[%s4 + $0xa0] sm:$0xff] %v177
  %210 = vst [vmem:[%s4 + $0xa8] sm:$0xff] %v178
  %211 = vst [vmem:[%s4 + $0xb0] sm:$0xff] %v179
  %212 = vst [vmem:[%s4 + $0xb8] sm:$0xff] %v180
  %213 = vst [vmem:[%s4 + $0xc0] sm:$0xff] %v181
  %214 = vst [vmem:[%s4 + $0xc8] sm:$0xff] %v182
  %215 = vst [vmem:[%s4 + $0xd0] sm:$0xff] %v183
  %216 = vst [vmem:[%s4 + $0xd8] sm:$0xff] %v184
  %217 = vst [vmem:[%s4 + $0xe0] sm:$0xff] %v185
  %218 = vst [vmem:[%s4 + $0xe8] sm:$0xff] %v186
  %219 = vst [vmem:[%s4 + $0xf0] sm:$0xff] %v187
  %220 = vst [vmem:[%s4 + $0xf8] sm:$0xff] %v188
  // Predicated region
  $region18: #{_lambda_.14} parent=0 // pred_check
    _
  $region19: #{_lambda_.14} parent=0 // pred_check_branch
    %222 = sbr.rel (0) target = $region21
  $region20: #{_lambda_.14} parent=0 // pred_region
    _
  $region21: #{_lambda_.14} parent=0 // pred_fallthru
    _
  // Predicated region
  $region22: #{_lambda_.14} parent=0 // pred_check
    _
  $region23: #{_lambda_.14} parent=0 // pred_check_branch
    %224 = sbr.rel (0) target = $region25
  $region24: #{_lambda_.14} parent=0 // pred_region
    _
  $region25: #{_lambda_.14} parent=0 // pred_fallthru
    _

// kernel: _lambda_.12
$region0: #{_lambda_.12}
  #allocation0 [shape = 'u32[]', space=smem, size = 0x4, offset = 0x4, fixed_abs, tag = 'smem constant byte address 0x4 - core index']
  #allocation1 [shape = 'u32[72,128]{1,0:T(1,128)}', space=vmem, size = 0x9000, scoped, tag = 'internal scratch']
  %s0 = inlined_call_operand.vmem [shape: f32[256,128], index: 0, kind: input, shape index: {}]
  %s1 = inlined_call_operand.vmem [shape: bf16[128,512], index: 1, kind: input, shape index: {}]
  %s2 = inlined_call_operand.vmem [shape: f32[1,512], index: 2, kind: input, shape index: {}]
  %s3 = inlined_call_operand.vmem [shape: f32[1,128], index: 3, kind: input, shape index: {}]
  %s4 = inlined_call_operand.vmem [shape: f32[1,128], index: 4, kind: input, shape index: {}]
  %s5 = inlined_call_operand.vmem [shape: f32[1,128], index: 5, kind: input, shape index: {}]
  %s6 = inlined_call_operand.vmem [shape: f32[256,256], index: 6, kind: output, shape index: {0}]
  %s7 = inlined_call_operand.vmem [shape: bf16[2,64,256], index: 7, kind: output, shape index: {1}]
  %s8 = inlined_call_operand.vmem [shape: bf16[2,256,64], index: 8, kind: output, shape index: {2}]
  %9 = xla_tuple %s6, %s7, %s8
  %s10 = sld [smem:[#allocation0]]
  $region50: #{_lambda_.12} parent=0
    _
  %s12 = ssub.s32 1, %s10
  %s13 = scalar_select 0, %s12, %s10
  // Predicated region
  $region2: #{_lambda_.12} parent=0 // pred_check
    _
  $region3: #{_lambda_.12} parent=0 // pred_check_branch
    %15 = sbr.rel (0) target = $region5
  $region4: #{_lambda_.12} parent=0 // pred_region
    _
  $region5: #{_lambda_.12} parent=0 // pred_fallthru
    _
  // Predicated region
  $region6: #{_lambda_.12} parent=0 // pred_check
    _
  $region7: #{_lambda_.12} parent=0 // pred_check_branch
    %17 = sbr.rel (0) target = $region9
  $region8: #{_lambda_.12} parent=0 // pred_region
    _
  $region9: #{_lambda_.12} parent=0 // pred_fallthru
    _
  // Predicated region
  $region10: #{_lambda_.12} parent=0 // pred_check
    _
  $region11: #{_lambda_.12} parent=0 // pred_check_branch
    %19 = sbr.rel (0) target = $region13
  $region12: #{_lambda_.12} parent=0 // pred_region
    _
  $region13: #{_lambda_.12} parent=0 // pred_fallthru
    _
  // Predicated region
  $region14: #{_lambda_.12} parent=0 // pred_check
    _
  $region15: #{_lambda_.12} parent=0 // pred_check_branch
    %21 = sbr.rel (0) target = $region17
  $region16: #{_lambda_.12} parent=0 // pred_region
    _
  $region17: #{_lambda_.12} parent=0 // pred_fallthru
    _
  // Predicated region
  $region18: #{_lambda_.12} parent=0 // pred_check
    _
  $region19: #{_lambda_.12} parent=0 // pred_check_branch
    %23 = sbr.rel (0) target = $region21
  $region20: #{_lambda_.12} parent=0 // pred_region
    _
  $region21: #{_lambda_.12} parent=0 // pred_fallthru
    _
  // Predicated region
  $region22: #{_lambda_.12} parent=0 // pred_check
    _
  $region23: #{_lambda_.12} parent=0 // pred_check_branch
    %25 = sbr.rel (0) target = $region25
  $region24: #{_lambda_.12} parent=0 // pred_region
    _
  $region25: #{_lambda_.12} parent=0 // pred_fallthru
    _
  %v26 = vld [vmem:[%s0] sm:$0xff]
  %v27 = vld [vmem:[%s0 + $0x8] sm:$0xff]
  %v28 = vld [vmem:[%s0 + $0x10] sm:$0xff]
  %v29 = vld [vmem:[%s0 + $0x18] sm:$0xff]
  %v30 = vld [vmem:[%s0 + $0x20] sm:$0xff]
  %v31 = vld [vmem:[%s0 + $0x28] sm:$0xff]
  %v32 = vld [vmem:[%s0 + $0x30] sm:$0xff]
  %v33 = vld [vmem:[%s0 + $0x38] sm:$0xff]
  %v34 = vld [vmem:[%s0 + $0x40] sm:$0xff]
  %v35 = vld [vmem:[%s0 + $0x48] sm:$0xff]
  %v36 = vld [vmem:[%s0 + $0x50] sm:$0xff]
  %v37 = vld [vmem:[%s0 + $0x58] sm:$0xff]
  %v38 = vld [vmem:[%s0 + $0x60] sm:$0xff]
  %v39 = vld [vmem:[%s0 + $0x68] sm:$0xff]
  %v40 = vld [vmem:[%s0 + $0x70] sm:$0xff]
  %v41 = vld [vmem:[%s0 + $0x78] sm:$0xff]
  %v42 = vld [vmem:[%s0 + $0x80] sm:$0xff]
  %v43 = vld [vmem:[%s0 + $0x88] sm:$0xff]
  %v44 = vld [vmem:[%s0 + $0x90] sm:$0xff]
  %v45 = vld [vmem:[%s0 + $0x98] sm:$0xff]
  %v46 = vld [vmem:[%s0 + $0xa0] sm:$0xff]
  %v47 = vld [vmem:[%s0 + $0xa8] sm:$0xff]
  %v48 = vld [vmem:[%s0 + $0xb0] sm:$0xff]
  %v49 = vld [vmem:[%s0 + $0xb8] sm:$0xff]
  %v50 = vld [vmem:[%s0 + $0xc0] sm:$0xff]
  %v51 = vld [vmem:[%s0 + $0xc8] sm:$0xff]
  %v52 = vld [vmem:[%s0 + $0xd0] sm:$0xff]
  %v53 = vld [vmem:[%s0 + $0xd8] sm:$0xff]
  %v54 = vld [vmem:[%s0 + $0xe0] sm:$0xff]
  %v55 = vld [vmem:[%s0 + $0xe8] sm:$0xff]
  %v56 = vld [vmem:[%s0 + $0xf0] sm:$0xff]
  %v57 = vld [vmem:[%s0 + $0xf8] sm:$0xff]
  %v58 = vld [vmem:[%s3] sm:$0x1]
  %v60 = vperm.slane %v58, 0
  %v62 = vsub.f32 %v26, %v60
  %v63 = vsub.f32 %v27, %v60
  %v64 = vsub.f32 %v28, %v60
  %v65 = vsub.f32 %v29, %v60
  %v66 = vsub.f32 %v30, %v60
  %v67 = vsub.f32 %v31, %v60
  %v68 = vsub.f32 %v32, %v60
  %v69 = vsub.f32 %v33, %v60
  %v70 = vsub.f32 %v34, %v60
  %v71 = vsub.f32 %v35, %v60
  %v72 = vsub.f32 %v36, %v60
  %v73 = vsub.f32 %v37, %v60
  %v74 = vsub.f32 %v38, %v60
  %v75 = vsub.f32 %v39, %v60
  %v76 = vsub.f32 %v40, %v60
  %v77 = vsub.f32 %v41, %v60
  %v78 = vsub.f32 %v42, %v60
  %v79 = vsub.f32 %v43, %v60
  %v80 = vsub.f32 %v44, %v60
  %v81 = vsub.f32 %v45, %v60
  %v82 = vsub.f32 %v46, %v60
  %v83 = vsub.f32 %v47, %v60
  %v84 = vsub.f32 %v48, %v60
  %v85 = vsub.f32 %v49, %v60
  %v86 = vsub.f32 %v50, %v60
  %v87 = vsub.f32 %v51, %v60
  %v88 = vsub.f32 %v52, %v60
  %v89 = vsub.f32 %v53, %v60
  %v90 = vsub.f32 %v54, %v60
  %v91 = vsub.f32 %v55, %v60
  %v92 = vsub.f32 %v56, %v60
  %v93 = vsub.f32 %v57, %v60
  %v94 = vld [vmem:[%s4] sm:$0x1]
  %v96 = vperm.slane %v94, 0
  %v98 = vmul.f32 %v62, %v96
  %v99 = vmul.f32 %v63, %v96
  %v100 = vmul.f32 %v64, %v96
  %v101 = vmul.f32 %v65, %v96
  %v102 = vmul.f32 %v66, %v96
  %v103 = vmul.f32 %v67, %v96
  %v104 = vmul.f32 %v68, %v96
  %v105 = vmul.f32 %v69, %v96
  %v106 = vmul.f32 %v70, %v96
  %v107 = vmul.f32 %v71, %v96
  %v108 = vmul.f32 %v72, %v96
  %v109 = vmul.f32 %v73, %v96
  %v110 = vmul.f32 %v74, %v96
  %v111 = vmul.f32 %v75, %v96
  %v112 = vmul.f32 %v76, %v96
  %v113 = vmul.f32 %v77, %v96
  %v114 = vmul.f32 %v78, %v96
  %v115 = vmul.f32 %v79, %v96
  %v116 = vmul.f32 %v80, %v96
  %v117 = vmul.f32 %v81, %v96
  %v118 = vmul.f32 %v82, %v96
  %v119 = vmul.f32 %v83, %v96
  %v120 = vmul.f32 %v84, %v96
  %v121 = vmul.f32 %v85, %v96
  %v122 = vmul.f32 %v86, %v96
  %v123 = vmul.f32 %v87, %v96
  %v124 = vmul.f32 %v88, %v96
  %v125 = vmul.f32 %v89, %v96
  %v126 = vmul.f32 %v90, %v96
  %v127 = vmul.f32 %v91, %v96
  %v128 = vmul.f32 %v92, %v96
  %v129 = vmul.f32 %v93, %v96
  %v130 = vld [vmem:[%s5] sm:$0x1]
  %v132 = vperm.slane %v130, 0
  %v134 = vadd.f32 %v98, %v132
  %v135 = vadd.f32 %v99, %v132
  %v136 = vadd.f32 %v100, %v132
  %v137 = vadd.f32 %v101, %v132
  %v138 = vadd.f32 %v102, %v132
  %v139 = vadd.f32 %v103, %v132
  %v140 = vadd.f32 %v104, %v132
  %v141 = vadd.f32 %v105, %v132
  %v142 = vadd.f32 %v106, %v132
  %v143 = vadd.f32 %v107, %v132
  %v144 = vadd.f32 %v108, %v132
  %v145 = vadd.f32 %v109, %v132
  %v146 = vadd.f32 %v110, %v132
  %v147 = vadd.f32 %v111, %v132
  %v148 = vadd.f32 %v112, %v132
  %v149 = vadd.f32 %v113, %v132
  %v150 = vadd.f32 %v114, %v132
  %v151 = vadd.f32 %v115, %v132
  %v152 = vadd.f32 %v116, %v132
  %v153 = vadd.f32 %v117, %v132
  %v154 = vadd.f32 %v118, %v132
  %v155 = vadd.f32 %v119, %v132
  %v156 = vadd.f32 %v120, %v132
  %v157 = vadd.f32 %v121, %v132
  %v158 = vadd.f32 %v122, %v132
  %v159 = vadd.f32 %v123, %v132
  %v160 = vadd.f32 %v124, %v132
  %v161 = vadd.f32 %v125, %v132
  %v162 = vadd.f32 %v126, %v132
  %v163 = vadd.f32 %v127, %v132
  %v164 = vadd.f32 %v128, %v132
  %v165 = vadd.f32 %v129, %v132
  %v166 = vmax.f32 %v134, 0.0
  %v167 = vmax.f32 %v135, 0.0
  %v168 = vmax.f32 %v136, 0.0
  %v169 = vmax.f32 %v137, 0.0
  %v170 = vmax.f32 %v138, 0.0
  %v171 = vmax.f32 %v139, 0.0
  %v172 = vmax.f32 %v140, 0.0
  %v173 = vmax.f32 %v141, 0.0
  %v174 = vmax.f32 %v142, 0.0
  %v175 = vmax.f32 %v143, 0.0
  %v176 = vmax.f32 %v144, 0.0
  %v177 = vmax.f32 %v145, 0.0
  %v178 = vmax.f32 %v146, 0.0
  %v179 = vmax.f32 %v147, 0.0
  %v180 = vmax.f32 %v148, 0.0
  %v181 = vmax.f32 %v149, 0.0
  %v182 = vmax.f32 %v150, 0.0
  %v183 = vmax.f32 %v151, 0.0
  %v184 = vmax.f32 %v152, 0.0
  %v185 = vmax.f32 %v153, 0.0
  %v186 = vmax.f32 %v154, 0.0
  %v187 = vmax.f32 %v155, 0.0
  %v188 = vmax.f32 %v156, 0.0
  %v189 = vmax.f32 %v157, 0.0
  %v190 = vmax.f32 %v158, 0.0
  %v191 = vmax.f32 %v159, 0.0
  %v192 = vmax.f32 %v160, 0.0
  %v193 = vmax.f32 %v161, 0.0
  %v194 = vmax.f32 %v162, 0.0
  %v195 = vmax.f32 %v163, 0.0
  %v196 = vmax.f32 %v164, 0.0
  %v197 = vmax.f32 %v165, 0.0
  %v198 = vpack.c.bf16 %v167, %v166
  %v199 = vpack.c.bf16 %v169, %v168
  %v200 = vpack.c.bf16 %v171, %v170
  %v201 = vpack.c.bf16 %v173, %v172
  %v202 = vpack.c.bf16 %v175, %v174
  %v203 = vpack.c.bf16 %v177, %v176
  %v204 = vpack.c.bf16 %v179, %v178
  %v205 = vpack.c.bf16 %v181, %v180
  %v206 = vpack.c.bf16 %v183, %v182
  %v207 = vpack.c.bf16 %v185, %v184
  %v208 = vpack.c.bf16 %v187, %v186
  %v209 = vpack.c.bf16 %v189, %v188
  %v210 = vpack.c.bf16 %v191, %v190
  %v211 = vpack.c.bf16 %v193, %v192
  %v212 = vpack.c.bf16 %v195, %v194
  %v213 = vpack.c.bf16 %v197, %v196
  %v214 = vld [vmem:[%s1] sm:$0xff]
  %v215 = vld [vmem:[%s1 + $0x8] sm:$0xff]
  %v216 = vld [vmem:[%s1 + $0x10] sm:$0xff]
  %v217 = vld [vmem:[%s1 + $0x18] sm:$0xff]
  %v218 = vld [vmem:[%s1 + $0x20] sm:$0xff]
  %v219 = vld [vmem:[%s1 + $0x28] sm:$0xff]
  %v220 = vld [vmem:[%s1 + $0x30] sm:$0xff]
  %v221 = vld [vmem:[%s1 + $0x38] sm:$0xff]
  %v222 = vld [vmem:[%s1 + $0x40] sm:$0xff]
  %v223 = vld [vmem:[%s1 + $0x48] sm:$0xff]
  %v224 = vld [vmem:[%s1 + $0x50] sm:$0xff]
  %v225 = vld [vmem:[%s1 + $0x58] sm:$0xff]
  %v226 = vld [vmem:[%s1 + $0x60] sm:$0xff]
  %v227 = vld [vmem:[%s1 + $0x68] sm:$0xff]
  %v228 = vld [vmem:[%s1 + $0x70] sm:$0xff]
  %v229 = vld [vmem:[%s1 + $0x78] sm:$0xff]
  %v230 = vld [vmem:[%s1 + $0x80] sm:$0xff]
  %v231 = vld [vmem:[%s1 + $0x88] sm:$0xff]
  %v232 = vld [vmem:[%s1 + $0x90] sm:$0xff]
  %v233 = vld [vmem:[%s1 + $0x98] sm:$0xff]
  %v234 = vld [vmem:[%s1 + $0xa0] sm:$0xff]
  %v235 = vld [vmem:[%s1 + $0xa8] sm:$0xff]
  %v236 = vld [vmem:[%s1 + $0xb0] sm:$0xff]
  %v237 = vld [vmem:[%s1 + $0xb8] sm:$0xff]
  %v238 = vld [vmem:[%s1 + $0xc0] sm:$0xff]
  %v239 = vld [vmem:[%s1 + $0xc8] sm:$0xff]
  %v240 = vld [vmem:[%s1 + $0xd0] sm:$0xff]
  %v241 = vld [vmem:[%s1 + $0xd8] sm:$0xff]
  %v242 = vld [vmem:[%s1 + $0xe0] sm:$0xff]
  %v243 = vld [vmem:[%s1 + $0xe8] sm:$0xff]
  %v244 = vld [vmem:[%s1 + $0xf0] sm:$0xff]
  %v245 = vld [vmem:[%s1 + $0xf8] sm:$0xff]
  %v246 = vld [vmem:[%s2] sm:$0xf]
  %v248 = vperm.slane %v246, 0
  %v249 = vperm.slane %v246, 1
  %v250 = vperm.slane %v246, 2
  %v251 = vperm.slane %v246, 3
  %v288 = vunpack.c.l.b16 %v214
  %v289 = vunpack.c.h.b16 %v214
  %v290 = vunpack.c.l.b16 %v215
  %v291 = vunpack.c.h.b16 %v215
  %v292 = vunpack.c.l.b16 %v216
  %v293 = vunpack.c.h.b16 %v216
  %v294 = vunpack.c.l.b16 %v217
  %v295 = vunpack.c.h.b16 %v217
  %v296 = vunpack.c.l.b16 %v218
  %v297 = vunpack.c.h.b16 %v218
  %v298 = vunpack.c.l.b16 %v219
  %v299 = vunpack.c.h.b16 %v219
  %v300 = vunpack.c.l.b16 %v220
  %v301 = vunpack.c.h.b16 %v220
  %v302 = vunpack.c.l.b16 %v221
  %v303 = vunpack.c.h.b16 %v221
  %v304 = vunpack.c.l.b16 %v222
  %v305 = vunpack.c.h.b16 %v222
  %v306 = vunpack.c.l.b16 %v223
  %v307 = vunpack.c.h.b16 %v223
  %v308 = vunpack.c.l.b16 %v224
  %v309 = vunpack.c.h.b16 %v224
  %v310 = vunpack.c.l.b16 %v225
  %v311 = vunpack.c.h.b16 %v225
  %v312 = vunpack.c.l.b16 %v226
  %v313 = vunpack.c.h.b16 %v226
  %v314 = vunpack.c.l.b16 %v227
  %v315 = vunpack.c.h.b16 %v227
  %v316 = vunpack.c.l.b16 %v228
  %v317 = vunpack.c.h.b16 %v228
  %v318 = vunpack.c.l.b16 %v229
  %v319 = vunpack.c.h.b16 %v229
  %v320 = vunpack.c.l.b16 %v230
  %v321 = vunpack.c.h.b16 %v230
  %v322 = vunpack.c.l.b16 %v231
  %v323 = vunpack.c.h.b16 %v231
  %v324 = vunpack.c.l.b16 %v232
  %v325 = vunpack.c.h.b16 %v232
  %v326 = vunpack.c.l.b16 %v233
  %v327 = vunpack.c.h.b16 %v233
  %v328 = vunpack.c.l.b16 %v234
  %v329 = vunpack.c.h.b16 %v234
  %v330 = vunpack.c.l.b16 %v235
  %v331 = vunpack.c.h.b16 %v235
  %v332 = vunpack.c.l.b16 %v236
  %v333 = vunpack.c.h.b16 %v236
  %v334 = vunpack.c.l.b16 %v237
  %v335 = vunpack.c.h.b16 %v237
  %v336 = vunpack.c.l.b16 %v238
  %v337 = vunpack.c.h.b16 %v238
  %v338 = vunpack.c.l.b16 %v239
  %v339 = vunpack.c.h.b16 %v239
  %v340 = vunpack.c.l.b16 %v240
  %v341 = vunpack.c.h.b16 %v240
  %v342 = vunpack.c.l.b16 %v241
  %v343 = vunpack.c.h.b16 %v241
  %v344 = vunpack.c.l.b16 %v242
  %v345 = vunpack.c.h.b16 %v242
  %v346 = vunpack.c.l.b16 %v243
  %v347 = vunpack.c.h.b16 %v243
  %v348 = vunpack.c.l.b16 %v244
  %v349 = vunpack.c.h.b16 %v244
  %v350 = vunpack.c.l.b16 %v245
  %v351 = vunpack.c.h.b16 %v245
  %v352 = vpack.c.b16 %v292, %v288
  %v353 = vpack.c.b16 %v293, %v289
  %v354 = vpack.c.b16 %v294, %v290
  %v355 = vpack.c.b16 %v295, %v291
  %v356 = vpack.c.b16 %v300, %v296
  %v357 = vpack.c.b16 %v301, %v297
  %v358 = vpack.c.b16 %v302, %v298
  %v359 = vpack.c.b16 %v303, %v299
  %v360 = vpack.c.b16 %v308, %v304
  %v361 = vpack.c.b16 %v309, %v305
  %v362 = vpack.c.b16 %v310, %v306
  %v363 = vpack.c.b16 %v311, %v307
  %v364 = vpack.c.b16 %v316, %v312
  %v365 = vpack.c.b16 %v317, %v313
  %v366 = vpack.c.b16 %v318, %v314
  %v367 = vpack.c.b16 %v319, %v315
  %v368 = vpack.c.b16 %v324, %v320
  %v369 = vpack.c.b16 %v325, %v321
  %v370 = vpack.c.b16 %v326, %v322
  %v371 = vpack.c.b16 %v327, %v323
  %v372 = vpack.c.b16 %v332, %v328
  %v373 = vpack.c.b16 %v333, %v329
  %v374 = vpack.c.b16 %v334, %v330
  %v375 = vpack.c.b16 %v335, %v331
  %v376 = vpack.c.b16 %v340, %v336
  %v377 = vpack.c.b16 %v341, %v337
  %v378 = vpack.c.b16 %v342, %v338
  %v379 = vpack.c.b16 %v343, %v339
  %v380 = vpack.c.b16 %v348, %v344
  %v381 = vpack.c.b16 %v349, %v345
  %v382 = vpack.c.b16 %v350, %v346
  %v383 = vpack.c.b16 %v351, %v347
  %416 = vmatpush.bf16.msra.mxu0 %v380
  %417 = vmatpush.bf16.msra.mxu0 %v376
  %418 = vmatpush.bf16.msra.mxu0 %v372
  %419 = vmatpush.bf16.msra.mxu0 %v368
  %420 = vmatpush.bf16.msra.mxu0 %v364
  %421 = vmatpush.bf16.msra.mxu0 %v360
  %422 = vmatpush.bf16.msra.mxu0 %v356
  %423 = vmatpush.bf16.msra.mxu0 %v352
  %424 = vmatmul.bf16.gmra.mxu0 %v198
  %v425 = vpop.f32.mrf.mxu0
  %v426 = vadd.f32 %v248, %v425
  %v427 = vpop.f32.mrf.mxu0
  %v428 = vadd.f32 %v248, %v427
  %429 = vmatmul.bf16.gmra.mxu0 %v199
  %v430 = vpop.f32.mrf.mxu0
  %v431 = vadd.f32 %v248, %v430
  %v432 = vpop.f32.mrf.mxu0
  %v433 = vadd.f32 %v248, %v432
  %434 = vmatmul.bf16.gmra.mxu0 %v200
  %v435 = vpop.f32.mrf.mxu0
  %v436 = vadd.f32 %v248, %v435
  %v437 = vpop.f32.mrf.mxu0
  %v438 = vadd.f32 %v248, %v437
  %439 = vmatmul.bf16.gmra.mxu0 %v201
  %v440 = vpop.f32.mrf.mxu0
  %v441 = vadd.f32 %v248, %v440
  %v442 = vpop.f32.mrf.mxu0
  %v443 = vadd.f32 %v248, %v442
  %444 = vmatmul.bf16.gmra.mxu0 %v202
  %v445 = vpop.f32.mrf.mxu0
  %v446 = vadd.f32 %v248, %v445
  %v447 = vpop.f32.mrf.mxu0
  %v448 = vadd.f32 %v248, %v447
  %449 = vmatmul.bf16.gmra.mxu0 %v203
  %v450 = vpop.f32.mrf.mxu0
  %v451 = vadd.f32 %v248, %v450
  %v452 = vpop.f32.mrf.mxu0
  %v453 = vadd.f32 %v248, %v452
  %454 = vmatmul.bf16.gmra.mxu0 %v204
  %v455 = vpop.f32.mrf.mxu0
  %v456 = vadd.f32 %v248, %v455
  %v457 = vpop.f32.mrf.mxu0
  %v458 = vadd.f32 %v248, %v457
  %459 = vmatmul.bf16.gmra.mxu0 %v205
  %v460 = vpop.f32.mrf.mxu0
  %v461 = vadd.f32 %v248, %v460
  %v462 = vpop.f32.mrf.mxu0
  %v463 = vadd.f32 %v248, %v462
  %464 = vmatmul.bf16.gmra.mxu0 %v206
  %v465 = vpop.f32.mrf.mxu0
  %v466 = vadd.f32 %v248, %v465
  %v467 = vpop.f32.mrf.mxu0
  %v468 = vadd.f32 %v248, %v467
  %469 = vmatmul.bf16.gmra.mxu0 %v207
  %v470 = vpop.f32.mrf.mxu0
  %v471 = vadd.f32 %v248, %v470
  %v472 = vpop.f32.mrf.mxu0
  %v473 = vadd.f32 %v248, %v472
  %474 = vmatmul.bf16.gmra.mxu0 %v208
  %v475 = vpop.f32.mrf.mxu0
  %v476 = vadd.f32 %v248, %v475
  %v477 = vpop.f32.mrf.mxu0
  %v478 = vadd.f32 %v248, %v477
  %479 = vmatmul.bf16.gmra.mxu0 %v209
  %v480 = vpop.f32.mrf.mxu0
  %v481 = vadd.f32 %v248, %v480
  %v482 = vpop.f32.mrf.mxu0
  %v483 = vadd.f32 %v248, %v482
  %484 = vmatmul.bf16.gmra.mxu0 %v210
  %v485 = vpop.f32.mrf.mxu0
  %v486 = vadd.f32 %v248, %v485
  %v487 = vpop.f32.mrf.mxu0
  %v488 = vadd.f32 %v248, %v487
  %489 = vmatmul.bf16.gmra.mxu0 %v211
  %v490 = vpop.f32.mrf.mxu0
  %v491 = vadd.f32 %v248, %v490
  %v492 = vpop.f32.mrf.mxu0
  %v493 = vadd.f32 %v248, %v492
  %494 = vmatmul.bf16.gmra.mxu0 %v212
  %v495 = vpop.f32.mrf.mxu0
  %v496 = vadd.f32 %v248, %v495
  %v497 = vpop.f32.mrf.mxu0
  %v498 = vadd.f32 %v248, %v497
  %499 = vmatmul.bf16.gmra.mxu0 %v213
  %v500 = vpop.f32.mrf.mxu0
  %v501 = vadd.f32 %v248, %v500
  %v502 = vpop.f32.mrf.mxu0
  %v503 = vadd.f32 %v248, %v502
  %504 = vdwg.mxu0
  %505 = vmatpush.bf16.msra.mxu0 %v381
  %506 = vmatpush.bf16.msra.mxu0 %v377
  %507 = vmatpush.bf16.msra.mxu0 %v373
  %508 = vmatpush.bf16.msra.mxu0 %v369
  %509 = vmatpush.bf16.msra.mxu0 %v365
  %510 = vmatpush.bf16.msra.mxu0 %v361
  %511 = vmatpush.bf16.msra.mxu0 %v357
  %512 = vmatpush.bf16.msra.mxu0 %v353
  %513 = vmatmul.bf16.gmra.mxu0 %v198
  %v514 = vpop.f32.mrf.mxu0
  %v515 = vadd.f32 %v249, %v514
  %v516 = vpop.f32.mrf.mxu0
  %v517 = vadd.f32 %v249, %v516
  %518 = vmatmul.bf16.gmra.mxu0 %v199
  %v519 = vpop.f32.mrf.mxu0
  %v520 = vadd.f32 %v249, %v519
  %v521 = vpop.f32.mrf.mxu0
  %v522 = vadd.f32 %v249, %v521
  %523 = vmatmul.bf16.gmra.mxu0 %v200
  %v524 = vpop.f32.mrf.mxu0
  %v525 = vadd.f32 %v249, %v524
  %v526 = vpop.f32.mrf.mxu0
  %v527 = vadd.f32 %v249, %v526
  %528 = vmatmul.bf16.gmra.mxu0 %v201
  %v529 = vpop.f32.mrf.mxu0
  %v530 = vadd.f32 %v249, %v529
  %v531 = vpop.f32.mrf.mxu0
  %v532 = vadd.f32 %v249, %v531
  %533 = vmatmul.bf16.gmra.mxu0 %v202
  %v534 = vpop.f32.mrf.mxu0
  %v535 = vadd.f32 %v249, %v534
  %v536 = vpop.f32.mrf.mxu0
  %v537 = vadd.f32 %v249, %v536
  %538 = vmatmul.bf16.gmra.mxu0 %v203
  %v539 = vpop.f32.mrf.mxu0
  %v540 = vadd.f32 %v249, %v539
  %v541 = vpop.f32.mrf.mxu0
  %v542 = vadd.f32 %v249, %v541
  %543 = vmatmul.bf16.gmra.mxu0 %v204
  %v544 = vpop.f32.mrf.mxu0
  %v545 = vadd.f32 %v249, %v544
  %v546 = vpop.f32.mrf.mxu0
  %v547 = vadd.f32 %v249, %v546
  %548 = vmatmul.bf16.gmra.mxu0 %v205
  %v549 = vpop.f32.mrf.mxu0
  %v550 = vadd.f32 %v249, %v549
  %v551 = vpop.f32.mrf.mxu0
  %v552 = vadd.f32 %v249, %v551
  %553 = vmatmul.bf16.gmra.mxu0 %v206
  %v554 = vpop.f32.mrf.mxu0
  %v555 = vadd.f32 %v249, %v554
  %v556 = vpop.f32.mrf.mxu0
  %v557 = vadd.f32 %v249, %v556
  %558 = vmatmul.bf16.gmra.mxu0 %v207
  %v559 = vpop.f32.mrf.mxu0
  %v560 = vadd.f32 %v249, %v559
  %v561 = vpop.f32.mrf.mxu0
  %v562 = vadd.f32 %v249, %v561
  %563 = vmatmul.bf16.gmra.mxu0 %v208
  %v564 = vpop.f32.mrf.mxu0
  %v565 = vadd.f32 %v249, %v564
  %v566 = vpop.f32.mrf.mxu0
  %v567 = vadd.f32 %v249, %v566
  %568 = vmatmul.bf16.gmra.mxu0 %v209
  %v569 = vpop.f32.mrf.mxu0
  %v570 = vadd.f32 %v249, %v569
  %v571 = vpop.f32.mrf.mxu0
  %v572 = vadd.f32 %v249, %v571
  %573 = vmatmul.bf16.gmra.mxu0 %v210
  %v574 = vpop.f32.mrf.mxu0
  %v575 = vadd.f32 %v249, %v574
  %v576 = vpop.f32.mrf.mxu0
  %v577 = vadd.f32 %v249, %v576
  %578 = vmatmul.bf16.gmra.mxu0 %v211
  %v579 = vpop.f32.mrf.mxu0
  %v580 = vadd.f32 %v249, %v579
  %v581 = vpop.f32.mrf.mxu0
  %v582 = vadd.f32 %v249, %v581
  %583 = vmatmul.bf16.gmra.mxu0 %v212
  %v584 = vpop.f32.mrf.mxu0
  %v585 = vadd.f32 %v249, %v584
  %v586 = vpop.f32.mrf.mxu0
  %v587 = vadd.f32 %v249, %v586
  %588 = vmatmul.bf16.gmra.mxu0 %v213
  %v589 = vpop.f32.mrf.mxu0
  %v590 = vadd.f32 %v249, %v589
  %v591 = vpop.f32.mrf.mxu0
  %v592 = vadd.f32 %v249, %v591
  %593 = vdwg.mxu0
  %594 = vmatpush.bf16.msra.mxu0 %v382
  %595 = vmatpush.bf16.msra.mxu0 %v378
  %596 = vmatpush.bf16.msra.mxu0 %v374
  %597 = vmatpush.bf16.msra.mxu0 %v370
  %598 = vmatpush.bf16.msra.mxu0 %v366
  %599 = vmatpush.bf16.msra.mxu0 %v362
  %600 = vmatpush.bf16.msra.mxu0 %v358
  %601 = vmatpush.bf16.msra.mxu0 %v354
  %602 = vmatmul.bf16.gmra.mxu0 %v198
  %v603 = vpop.f32.mrf.mxu0
  %v604 = vadd.f32 %v250, %v603
  %v605 = vpop.f32.mrf.mxu0
  %v606 = vadd.f32 %v250, %v605
  %607 = vmatmul.bf16.gmra.mxu0 %v199
  %v608 = vpop.f32.mrf.mxu0
  %v609 = vadd.f32 %v250, %v608
  %v610 = vpop.f32.mrf.mxu0
  %v611 = vadd.f32 %v250, %v610
  %612 = vmatmul.bf16.gmra.mxu0 %v200
  %v613 = vpop.f32.mrf.mxu0
  %v614 = vadd.f32 %v250, %v613
  %v615 = vpop.f32.mrf.mxu0
  %v616 = vadd.f32 %v250, %v615
  %617 = vmatmul.bf16.gmra.mxu0 %v201
  %v618 = vpop.f32.mrf.mxu0
  %v619 = vadd.f32 %v250, %v618
  %v620 = vpop.f32.mrf.mxu0
  %v621 = vadd.f32 %v250, %v620
  %622 = vmatmul.bf16.gmra.mxu0 %v202
  %v623 = vpop.f32.mrf.mxu0
  %v624 = vadd.f32 %v250, %v623
  %v625 = vpop.f32.mrf.mxu0
  %v626 = vadd.f32 %v250, %v625
  %627 = vmatmul.bf16.gmra.mxu0 %v203
  %v628 = vpop.f32.mrf.mxu0
  %v629 = vadd.f32 %v250, %v628
  %v630 = vpop.f32.mrf.mxu0
  %v631 = vadd.f32 %v250, %v630
  %632 = vmatmul.bf16.gmra.mxu0 %v204
  %v633 = vpop.f32.mrf.mxu0
  %v634 = vadd.f32 %v250, %v633
  %v635 = vpop.f32.mrf.mxu0
  %v636 = vadd.f32 %v250, %v635
  %637 = vmatmul.bf16.gmra.mxu0 %v205
  %v638 = vpop.f32.mrf.mxu0
  %v639 = vadd.f32 %v250, %v638
  %v640 = vpop.f32.mrf.mxu0
  %v641 = vadd.f32 %v250, %v640
  %642 = vmatmul.bf16.gmra.mxu0 %v206
  %v643 = vpop.f32.mrf.mxu0
  %v644 = vadd.f32 %v250, %v643
  %v645 = vpop.f32.mrf.mxu0
  %v646 = vadd.f32 %v250, %v645
  %647 = vmatmul.bf16.gmra.mxu0 %v207
  %v648 = vpop.f32.mrf.mxu0
  %v649 = vadd.f32 %v250, %v648
  %v650 = vpop.f32.mrf.mxu0
  %v651 = vadd.f32 %v250, %v650
  %652 = vmatmul.bf16.gmra.mxu0 %v208
  %v653 = vpop.f32.mrf.mxu0
  %v654 = vadd.f32 %v250, %v653
  %v655 = vpop.f32.mrf.mxu0
  %v656 = vadd.f32 %v250, %v655
  %657 = vmatmul.bf16.gmra.mxu0 %v209
  %v658 = vpop.f32.mrf.mxu0
  %v659 = vadd.f32 %v250, %v658
  %v660 = vpop.f32.mrf.mxu0
  %v661 = vadd.f32 %v250, %v660
  %662 = vmatmul.bf16.gmra.mxu0 %v210
  %v663 = vpop.f32.mrf.mxu0
  %v664 = vadd.f32 %v250, %v663
  %v665 = vpop.f32.mrf.mxu0
  %v666 = vadd.f32 %v250, %v665
  %667 = vmatmul.bf16.gmra.mxu0 %v211
  %v668 = vpop.f32.mrf.mxu0
  %v669 = vadd.f32 %v250, %v668
  %v670 = vpop.f32.mrf.mxu0
  %v671 = vadd.f32 %v250, %v670
  %672 = vmatmul.bf16.gmra.mxu0 %v212
  %v673 = vpop.f32.mrf.mxu0
  %v674 = vadd.f32 %v250, %v673
  %v675 = vpop.f32.mrf.mxu0
  %v676 = vadd.f32 %v250, %v675
  %677 = vmatmul.bf16.gmra.mxu0 %v213
  %v678 = vpop.f32.mrf.mxu0
  %v679 = vadd.f32 %v250, %v678
  %v680 = vpop.f32.mrf.mxu0
  %v681 = vadd.f32 %v250, %v680
  %682 = vdwg.mxu0
  %683 = vmatpush.bf16.msra.mxu0 %v383
  %684 = vmatpush.bf16.msra.mxu0 %v379
  %685 = vmatpush.bf16.msra.mxu0 %v375
  %686 = vmatpush.bf16.msra.mxu0 %v371
  %687 = vmatpush.bf16.msra.mxu0 %v367
  %688 = vmatpush.bf16.msra.mxu0 %v363
  %689 = vmatpush.bf16.msra.mxu0 %v359
  %690 = vmatpush.bf16.msra.mxu0 %v355
  %691 = vmatmul.bf16.gmra.mxu0 %v198
  %v692 = vpop.f32.mrf.mxu0
  %v693 = vadd.f32 %v251, %v692
  %v694 = vpop.f32.mrf.mxu0
  %v695 = vadd.f32 %v251, %v694
  %696 = vmatmul.bf16.gmra.mxu0 %v199
  %v697 = vpop.f32.mrf.mxu0
  %v698 = vadd.f32 %v251, %v697
  %v699 = vpop.f32.mrf.mxu0
  %v700 = vadd.f32 %v251, %v699
  %701 = vmatmul.bf16.gmra.mxu0 %v200
  %v702 = vpop.f32.mrf.mxu0
  %v703 = vadd.f32 %v251, %v702
  %v704 = vpop.f32.mrf.mxu0
  %v705 = vadd.f32 %v251, %v704
  %706 = vmatmul.bf16.gmra.mxu0 %v201
  %v707 = vpop.f32.mrf.mxu0
  %v708 = vadd.f32 %v251, %v707
  %v709 = vpop.f32.mrf.mxu0
  %v710 = vadd.f32 %v251, %v709
  %711 = vmatmul.bf16.gmra.mxu0 %v202
  %v712 = vpop.f32.mrf.mxu0
  %v713 = vadd.f32 %v251, %v712
  %v714 = vpop.f32.mrf.mxu0
  %v715 = vadd.f32 %v251, %v714
  %716 = vmatmul.bf16.gmra.mxu0 %v203
  %v717 = vpop.f32.mrf.mxu0
  %v718 = vadd.f32 %v251, %v717
  %v719 = vpop.f32.mrf.mxu0
  %v720 = vadd.f32 %v251, %v719
  %721 = vmatmul.bf16.gmra.mxu0 %v204
  %v722 = vpop.f32.mrf.mxu0
  %v723 = vadd.f32 %v251, %v722
  %v724 = vpop.f32.mrf.mxu0
  %v725 = vadd.f32 %v251, %v724
  %726 = vmatmul.bf16.gmra.mxu0 %v205
  %v727 = vpop.f32.mrf.mxu0
  %v728 = vadd.f32 %v251, %v727
  %v729 = vpop.f32.mrf.mxu0
  %v730 = vadd.f32 %v251, %v729
  %731 = vmatmul.bf16.gmra.mxu0 %v206
  %v732 = vpop.f32.mrf.mxu0
  %v733 = vadd.f32 %v251, %v732
  %v734 = vpop.f32.mrf.mxu0
  %v735 = vadd.f32 %v251, %v734
  %736 = vmatmul.bf16.gmra.mxu0 %v207
  %v737 = vpop.f32.mrf.mxu0
  %v738 = vadd.f32 %v251, %v737
  %v739 = vpop.f32.mrf.mxu0
  %v740 = vadd.f32 %v251, %v739
  %741 = vmatmul.bf16.gmra.mxu0 %v208
  %v742 = vpop.f32.mrf.mxu0
  %v743 = vadd.f32 %v251, %v742
  %v744 = vpop.f32.mrf.mxu0
  %v745 = vadd.f32 %v251, %v744
  %746 = vmatmul.bf16.gmra.mxu0 %v209
  %v747 = vpop.f32.mrf.mxu0
  %v748 = vadd.f32 %v251, %v747
  %v749 = vpop.f32.mrf.mxu0
  %v750 = vadd.f32 %v251, %v749
  %751 = vmatmul.bf16.gmra.mxu0 %v210
  %v752 = vpop.f32.mrf.mxu0
  %v753 = vadd.f32 %v251, %v752
  %v754 = vpop.f32.mrf.mxu0
  %v755 = vadd.f32 %v251, %v754
  %756 = vmatmul.bf16.gmra.mxu0 %v211
  %v757 = vpop.f32.mrf.mxu0
  %v758 = vadd.f32 %v251, %v757
  %v759 = vpop.f32.mrf.mxu0
  %v760 = vadd.f32 %v251, %v759
  %761 = vmatmul.bf16.gmra.mxu0 %v212
  %v762 = vpop.f32.mrf.mxu0
  %v763 = vadd.f32 %v251, %v762
  %v764 = vpop.f32.mrf.mxu0
  %v765 = vadd.f32 %v251, %v764
  %766 = vmatmul.bf16.gmra.mxu0 %v213
  %v767 = vpop.f32.mrf.mxu0
  %v768 = vadd.f32 %v251, %v767
  %v769 = vpop.f32.mrf.mxu0
  %v770 = vadd.f32 %v251, %v769
  %771 = vdwg.mxu0
  %772 = vst [vmem:[%s6] sm:$0xff] %v426
  %773 = vst [vmem:[%s6 + $0x8] sm:$0xff] %v515
  %774 = vst [vmem:[%s6 + $0x10] sm:$0xff] %v428
  %775 = vst [vmem:[%s6 + $0x18] sm:$0xff] %v517
  %776 = vst [vmem:[%s6 + $0x20] sm:$0xff] %v431
  %777 = vst [vmem:[%s6 + $0x28] sm:$0xff] %v520
  %778 = vst [vmem:[%s6 + $0x30] sm:$0xff] %v433
  %779 = vst [vmem:[%s6 + $0x38] sm:$0xff] %v522
  %780 = vst [vmem:[%s6 + $0x40] sm:$0xff] %v436
  %781 = vst [vmem:[%s6 + $0x48] sm:$0xff] %v525
  %782 = vst [vmem:[%s6 + $0x50] sm:$0xff] %v438
  %783 = vst [vmem:[%s6 + $0x58] sm:$0xff] %v527
  %784 = vst [vmem:[%s6 + $0x60] sm:$0xff] %v441
  %785 = vst [vmem:[%s6 + $0x68] sm:$0xff] %v530
  %786 = vst [vmem:[%s6 + $0x70] sm:$0xff] %v443
  %787 = vst [vmem:[%s6 + $0x78] sm:$0xff] %v532
  %788 = vst [vmem:[%s6 + $0x80] sm:$0xff] %v446
  %789 = vst [vmem:[%s6 + $0x88] sm:$0xff] %v535
  %790 = vst [vmem:[%s6 + $0x90] sm:$0xff] %v448
  %791 = vst [vmem:[%s6 + $0x98] sm:$0xff] %v537
  %792 = vst [vmem:[%s6 + $0xa0] sm:$0xff] %v451
  %793 = vst [vmem:[%s6 + $0xa8] sm:$0xff] %v540
  %794 = vst [vmem:[%s6 + $0xb0] sm:$0xff] %v453
  %795 = vst [vmem:[%s6 + $0xb8] sm:$0xff] %v542
  %796 = vst [vmem:[%s6 + $0xc0] sm:$0xff] %v456
  %797 = vst [vmem:[%s6 + $0xc8] sm:$0xff] %v545
  %798 = vst [vmem:[%s6 + $0xd0] sm:$0xff] %v458
  %799 = vst [vmem:[%s6 + $0xd8] sm:$0xff] %v547
  %800 = vst [vmem:[%s6 + $0xe0] sm:$0xff] %v461
  %801 = vst [vmem:[%s6 + $0xe8] sm:$0xff] %v550
  %802 = vst [vmem:[%s6 + $0xf0] sm:$0xff] %v463
  %803 = vst [vmem:[%s6 + $0xf8] sm:$0xff] %v552
  %804 = vst [vmem:[%s6 + $0x100] sm:$0xff] %v466
  %805 = vst [vmem:[%s6 + $0x108] sm:$0xff] %v555
  %806 = vst [vmem:[%s6 + $0x110] sm:$0xff] %v468
  %807 = vst [vmem:[%s6 + $0x118] sm:$0xff] %v557
  %808 = vst [vmem:[%s6 + $0x120] sm:$0xff] %v471
  %809 = vst [vmem:[%s6 + $0x128] sm:$0xff] %v560
  %810 = vst [vmem:[%s6 + $0x130] sm:$0xff] %v473
  %811 = vst [vmem:[%s6 + $0x138] sm:$0xff] %v562
  %812 = vst [vmem:[%s6 + $0x140] sm:$0xff] %v476
  %813 = vst [vmem:[%s6 + $0x148] sm:$0xff] %v565
  %814 = vst [vmem:[%s6 + $0x150] sm:$0xff] %v478
  %815 = vst [vmem:[%s6 + $0x158] sm:$0xff] %v567
  %816 = vst [vmem:[%s6 + $0x160] sm:$0xff] %v481
  %817 = vst [vmem:[%s6 + $0x168] sm:$0xff] %v570
  %818 = vst [vmem:[%s6 + $0x170] sm:$0xff] %v483
  %819 = vst [vmem:[%s6 + $0x178] sm:$0xff] %v572
  %820 = vst [vmem:[%s6 + $0x180] sm:$0xff] %v486
  %821 = vst [vmem:[%s6 + $0x188] sm:$0xff] %v575
  %822 = vst [vmem:[%s6 + $0x190] sm:$0xff] %v488
  %823 = vst [vmem:[%s6 + $0x198] sm:$0xff] %v577
  %824 = vst [vmem:[%s6 + $0x1a0] sm:$0xff] %v491
  %825 = vst [vmem:[%s6 + $0x1a8] sm:$0xff] %v580
  %826 = vst [vmem:[%s6 + $0x1b0] sm:$0xff] %v493
  %827 = vst [vmem:[%s6 + $0x1b8] sm:$0xff] %v582
  %828 = vst [vmem:[%s6 + $0x1c0] sm:$0xff] %v496
  %829 = vst [vmem:[%s6 + $0x1c8] sm:$0xff] %v585
  %830 = vst [vmem:[%s6 + $0x1d0] sm:$0xff] %v498
  %831 = vst [vmem:[%s6 + $0x1d8] sm:$0xff] %v587
  %832 = vst [vmem:[%s6 + $0x1e0] sm:$0xff] %v501
  %833 = vst [vmem:[%s6 + $0x1e8] sm:$0xff] %v590
  %834 = vst [vmem:[%s6 + $0x1f0] sm:$0xff] %v503
  %835 = vst [vmem:[%s6 + $0x1f8] sm:$0xff] %v592
  %836 = vxpose.xlu0.b32.start [1/16] %v604, 128
  %837 = vxpose.xlu0.b32.cont [2/16] %v606, 128
  %838 = vxpose.xlu0.b32.cont [3/16] %v609, 128
  %839 = vxpose.xlu0.b32.cont [4/16] %v611, 128
  %840 = vxpose.xlu0.b32.cont [5/16] %v614, 128
  %841 = vxpose.xlu0.b32.cont [6/16] %v616, 128
  %842 = vxpose.xlu0.b32.cont [7/16] %v619, 128
  %843 = vxpose.xlu0.b32.cont [8/16] %v621, 128
  %844 = vxpose.xlu0.b32.cont [9/16] %v624, 128
  %845 = vxpose.xlu0.b32.cont [10/16] %v626, 128
  %846 = vxpose.xlu0.b32.cont [11/16] %v629, 128
  %847 = vxpose.xlu0.b32.cont [12/16] %v631, 128
  %848 = vxpose.xlu0.b32.cont [13/16] %v634, 128
  %849 = vxpose.xlu0.b32.cont [14/16] %v636, 128
  %850 = vxpose.xlu0.b32.cont [15/16] %v639, 128
  %851 = vxpose.xlu0.b32.end [16/16] %v641, 128
  %v852 = vpop.trf.xlu0
  %v853 = vpop.trf.xlu0
  %v854 = vpop.trf.xlu0
  %v855 = vpop.trf.xlu0
  %v856 = vpop.trf.xlu0
  %v857 = vpop.trf.xlu0
  %v858 = vpop.trf.xlu0
  %v859 = vpop.trf.xlu0
  %v860 = vpop.trf.xlu0
  %v861 = vpop.trf.xlu0
  %v862 = vpop.trf.xlu0
  %v863 = vpop.trf.xlu0
  %v864 = vpop.trf.xlu0
  %v865 = vpop.trf.xlu0
  %v866 = vpop.trf.xlu0
  %v867 = vpop.trf.xlu0
  %868 = vxpose.xlu0.b32.start [1/16] %v644, 128
  %869 = vxpose.xlu0.b32.cont [2/16] %v646, 128
  %870 = vxpose.xlu0.b32.cont [3/16] %v649, 128
  %871 = vxpose.xlu0.b32.cont [4/16] %v651, 128
  %872 = vxpose.xlu0.b32.cont [5/16] %v654, 128
  %873 = vxpose.xlu0.b32.cont [6/16] %v656, 128
  %874 = vxpose.xlu0.b32.cont [7/16] %v659, 128
  %875 = vxpose.xlu0.b32.cont [8/16] %v661, 128
  %876 = vxpose.xlu0.b32.cont [9/16] %v664, 128
  %877 = vxpose.xlu0.b32.cont [10/16] %v666, 128
  %878 = vxpose.xlu0.b32.cont [11/16] %v669, 128
  %879 = vxpose.xlu0.b32.cont [12/16] %v671, 128
  %880 = vxpose.xlu0.b32.cont [13/16] %v674, 128
  %881 = vxpose.xlu0.b32.cont [14/16] %v676, 128
  %882 = vxpose.xlu0.b32.cont [15/16] %v679, 128
  %883 = vxpose.xlu0.b32.end [16/16] %v681, 128
  %v884 = vpop.trf.xlu0
  %v885 = vpop.trf.xlu0
  %v886 = vpop.trf.xlu0
  %v887 = vpop.trf.xlu0
  %v888 = vpop.trf.xlu0
  %v889 = vpop.trf.xlu0
  %v890 = vpop.trf.xlu0
  %v891 = vpop.trf.xlu0
  %v892 = vpop.trf.xlu0
  %v893 = vpop.trf.xlu0
  %v894 = vpop.trf.xlu0
  %v895 = vpop.trf.xlu0
  %v896 = vpop.trf.xlu0
  %v897 = vpop.trf.xlu0
  %v898 = vpop.trf.xlu0
  %v899 = vpop.trf.xlu0
  %v900 = vpack.c.bf16 %v884, %v852
  %v901 = vpack.c.bf16 %v885, %v853
  %v902 = vpack.c.bf16 %v886, %v854
  %v903 = vpack.c.bf16 %v887, %v855
  %v904 = vpack.c.bf16 %v888, %v856
  %v905 = vpack.c.bf16 %v889, %v857
  %v906 = vpack.c.bf16 %v890, %v858
  %v907 = vpack.c.bf16 %v891, %v859
  %908 = vst [vmem:[%s7] sm:$0xff] %v900
  %909 = vst [vmem:[%s7 + $0x8] sm:$0xff] %v901
  %910 = vst [vmem:[%s7 + $0x10] sm:$0xff] %v902
  %911 = vst [vmem:[%s7 + $0x18] sm:$0xff] %v903
  %912 = vst [vmem:[%s7 + $0x20] sm:$0xff] %v904
  %913 = vst [vmem:[%s7 + $0x28] sm:$0xff] %v905
  %914 = vst [vmem:[%s7 + $0x30] sm:$0xff] %v906
  %915 = vst [vmem:[%s7 + $0x38] sm:$0xff] %v907
  %v916 = vpack.c.bf16 %v693, %v693
  %v917 = vpack.c.bf16 %v695, %v695
  %v918 = vpack.c.bf16 %v698, %v698
  %v919 = vpack.c.bf16 %v700, %v700
  %v920 = vpack.c.bf16 %v703, %v703
  %v921 = vpack.c.bf16 %v705, %v705
  %v922 = vpack.c.bf16 %v708, %v708
  %v923 = vpack.c.bf16 %v710, %v710
  %v924 = vpack.c.bf16 %v713, %v713
  %v925 = vpack.c.bf16 %v715, %v715
  %v926 = vpack.c.bf16 %v718, %v718
  %v927 = vpack.c.bf16 %v720, %v720
  %v928 = vpack.c.bf16 %v723, %v723
  %v929 = vpack.c.bf16 %v725, %v725
  %v930 = vpack.c.bf16 %v728, %v728
  %v931 = vpack.c.bf16 %v730, %v730
  %v932 = vpack.c.bf16 %v733, %v733
  %v933 = vpack.c.bf16 %v735, %v735
  %v934 = vpack.c.bf16 %v738, %v738
  %v935 = vpack.c.bf16 %v740, %v740
  %v936 = vpack.c.bf16 %v743, %v743
  %v937 = vpack.c.bf16 %v745, %v745
  %v938 = vpack.c.bf16 %v748, %v748
  %v939 = vpack.c.bf16 %v750, %v750
  %v940 = vpack.c.bf16 %v753, %v753
  %v941 = vpack.c.bf16 %v755, %v755
  %v942 = vpack.c.bf16 %v758, %v758
  %v943 = vpack.c.bf16 %v760, %v760
  %v944 = vpack.c.bf16 %v763, %v763
  %v945 = vpack.c.bf16 %v765, %v765
  %v946 = vpack.c.bf16 %v768, %v768
  %v947 = vpack.c.bf16 %v770, %v770
  %vm948 = vcmask 519168
  %949 = vst.msk [vmem:[%s8] sm:$0xf] %vm948, %v916
  %950 = vst.msk [vmem:[%s8 + $0x4] sm:$0xf] %vm948, %v917
  %951 = vst.msk [vmem:[%s8 + $0x8] sm:$0xf] %vm948, %v918
  %952 = vst.msk [vmem:[%s8 + $0xc] sm:$0xf] %vm948, %v919
  %953 = vst.msk [vmem:[%s8 + $0x10] sm:$0xf] %vm948, %v920
  %954 = vst.msk [vmem:[%s8 + $0x14] sm:$0xf] %vm948, %v921
  %955 = vst.msk [vmem:[%s8 + $0x18] sm:$0xf] %vm948, %v922
  %956 = vst.msk [vmem:[%s8 + $0x1c] sm:$0xf] %vm948, %v923
  %957 = vst.msk [vmem:[%s8 + $0x20] sm:$0xf] %vm948, %v924
  %958 = vst.msk [vmem:[%s8 + $0x24] sm:$0xf] %vm948, %v925
  %959 = vst.msk [vmem:[%s8 + $0x28] sm:$0xf] %vm948, %v926
  %960 = vst.msk [vmem:[%s8 + $0x2c] sm:$0xf] %vm948, %v927
  %961 = vst.msk [vmem:[%s8 + $0x30] sm:$0xf] %vm948, %v928
  %962 = vst.msk [vmem:[%s8 + $0x34] sm:$0xf] %vm948, %v929
  %963 = vst.msk [vmem:[%s8 + $0x38] sm:$0xf] %vm948, %v930
  %964 = vst.msk [vmem:[%s8 + $0x3c] sm:$0xf] %vm948, %v931
  %965 = vst.msk [vmem:[%s8 + $0x40] sm:$0xf] %vm948, %v932
  %966 = vst.msk [vmem:[%s8 + $0x44] sm:$0xf] %vm948, %v933
  %967 = vst.msk [vmem:[%s8 + $0x48] sm:$0xf] %vm948, %v934
  %968 = vst.msk [vmem:[%s8 + $0x4c] sm:$0xf] %vm948, %v935
  %969 = vst.msk [vmem:[%s8 + $0x50] sm:$0xf] %vm948, %v936
  %970 = vst.msk [vmem:[%s8 + $0x54] sm:$0xf] %vm948, %v937
  %971 = vst.msk [vmem:[%s8 + $0x58] sm:$0xf] %vm948, %v938
  %972 = vst.msk [vmem:[%s8 + $0x5c] sm:$0xf] %vm948, %v939
  %973 = vst.msk [vmem:[%s8 + $0x60] sm:$0xf] %vm948, %v940
  %974 = vst.msk [vmem:[%s8 + $0x64] sm:$0xf] %vm948, %v941
  %975 = vst.msk [vmem:[%s8 + $0x68] sm:$0xf] %vm948, %v942
  %976 = vst.msk [vmem:[%s8 + $0x6c] sm:$0xf] %vm948, %v943
  %977 = vst.msk [vmem:[%s8 + $0x70] sm:$0xf] %vm948, %v944
  %978 = vst.msk [vmem:[%s8 + $0x74] sm:$0xf] %vm948, %v945
  %979 = vst.msk [vmem:[%s8 + $0x78] sm:$0xf] %vm948, %v946
  %980 = vst.msk [vmem:[%s8 + $0x7c] sm:$0xf] %vm948, %v947
  %1013 = vrot.lane.b32.xlu0 %v604, 64
  %v1014 = vpop.permute.xlu0 %1013
  %1015 = vrot.lane.b32.xlu0 %v606, 64
  %v1016 = vpop.permute.xlu0 %1015
  %1017 = vrot.lane.b32.xlu0 %v609, 64
  %v1018 = vpop.permute.xlu0 %1017
  %1019 = vrot.lane.b32.xlu0 %v611, 64
  %v1020 = vpop.permute.xlu0 %1019
  %1021 = vrot.lane.b32.xlu0 %v614, 64
  %v1022 = vpop.permute.xlu0 %1021
  %1023 = vrot.lane.b32.xlu0 %v616, 64
  %v1024 = vpop.permute.xlu0 %1023
  %1025 = vrot.lane.b32.xlu0 %v619, 64
  %v1026 = vpop.permute.xlu0 %1025
  %1027 = vrot.lane.b32.xlu0 %v621, 64
  %v1028 = vpop.permute.xlu0 %1027
  %1029 = vrot.lane.b32.xlu0 %v624, 64
  %v1030 = vpop.permute.xlu0 %1029
  %1031 = vrot.lane.b32.xlu0 %v626, 64
  %v1032 = vpop.permute.xlu0 %1031
  %1033 = vrot.lane.b32.xlu0 %v629, 64
  %v1034 = vpop.permute.xlu0 %1033
  %1035 = vrot.lane.b32.xlu0 %v631, 64
  %v1036 = vpop.permute.xlu0 %1035
  %1037 = vrot.lane.b32.xlu0 %v634, 64
  %v1038 = vpop.permute.xlu0 %1037
  %1039 = vrot.lane.b32.xlu0 %v636, 64
  %v1040 = vpop.permute.xlu0 %1039
  %1041 = vrot.lane.b32.xlu0 %v639, 64
  %v1042 = vpop.permute.xlu0 %1041
  %1043 = vrot.lane.b32.xlu0 %v641, 64
  %v1044 = vpop.permute.xlu0 %1043
  %1045 = vrot.lane.b32.xlu0 %v644, 64
  %v1046 = vpop.permute.xlu0 %1045
  %1047 = vrot.lane.b32.xlu0 %v646, 64
  %v1048 = vpop.permute.xlu0 %1047
  %1049 = vrot.lane.b32.xlu0 %v649, 64
  %v1050 = vpop.permute.xlu0 %1049
  %1051 = vrot.lane.b32.xlu0 %v651, 64
  %v1052 = vpop.permute.xlu0 %1051
  %1053 = vrot.lane.b32.xlu0 %v654, 64
  %v1054 = vpop.permute.xlu0 %1053
  %1055 = vrot.lane.b32.xlu0 %v656, 64
  %v1056 = vpop.permute.xlu0 %1055
  %1057 = vrot.lane.b32.xlu0 %v659, 64
  %v1058 = vpop.permute.xlu0 %1057
  %1059 = vrot.lane.b32.xlu0 %v661, 64
  %v1060 = vpop.permute.xlu0 %1059
  %1061 = vrot.lane.b32.xlu0 %v664, 64
  %v1062 = vpop.permute.xlu0 %1061
  %1063 = vrot.lane.b32.xlu0 %v666, 64
  %v1064 = vpop.permute.xlu0 %1063
  %1065 = vrot.lane.b32.xlu0 %v669, 64
  %v1066 = vpop.permute.xlu0 %1065
  %1067 = vrot.lane.b32.xlu0 %v671, 64
  %v1068 = vpop.permute.xlu0 %1067
  %1069 = vrot.lane.b32.xlu0 %v674, 64
  %v1070 = vpop.permute.xlu0 %1069
  %1071 = vrot.lane.b32.xlu0 %v676, 64
  %v1072 = vpop.permute.xlu0 %1071
  %1073 = vrot.lane.b32.xlu0 %v679, 64
  %v1074 = vpop.permute.xlu0 %1073
  %1075 = vrot.lane.b32.xlu0 %v681, 64
  %v1076 = vpop.permute.xlu0 %1075
  %1109 = vxpose.xlu0.b32.start [1/16] %v1014, 128
  %1110 = vxpose.xlu0.b32.cont [2/16] %v1016, 128
  %1111 = vxpose.xlu0.b32.cont [3/16] %v1018, 128
  %1112 = vxpose.xlu0.b32.cont [4/16] %v1020, 128
  %1113 = vxpose.xlu0.b32.cont [5/16] %v1022, 128
  %1114 = vxpose.xlu0.b32.cont [6/16] %v1024, 128
  %1115 = vxpose.xlu0.b32.cont [7/16] %v1026, 128
  %1116 = vxpose.xlu0.b32.cont [8/16] %v1028, 128
  %1117 = vxpose.xlu0.b32.cont [9/16] %v1030, 128
  %1118 = vxpose.xlu0.b32.cont [10/16] %v1032, 128
  %1119 = vxpose.xlu0.b32.cont [11/16] %v1034, 128
  %1120 = vxpose.xlu0.b32.cont [12/16] %v1036, 128
  %1121 = vxpose.xlu0.b32.cont [13/16] %v1038, 128
  %1122 = vxpose.xlu0.b32.cont [14/16] %v1040, 128
  %1123 = vxpose.xlu0.b32.cont [15/16] %v1042, 128
  %1124 = vxpose.xlu0.b32.end [16/16] %v1044, 128
  %v1125 = vpop.trf.xlu0
  %v1126 = vpop.trf.xlu0
  %v1127 = vpop.trf.xlu0
  %v1128 = vpop.trf.xlu0
  %v1129 = vpop.trf.xlu0
  %v1130 = vpop.trf.xlu0
  %v1131 = vpop.trf.xlu0
  %v1132 = vpop.trf.xlu0
  %v1133 = vpop.trf.xlu0
  %v1134 = vpop.trf.xlu0
  %v1135 = vpop.trf.xlu0
  %v1136 = vpop.trf.xlu0
  %v1137 = vpop.trf.xlu0
  %v1138 = vpop.trf.xlu0
  %v1139 = vpop.trf.xlu0
  %v1140 = vpop.trf.xlu0
  %1141 = vxpose.xlu0.b32.start [1/16] %v1046, 128
  %1142 = vxpose.xlu0.b32.cont [2/16] %v1048, 128
  %1143 = vxpose.xlu0.b32.cont [3/16] %v1050, 128
  %1144 = vxpose.xlu0.b32.cont [4/16] %v1052, 128
  %1145 = vxpose.xlu0.b32.cont [5/16] %v1054, 128
  %1146 = vxpose.xlu0.b32.cont [6/16] %v1056, 128
  %1147 = vxpose.xlu0.b32.cont [7/16] %v1058, 128
  %1148 = vxpose.xlu0.b32.cont [8/16] %v1060, 128
  %1149 = vxpose.xlu0.b32.cont [9/16] %v1062, 128
  %1150 = vxpose.xlu0.b32.cont [10/16] %v1064, 128
  %1151 = vxpose.xlu0.b32.cont [11/16] %v1066, 128
  %1152 = vxpose.xlu0.b32.cont [12/16] %v1068, 128
  %1153 = vxpose.xlu0.b32.cont [13/16] %v1070, 128
  %1154 = vxpose.xlu0.b32.cont [14/16] %v1072, 128
  %1155 = vxpose.xlu0.b32.cont [15/16] %v1074, 128
  %1156 = vxpose.xlu0.b32.end [16/16] %v1076, 128
  %v1157 = vpop.trf.xlu0
  %v1158 = vpop.trf.xlu0
  %v1159 = vpop.trf.xlu0
  %v1160 = vpop.trf.xlu0
  %v1161 = vpop.trf.xlu0
  %v1162 = vpop.trf.xlu0
  %v1163 = vpop.trf.xlu0
  %v1164 = vpop.trf.xlu0
  %v1165 = vpop.trf.xlu0
  %v1166 = vpop.trf.xlu0
  %v1167 = vpop.trf.xlu0
  %v1168 = vpop.trf.xlu0
  %v1169 = vpop.trf.xlu0
  %v1170 = vpop.trf.xlu0
  %v1171 = vpop.trf.xlu0
  %v1172 = vpop.trf.xlu0
  %v1173 = vpack.c.bf16 %v1157, %v1125
  %v1174 = vpack.c.bf16 %v1158, %v1126
  %v1175 = vpack.c.bf16 %v1159, %v1127
  %v1176 = vpack.c.bf16 %v1160, %v1128
  %v1177 = vpack.c.bf16 %v1161, %v1129
  %v1178 = vpack.c.bf16 %v1162, %v1130
  %v1179 = vpack.c.bf16 %v1163, %v1131
  %v1180 = vpack.c.bf16 %v1164, %v1132
  %s1181 = scalar_lea.vmem %s7, 64
  %1182 = vst [vmem:[%s1181] sm:$0xff] %v1173
  %1183 = vst [vmem:[%s1181 + $0x8] sm:$0xff] %v1174
  %1184 = vst [vmem:[%s1181 + $0x10] sm:$0xff] %v1175
  %1185 = vst [vmem:[%s1181 + $0x18] sm:$0xff] %v1176
  %1186 = vst [vmem:[%s1181 + $0x20] sm:$0xff] %v1177
  %1187 = vst [vmem:[%s1181 + $0x28] sm:$0xff] %v1178
  %1188 = vst [vmem:[%s1181 + $0x30] sm:$0xff] %v1179
  %1189 = vst [vmem:[%s1181 + $0x38] sm:$0xff] %v1180
  %1222 = vrot.lane.b32.xlu0 %v916, 64
  %v1223 = vpop.permute.xlu0 %1222
  %1224 = vrot.lane.b32.xlu0 %v917, 64
  %v1225 = vpop.permute.xlu0 %1224
  %1226 = vrot.lane.b32.xlu0 %v918, 64
  %v1227 = vpop.permute.xlu0 %1226
  %1228 = vrot.lane.b32.xlu0 %v919, 64
  %v1229 = vpop.permute.xlu0 %1228
  %1230 = vrot.lane.b32.xlu0 %v920, 64
  %v1231 = vpop.permute.xlu0 %1230
  %1232 = vrot.lane.b32.xlu0 %v921, 64
  %v1233 = vpop.permute.xlu0 %1232
  %1234 = vrot.lane.b32.xlu0 %v922, 64
  %v1235 = vpop.permute.xlu0 %1234
  %1236 = vrot.lane.b32.xlu0 %v923, 64
  %v1237 = vpop.permute.xlu0 %1236
  %1238 = vrot.lane.b32.xlu0 %v924, 64
  %v1239 = vpop.permute.xlu0 %1238
  %1240 = vrot.lane.b32.xlu0 %v925, 64
  %v1241 = vpop.permute.xlu0 %1240
  %1242 = vrot.lane.b32.xlu0 %v926, 64
  %v1243 = vpop.permute.xlu0 %1242
  %1244 = vrot.lane.b32.xlu0 %v927, 64
  %v1245 = vpop.permute.xlu0 %1244
  %1246 = vrot.lane.b32.xlu0 %v928, 64
  %v1247 = vpop.permute.xlu0 %1246
  %1248 = vrot.lane.b32.xlu0 %v929, 64
  %v1249 = vpop.permute.xlu0 %1248
  %1250 = vrot.lane.b32.xlu0 %v930, 64
  %v1251 = vpop.permute.xlu0 %1250
  %1252 = vrot.lane.b32.xlu0 %v931, 64
  %v1253 = vpop.permute.xlu0 %1252
  %1254 = vrot.lane.b32.xlu0 %v932, 64
  %v1255 = vpop.permute.xlu0 %1254
  %1256 = vrot.lane.b32.xlu0 %v933, 64
  %v1257 = vpop.permute.xlu0 %1256
  %1258 = vrot.lane.b32.xlu0 %v934, 64
  %v1259 = vpop.permute.xlu0 %1258
  %1260 = vrot.lane.b32.xlu0 %v935, 64
  %v1261 = vpop.permute.xlu0 %1260
  %1262 = vrot.lane.b32.xlu0 %v936, 64
  %v1263 = vpop.permute.xlu0 %1262
  %1264 = vrot.lane.b32.xlu0 %v937, 64
  %v1265 = vpop.permute.xlu0 %1264
  %1266 = vrot.lane.b32.xlu0 %v938, 64
  %v1267 = vpop.permute.xlu0 %1266
  %1268 = vrot.lane.b32.xlu0 %v939, 64
  %v1269 = vpop.permute.xlu0 %1268
  %1270 = vrot.lane.b32.xlu0 %v940, 64
  %v1271 = vpop.permute.xlu0 %1270
  %1272 = vrot.lane.b32.xlu0 %v941, 64
  %v1273 = vpop.permute.xlu0 %1272
  %1274 = vrot.lane.b32.xlu0 %v942, 64
  %v1275 = vpop.permute.xlu0 %1274
  %1276 = vrot.lane.b32.xlu0 %v943, 64
  %v1277 = vpop.permute.xlu0 %1276
  %1278 = vrot.lane.b32.xlu0 %v944, 64
  %v1279 = vpop.permute.xlu0 %1278
  %1280 = vrot.lane.b32.xlu0 %v945, 64
  %v1281 = vpop.permute.xlu0 %1280
  %1282 = vrot.lane.b32.xlu0 %v946, 64
  %v1283 = vpop.permute.xlu0 %1282
  %1284 = vrot.lane.b32.xlu0 %v947, 64
  %v1285 = vpop.permute.xlu0 %1284
  %s1318 = scalar_lea.vmem %s8, 128
  %1319 = vst.msk [vmem:[%s1318] sm:$0xf] %vm948, %v1223
  %1320 = vst.msk [vmem:[%s1318 + $0x4] sm:$0xf] %vm948, %v1225
  %1321 = vst.msk [vmem:[%s1318 + $0x8] sm:$0xf] %vm948, %v1227
  %1322 = vst.msk [vmem:[%s1318 + $0xc] sm:$0xf] %vm948, %v1229
  %1323 = vst.msk [vmem:[%s1318 + $0x10] sm:$0xf] %vm948, %v1231
  %1324 = vst.msk [vmem:[%s1318 + $0x14] sm:$0xf] %vm948, %v1233
  %1325 = vst.msk [vmem:[%s1318 + $0x18] sm:$0xf] %vm948, %v1235
  %1326 = vst.msk [vmem:[%s1318 + $0x1c] sm:$0xf] %vm948, %v1237
  %1327 = vst.msk [vmem:[%s1318 + $0x20] sm:$0xf] %vm948, %v1239
  %1328 = vst.msk [vmem:[%s1318 + $0x24] sm:$0xf] %vm948, %v1241
  %1329 = vst.msk [vmem:[%s1318 + $0x28] sm:$0xf] %vm948, %v1243
  %1330 = vst.msk [vmem:[%s1318 + $0x2c] sm:$0xf] %vm948, %v1245
  %1331 = vst.msk [vmem:[%s1318 + $0x30] sm:$0xf] %vm948, %v1247
  %1332 = vst.msk [vmem:[%s1318 + $0x34] sm:$0xf] %vm948, %v1249
  %1333 = vst.msk [vmem:[%s1318 + $0x38] sm:$0xf] %vm948, %v1251
  %1334 = vst.msk [vmem:[%s1318 + $0x3c] sm:$0xf] %vm948, %v1253
  %1335 = vst.msk [vmem:[%s1318 + $0x40] sm:$0xf] %vm948, %v1255
  %1336 = vst.msk [vmem:[%s1318 + $0x44] sm:$0xf] %vm948, %v1257
  %1337 = vst.msk [vmem:[%s1318 + $0x48] sm:$0xf] %vm948, %v1259
  %1338 = vst.msk [vmem:[%s1318 + $0x4c] sm:$0xf] %vm948, %v1261
  %1339 = vst.msk [vmem:[%s1318 + $0x50] sm:$0xf] %vm948, %v1263
  %1340 = vst.msk [vmem:[%s1318 + $0x54] sm:$0xf] %vm948, %v1265
  %1341 = vst.msk [vmem:[%s1318 + $0x58] sm:$0xf] %vm948, %v1267
  %1342 = vst.msk [vmem:[%s1318 + $0x5c] sm:$0xf] %vm948, %v1269
  %1343 = vst.msk [vmem:[%s1318 + $0x60] sm:$0xf] %vm948, %v1271
  %1344 = vst.msk [vmem:[%s1318 + $0x64] sm:$0xf] %vm948, %v1273
  %1345 = vst.msk [vmem:[%s1318 + $0x68] sm:$0xf] %vm948, %v1275
  %1346 = vst.msk [vmem:[%s1318 + $0x6c] sm:$0xf] %vm948, %v1277
  %1347 = vst.msk [vmem:[%s1318 + $0x70] sm:$0xf] %vm948, %v1279
  %1348 = vst.msk [vmem:[%s1318 + $0x74] sm:$0xf] %vm948, %v1281
  %1349 = vst.msk [vmem:[%s1318 + $0x78] sm:$0xf] %vm948, %v1283
  %1350 = vst.msk [vmem:[%s1318 + $0x7c] sm:$0xf] %vm948, %v1285
  // Predicated region
  $region26: #{_lambda_.12} parent=0 // pred_check
    _
  $region27: #{_lambda_.12} parent=0 // pred_check_branch
    %1352 = sbr.rel (0) target = $region29
  $region28: #{_lambda_.12} parent=0 // pred_region
    _
  $region29: #{_lambda_.12} parent=0 // pred_fallthru
    _
  // Predicated region
  $region30: #{_lambda_.12} parent=0 // pred_check
    _
  $region31: #{_lambda_.12} parent=0 // pred_check_branch
    %1354 = sbr.rel (0) target = $region33
  $region32: #{_lambda_.12} parent=0 // pred_region
    _
  $region33: #{_lambda_.12} parent=0 // pred_fallthru
    _
  // Predicated region
  $region34: #{_lambda_.12} parent=0 // pred_check
    _
  $region35: #{_lambda_.12} parent=0 // pred_check_branch
    %1356 = sbr.rel (0) target = $region37
  $region36: #{_lambda_.12} parent=0 // pred_region
    _
  $region37: #{_lambda_.12} parent=0 // pred_fallthru
    _
  // Predicated region
  $region38: #{_lambda_.12} parent=0 // pred_check
    _
  $region39: #{_lambda_.12} parent=0 // pred_check_branch
    %1358 = sbr.rel (0) target = $region41
  $region40: #{_lambda_.12} parent=0 // pred_region
    _
  $region41: #{_lambda_.12} parent=0 // pred_fallthru
    _
  // Predicated region
  $region42: #{_lambda_.12} parent=0 // pred_check
    _
  $region43: #{_lambda_.12} parent=0 // pred_check_branch
    %1360 = sbr.rel (0) target = $region45
  $region44: #{_lambda_.12} parent=0 // pred_region
    _
  $region45: #{_lambda_.12} parent=0 // pred_fallthru
    _
  // Predicated region
  $region46: #{_lambda_.12} parent=0 // pred_check
    _
  $region47: #{_lambda_.12} parent=0 // pred_check_branch
    %1362 = sbr.rel (0) target = $region49
  $region48: #{_lambda_.12} parent=0 // pred_region
    _
  $region49: #{_lambda_.12} parent=0 // pred_fallthru
    _

// kernel: _lambda_.11
$region0: #{_lambda_.11}
  #allocation0 [shape = 'u32[]', space=smem, size = 0x4, offset = 0x4, fixed_abs, tag = 'smem constant byte address 0x4 - core index']
  #allocation1 [shape = 'u32[72,128]{1,0:T(1,128)}', space=vmem, size = 0x9000, scoped, tag = 'internal scratch']
  %s0 = inlined_call_operand.vmem [shape: f32[256,256], index: 0, kind: input, shape index: {}]
  %s1 = inlined_call_operand.vmem [shape: bf16[2,64,256], index: 1, kind: input, shape index: {}]
  %s2 = inlined_call_operand.vmem [shape: bf16[2,256,64], index: 2, kind: input, shape index: {}]
  %s3 = inlined_call_operand.vmem [shape: bf16[256,256], index: 3, kind: input, shape index: {}]
  %s4 = inlined_call_operand.vmem [shape: f32[1,128], index: 4, kind: input, shape index: {}]
  %s5 = inlined_call_operand.vmem [shape: bf16[128,128], index: 5, kind: input, shape index: {}]
  %s6 = inlined_call_operand.vmem [shape: f32[256,128], index: 6, kind: output, shape index: {0}]
  %s7 = inlined_call_operand.vmem [shape: f32[2,2,128], index: 7, kind: output, shape index: {1}]
  %8 = xla_tuple %s6, %s7
  %s9 = sld [smem:[#allocation0]]
  $region65: #{_lambda_.11} parent=0
    _
  %s11 = ssub.s32 1, %s9
  %s12 = scalar_select 0, %s11, %s9
  loop: start=0, step=1, limit=4
  $region2: #{_lambda_.11} parent=0 // loop_pre_header
    _
  $region3: #{_lambda_.11} parent=0 // loop_header
    %s14 = sphi 0, %s18
    %p15 = scmp.ge.s32.totalorder %s14, 4
    %s24 = sphi 0, %s26
    %s27 = sphi 0, %s24
    %s28 = sphi 0, %s27
    %s44 = sphi 0, %s28
    %s48 = sphi 0, %s48
    %s50 = sphi 0, %s48
    %s51 = sphi 0, %s50
    %s65 = sphi 0, %s51
    %s69 = sphi 0, %s69
    %s71 = sphi 0, %s69
    %s72 = sphi 0, %s71
    %s86 = sphi 0, %s72
    %s92 = sphi 0, %s94
    %s95 = sphi 0, %s92
    %s96 = sphi 0, %s95
    %s112 = sphi 0, %s96
    %s116 = sphi 0, %s116
    %s118 = sphi 0, %s116
    %s119 = sphi 0, %s118
    %s133 = sphi 0, %s119
    %s137 = sphi 0, %s137
    %s139 = sphi 0, %s137
    %s140 = sphi 0, %s139
    %s154 = sphi 0, %s140
    %s160 = sphi 0, %s162
    %s163 = sphi 0, %s160
    %s164 = sphi 0, %s163
    %s180 = sphi 0, %s164
    %s186 = sphi 0, %s188
    %s189 = sphi 0, %s186
    %s190 = sphi 0, %s189
    %s206 = sphi 0, %s190
  $region4: #{_lambda_.11} parent=0 // loop_header_branch
    %17 = sbr.rel (%p15) target = $region8
  $region5: #{_lambda_.11} parent=0 // loop_body
    %s19 = ssub.s32 %s14, 1
    %s20 = ssub.s32 %s14, 2
    %s21 = sadd.s32 %s14, 1
    %s22 = ssub.s32 %s14, %s21
    %p23 = scmp.eq.s32.totalorder %s22, 0
    %s25 = sadd.s32 %s24, 1
    %s26 = scalar_select %p23, %s24, %s25
    %p29 = pneg %p23
    %p30 = scmp.eq.s32.totalorder %s14, 1
    %p31 = por %p29, %p30
    %p32 = scmp.ne.s32.totalorder %s24, %s27
    %p33 = scmp.eq.s32.totalorder %s14, 0
    %p34 = por %p32, %p33
    %p35 = scmp.ne.s32.totalorder %s24, %s27
    %p36 = scmp.eq.s32.totalorder %s19, 1
    %p37 = por %p35, %p36
    %p38 = scmp.ne.s32.totalorder %s27, %s28
    %p39 = scmp.eq.s32.totalorder %s19, 0
    %p40 = por %p38, %p39
    %p41 = scmp.ne.s32.totalorder %s27, %s28
    %p42 = scmp.eq.s32.totalorder %s20, 1
    %p43 = por %p41, %p42
    %p45 = scmp.ne.s32.totalorder %s28, %s44
    %p46 = scmp.eq.s32.totalorder %s20, 0
    %p47 = por %p45, %p46
    %s49 = sadd.s32 %s48, 1
    %p52 = scmp.eq.s32.totalorder %s14, 1
    %p53 = scmp.ne.s32.totalorder %s48, %s50
    %p54 = scmp.eq.s32.totalorder %s14, 0
    %p55 = por %p53, %p54
    %p56 = scmp.ne.s32.totalorder %s48, %s50
    %p57 = scmp.eq.s32.totalorder %s19, 1
    %p58 = por %p56, %p57
    %p59 = scmp.ne.s32.totalorder %s50, %s51
    %p60 = scmp.eq.s32.totalorder %s19, 0
    %p61 = por %p59, %p60
    %p62 = scmp.ne.s32.totalorder %s50, %s51
    %p63 = scmp.eq.s32.totalorder %s20, 1
    %p64 = por %p62, %p63
    %p66 = scmp.ne.s32.totalorder %s51, %s65
    %p67 = scmp.eq.s32.totalorder %s20, 0
    %p68 = por %p66, %p67
    %s70 = sadd.s32 %s69, 1
    %p73 = scmp.eq.s32.totalorder %s14, 1
    %p74 = scmp.ne.s32.totalorder %s69, %s71
    %p75 = scmp.eq.s32.totalorder %s14, 0
    %p76 = por %p74, %p75
    %p77 = scmp.ne.s32.totalorder %s69, %s71
    %p78 = scmp.eq.s32.totalorder %s19, 1
    %p79 = por %p77, %p78
    %p80 = scmp.ne.s32.totalorder %s71, %s72
    %p81 = scmp.eq.s32.totalorder %s19, 0
    %p82 = por %p80, %p81
    %p83 = scmp.ne.s32.totalorder %s71, %s72
    %p84 = scmp.eq.s32.totalorder %s20, 1
    %p85 = por %p83, %p84
    %p87 = scmp.ne.s32.totalorder %s72, %s86
    %p88 = scmp.eq.s32.totalorder %s20, 0
    %p89 = por %p87, %p88
    %s90 = ssub.s32 %s14, %s21
    %p91 = scmp.eq.s32.totalorder %s90, 0
    %s93 = sadd.s32 %s92, 1
    %s94 = scalar_select %p91, %s92, %s93
    %p97 = pneg %p91
    %p98 = scmp.eq.s32.totalorder %s14, 1
    %p99 = por %p97, %p98
    %p100 = scmp.ne.s32.totalorder %s92, %s95
    %p101 = scmp.eq.s32.totalorder %s14, 0
    %p102 = por %p100, %p101
    %p103 = scmp.ne.s32.totalorder %s92, %s95
    %p104 = scmp.eq.s32.totalorder %s19, 1
    %p105 = por %p103, %p104
    %p106 = scmp.ne.s32.totalorder %s95, %s96
    %p107 = scmp.eq.s32.totalorder %s19, 0
    %p108 = por %p106, %p107
    %p109 = scmp.ne.s32.totalorder %s95, %s96
    %p110 = scmp.eq.s32.totalorder %s20, 1
    %p111 = por %p109, %p110
    %p113 = scmp.ne.s32.totalorder %s96, %s112
    %p114 = scmp.eq.s32.totalorder %s20, 0
    %p115 = por %p113, %p114
    %s117 = sadd.s32 %s116, 1
    %p120 = scmp.eq.s32.totalorder %s14, 1
    %p121 = scmp.ne.s32.totalorder %s116, %s118
    %p122 = scmp.eq.s32.totalorder %s14, 0
    %p123 = por %p121, %p122
    %p124 = scmp.ne.s32.totalorder %s116, %s118
    %p125 = scmp.eq.s32.totalorder %s19, 1
    %p126 = por %p124, %p125
    %p127 = scmp.ne.s32.totalorder %s118, %s119
    %p128 = scmp.eq.s32.totalorder %s19, 0
    %p129 = por %p127, %p128
    %p130 = scmp.ne.s32.totalorder %s118, %s119
    %p131 = scmp.eq.s32.totalorder %s20, 1
    %p132 = por %p130, %p131
    %p134 = scmp.ne.s32.totalorder %s119, %s133
    %p135 = scmp.eq.s32.totalorder %s20, 0
    %p136 = por %p134, %p135
    %s138 = sadd.s32 %s137, 1
    %p141 = scmp.eq.s32.totalorder %s14, 1
    %p142 = scmp.ne.s32.totalorder %s137, %s139
    %p143 = scmp.eq.s32.totalorder %s14, 0
    %p144 = por %p142, %p143
    %p145 = scmp.ne.s32.totalorder %s137, %s139
    %p146 = scmp.eq.s32.totalorder %s19, 1
    %p147 = por %p145, %p146
    %p148 = scmp.ne.s32.totalorder %s139, %s140
    %p149 = scmp.eq.s32.totalorder %s19, 0
    %p150 = por %p148, %p149
    %p151 = scmp.ne.s32.totalorder %s139, %s140
    %p152 = scmp.eq.s32.totalorder %s20, 1
    %p153 = por %p151, %p152
    %p155 = scmp.ne.s32.totalorder %s140, %s154
    %p156 = scmp.eq.s32.totalorder %s20, 0
    %p157 = por %p155, %p156
    %s158 = ssub.s32 %s14, %s21
    %p159 = scmp.eq.s32.totalorder %s158, 0
    %s161 = sadd.s32 %s160, 1
    %s162 = scalar_select %p159, %s160, %s161
    %p165 = pneg %p159
    %p166 = scmp.eq.s32.totalorder %s14, 1
    %p167 = por %p165, %p166
    %p168 = scmp.ne.s32.totalorder %s160, %s163
    %p169 = scmp.eq.s32.totalorder %s14, 0
    %p170 = por %p168, %p169
    %p171 = scmp.ne.s32.totalorder %s160, %s163
    %p172 = scmp.eq.s32.totalorder %s19, 1
    %p173 = por %p171, %p172
    %p174 = scmp.ne.s32.totalorder %s163, %s164
    %p175 = scmp.eq.s32.totalorder %s19, 0
    %p176 = por %p174, %p175
    %p177 = scmp.ne.s32.totalorder %s163, %s164
    %p178 = scmp.eq.s32.totalorder %s20, 1
    %p179 = por %p177, %p178
    %p181 = scmp.ne.s32.totalorder %s164, %s180
    %p182 = scmp.eq.s32.totalorder %s20, 0
    %p183 = por %p181, %p182
    %s184 = ssub.s32 %s14, %s21
    %p185 = scmp.eq.s32.totalorder %s184, 0
    %s187 = sadd.s32 %s186, 1
    %s188 = scalar_select %p185, %s186, %s187
    %p191 = pneg %p185
    %p192 = scmp.eq.s32.totalorder %s14, 1
    %p193 = por %p191, %p192
    %p194 = scmp.ne.s32.totalorder %s186, %s189
    %p195 = scmp.eq.s32.totalorder %s14, 0
    %p196 = por %p194, %p195
    %p197 = scmp.ne.s32.totalorder %s186, %s189
    %p198 = scmp.eq.s32.totalorder %s19, 1
    %p199 = por %p197, %p198
    %p200 = scmp.ne.s32.totalorder %s189, %s190
    %p201 = scmp.eq.s32.totalorder %s19, 0
    %p202 = por %p200, %p201
    %p203 = scmp.ne.s32.totalorder %s189, %s190
    %p204 = scmp.eq.s32.totalorder %s20, 1
    %p205 = por %p203, %p204
    %p207 = scmp.ne.s32.totalorder %s190, %s206
    %p208 = scmp.eq.s32.totalorder %s20, 0
    %p209 = por %p207, %p208
    %p210 = scmp.le.s32.totalorder 1, %s14
    %p211 = scmp.lt.s32.totalorder %s14, 3
    %p212 = pnand %p210, %p211
    %p213 = pneg %p212
    // Predicated region
    $region9: #{_lambda_.11} parent=5 // pred_check
      _
    $region10: #{_lambda_.11} parent=5 // pred_check_branch
      %215 = sbr.rel (%p212) target = $region12
    $region11: #{_lambda_.11} parent=5 // pred_region
      %s216 = ssub.s32 %s14, 1
      // Predicated region
      $region13: #{_lambda_.11} parent=11 // pred_check
        %p217 = pneg %p61
      $region14: #{_lambda_.11} parent=11 // pred_check_branch
        %219 = sbr.rel (%p217) target = $region16
      $region15: #{_lambda_.11} parent=11 // pred_region
        _
      $region16: #{_lambda_.11} parent=11 // pred_fallthru
        _
      // Predicated region
      $region17: #{_lambda_.11} parent=11 // pred_check
        %p220 = pneg %p82
      $region18: #{_lambda_.11} parent=11 // pred_check_branch
        %222 = sbr.rel (%p220) target = $region20
      $region19: #{_lambda_.11} parent=11 // pred_region
        _
      $region20: #{_lambda_.11} parent=11 // pred_fallthru
        _
      // Predicated region
      $region21: #{_lambda_.11} parent=11 // pred_check
        %p223 = pneg %p129
      $region22: #{_lambda_.11} parent=11 // pred_check_branch
        %225 = sbr.rel (%p223) target = $region24
      $region23: #{_lambda_.11} parent=11 // pred_region
        _
      $region24: #{_lambda_.11} parent=11 // pred_fallthru
        _
      // Predicated region
      $region25: #{_lambda_.11} parent=11 // pred_check
        %p226 = pneg %p150
      $region26: #{_lambda_.11} parent=11 // pred_check_branch
        %228 = sbr.rel (%p226) target = $region28
      $region27: #{_lambda_.11} parent=11 // pred_region
        _
      $region28: #{_lambda_.11} parent=11 // pred_fallthru
        _
    $region12: #{_lambda_.11} parent=5 // pred_fallthru
      _
    %p229 = scmp.lt.s32.totalorder %s14, 2
    // Predicated region
    $region29: #{_lambda_.11} parent=5 // pred_check
      %p230 = pneg %p229
    $region30: #{_lambda_.11} parent=5 // pred_check_branch
      %232 = sbr.rel (%p230) target = $region32
    $region31: #{_lambda_.11} parent=5 // pred_region
      // Predicated region
      $region33: #{_lambda_.11} parent=31 // pred_check
        %p233 = pneg %p34
      $region34: #{_lambda_.11} parent=31 // pred_check_branch
        %235 = sbr.rel (%p233) target = $region36
      $region35: #{_lambda_.11} parent=31 // pred_region
        %s236 = smul.u32 16, %s14
        %p237 = scmp.lt.s32.totalorder %s236, 31
        %s238 = scalar_select %p237, %s236, 31
        %s239 = smul.addr %s238, 2
        %s240 = smul.addr %s239, 8
        %s241 = scalar_lea.vmem %s0, %s240
        %s242 = smul.u32 16, %s14
      $region36: #{_lambda_.11} parent=31 // pred_fallthru
        _
      // Predicated region
      $region37: #{_lambda_.11} parent=31 // pred_check
        %p243 = pneg %p102
      $region38: #{_lambda_.11} parent=31 // pred_check_branch
        %245 = sbr.rel (%p243) target = $region40
      $region39: #{_lambda_.11} parent=31 // pred_region
        %s246 = smul.u32 16, %s14
        %p247 = scmp.lt.s32.totalorder %s246, 31
        %s248 = scalar_select %p247, %s246, 31
        %s249 = smul.addr %s248, 2
        %s250 = smul.addr %s249, 4
        %s251 = scalar_lea.vmem %s3, %s250
        %s252 = smul.u32 16, %s14
      $region40: #{_lambda_.11} parent=31 // pred_fallthru
        _
    $region32: #{_lambda_.11} parent=5 // pred_fallthru
      _
    %p253 = scmp.le.s32.totalorder 1, %s14
    %p254 = scmp.lt.s32.totalorder %s14, 3
    %p255 = pnand %p253, %p254
    %p256 = pneg %p255
    // Predicated region
    $region41: #{_lambda_.11} parent=5 // pred_check
      _
    $region42: #{_lambda_.11} parent=5 // pred_check_branch
      %258 = sbr.rel (%p255) target = $region44
    $region43: #{_lambda_.11} parent=5 // pred_region
      %s259 = ssub.s32 %s14, 1
      %s260 = smul.u32 16, %s19
      %p261 = scmp.lt.s32.totalorder %s260, 31
      %s262 = scalar_select %p261, %s260, 31
      %s263 = smul.addr %s262, 2
      %s264 = smul.addr %s263, 8
      %s265 = scalar_lea.vmem %s0, %s264
      %p266 = pneg %p40
      %p267 = pneg %p37
      %p268 = pneg %p61
      %p269 = pneg %p58
      %p270 = pneg %p82
      %p271 = pneg %p79
      %s272 = smul.u32 16, %s19
      %p273 = scmp.lt.s32.totalorder %s272, 31
      %s274 = scalar_select %p273, %s272, 31
      %s275 = smul.addr %s274, 2
      %s276 = smul.addr %s275, 4
      %s277 = scalar_lea.vmem %s3, %s276
      %p278 = pneg %p108
      %p279 = pneg %p105
      %p280 = pneg %p129
      %p281 = pneg %p126
      %p282 = pneg %p150
      %p283 = pneg %p147
      %p284 = pneg %p176
      %p285 = pneg %p173
      %s286 = smul.u32 16, %s19
      %p287 = scmp.lt.s32.totalorder %s286, 31
      %s288 = scalar_select %p287, %s286, 31
      %s289 = smul.addr %s288, 8
      %s290 = scalar_lea.vmem %s6, %s289
      %p291 = pneg %p202
      %p292 = pneg %p199
      %p293 = scmp.lt.s32.totalorder %s19, 1
      %s294 = scalar_select %p293, %s19, 1
      %s295 = smul.addr %s294, 2
      %s296 = scalar_lea.vmem %s7, %s295
      %s297 = smul.u32 16, %s19
      %p298 = scmp.lt.s32.totalorder %s297, 31
      %s299 = scalar_select %p298, %s297, 31
      %s300 = smul.addr %s299, 2
      %s301 = smul.addr %s300, 8
      %s302 = scalar_lea.vmem %s0, %s301
      %s303 = smul.u32 16, %s19
      %s304 = smul.u32 16, %s19
      %p305 = scmp.lt.s32.totalorder %s304, 31
      %s306 = scalar_select %p305, %s304, 31
      %s307 = smul.addr %s306, 2
      %s308 = smul.addr %s307, 4
      %s309 = scalar_lea.vmem %s3, %s308
      %s310 = smul.u32 16, %s19
      %s311 = smul.u32 16, %s19
      %p312 = scmp.lt.s32.totalorder %s311, 31
      %s313 = scalar_select %p312, %s311, 31
      %s314 = smul.addr %s313, 8
      %s315 = scalar_lea.vmem %s6, %s314
      %s316 = smul.u32 16, %s19
      %p317 = scmp.lt.s32.totalorder %s19, 1
      %s318 = scalar_select %p317, %s19, 1
      %s319 = smul.addr %s318, 2
      %s320 = scalar_lea.vmem %s7, %s319
      %v322 = vld [vmem:[%s302] sm:$0xff]
      %v323 = vld [vmem:[%s302 + $0x8] sm:$0xff]
      %v324 = vld [vmem:[%s302 + $0x10] sm:$0xff]
      %v325 = vld [vmem:[%s302 + $0x18] sm:$0xff]
      %v326 = vld [vmem:[%s302 + $0x20] sm:$0xff]
      %v327 = vld [vmem:[%s302 + $0x28] sm:$0xff]
      %v328 = vld [vmem:[%s302 + $0x30] sm:$0xff]
      %v329 = vld [vmem:[%s302 + $0x38] sm:$0xff]
      %v330 = vld [vmem:[%s302 + $0x40] sm:$0xff]
      %v331 = vld [vmem:[%s302 + $0x48] sm:$0xff]
      %v332 = vld [vmem:[%s302 + $0x50] sm:$0xff]
      %v333 = vld [vmem:[%s302 + $0x58] sm:$0xff]
      %v334 = vld [vmem:[%s302 + $0x60] sm:$0xff]
      %v335 = vld [vmem:[%s302 + $0x68] sm:$0xff]
      %v336 = vld [vmem:[%s302 + $0x70] sm:$0xff]
      %v337 = vld [vmem:[%s302 + $0x78] sm:$0xff]
      %v338 = vld [vmem:[%s302 + $0x80] sm:$0xff]
      %v339 = vld [vmem:[%s302 + $0x88] sm:$0xff]
      %v340 = vld [vmem:[%s302 + $0x90] sm:$0xff]
      %v341 = vld [vmem:[%s302 + $0x98] sm:$0xff]
      %v342 = vld [vmem:[%s302 + $0xa0] sm:$0xff]
      %v343 = vld [vmem:[%s302 + $0xa8] sm:$0xff]
      %v344 = vld [vmem:[%s302 + $0xb0] sm:$0xff]
      %v345 = vld [vmem:[%s302 + $0xb8] sm:$0xff]
      %v346 = vld [vmem:[%s302 + $0xc0] sm:$0xff]
      %v347 = vld [vmem:[%s302 + $0xc8] sm:$0xff]
      %v348 = vld [vmem:[%s302 + $0xd0] sm:$0xff]
      %v349 = vld [vmem:[%s302 + $0xd8] sm:$0xff]
      %v350 = vld [vmem:[%s302 + $0xe0] sm:$0xff]
      %v351 = vld [vmem:[%s302 + $0xe8] sm:$0xff]
      %v352 = vld [vmem:[%s302 + $0xf0] sm:$0xff]
      %v353 = vld [vmem:[%s302 + $0xf8] sm:$0xff]
      %v354 = vpack.c.bf16 %v322, %v322
      %v355 = vpack.c.bf16 %v324, %v324
      %v356 = vpack.c.bf16 %v326, %v326
      %v357 = vpack.c.bf16 %v328, %v328
      %v358 = vpack.c.bf16 %v330, %v330
      %v359 = vpack.c.bf16 %v332, %v332
      %v360 = vpack.c.bf16 %v334, %v334
      %v361 = vpack.c.bf16 %v336, %v336
      %v362 = vpack.c.bf16 %v338, %v338
      %v363 = vpack.c.bf16 %v340, %v340
      %v364 = vpack.c.bf16 %v342, %v342
      %v365 = vpack.c.bf16 %v344, %v344
      %v366 = vpack.c.bf16 %v346, %v346
      %v367 = vpack.c.bf16 %v348, %v348
      %v368 = vpack.c.bf16 %v350, %v350
      %v369 = vpack.c.bf16 %v352, %v352
      %v370 = vld [vmem:[%s309] sm:$0xff]
      %v371 = vld [vmem:[%s309 + $0x8] sm:$0xff]
      %v372 = vld [vmem:[%s309 + $0x10] sm:$0xff]
      %v373 = vld [vmem:[%s309 + $0x18] sm:$0xff]
      %v374 = vld [vmem:[%s309 + $0x20] sm:$0xff]
      %v375 = vld [vmem:[%s309 + $0x28] sm:$0xff]
      %v376 = vld [vmem:[%s309 + $0x30] sm:$0xff]
      %v377 = vld [vmem:[%s309 + $0x38] sm:$0xff]
      %v378 = vld [vmem:[%s309 + $0x40] sm:$0xff]
      %v379 = vld [vmem:[%s309 + $0x48] sm:$0xff]
      %v380 = vld [vmem:[%s309 + $0x50] sm:$0xff]
      %v381 = vld [vmem:[%s309 + $0x58] sm:$0xff]
      %v382 = vld [vmem:[%s309 + $0x60] sm:$0xff]
      %v383 = vld [vmem:[%s309 + $0x68] sm:$0xff]
      %v384 = vld [vmem:[%s309 + $0x70] sm:$0xff]
      %v385 = vld [vmem:[%s309 + $0x78] sm:$0xff]
      %v386 = vunpack.c.l.bf16 %v370
      %v387 = vunpack.c.h.bf16 %v370
      %v388 = vunpack.c.l.bf16 %v371
      %v389 = vunpack.c.h.bf16 %v371
      %v390 = vunpack.c.l.bf16 %v372
      %v391 = vunpack.c.h.bf16 %v372
      %v392 = vunpack.c.l.bf16 %v373
      %v393 = vunpack.c.h.bf16 %v373
      %v394 = vunpack.c.l.bf16 %v374
      %v395 = vunpack.c.h.bf16 %v374
      %v396 = vunpack.c.l.bf16 %v375
      %v397 = vunpack.c.h.bf16 %v375
      %v398 = vunpack.c.l.bf16 %v376
      %v399 = vunpack.c.h.bf16 %v376
      %v400 = vunpack.c.l.bf16 %v377
      %v401 = vunpack.c.h.bf16 %v377
      %v402 = vunpack.c.l.bf16 %v378
      %v403 = vunpack.c.h.bf16 %v378
      %v404 = vunpack.c.l.bf16 %v379
      %v405 = vunpack.c.h.bf16 %v379
      %v406 = vunpack.c.l.bf16 %v380
      %v407 = vunpack.c.h.bf16 %v380
      %v408 = vunpack.c.l.bf16 %v381
      %v409 = vunpack.c.h.bf16 %v381
      %v410 = vunpack.c.l.bf16 %v382
      %v411 = vunpack.c.h.bf16 %v382
      %v412 = vunpack.c.l.bf16 %v383
      %v413 = vunpack.c.h.bf16 %v383
      %v414 = vunpack.c.l.bf16 %v384
      %v415 = vunpack.c.h.bf16 %v384
      %v416 = vunpack.c.l.bf16 %v385
      %v417 = vunpack.c.h.bf16 %v385
      %vm418 = vcmp.gt.f32.partialorder %v386, -1e+38
      %vm419 = vcmp.gt.f32.partialorder %v387, -1e+38
      %vm420 = vcmp.gt.f32.partialorder %v388, -1e+38
      %vm421 = vcmp.gt.f32.partialorder %v389, -1e+38
      %vm422 = vcmp.gt.f32.partialorder %v390, -1e+38
      %vm423 = vcmp.gt.f32.partialorder %v391, -1e+38
      %vm424 = vcmp.gt.f32.partialorder %v392, -1e+38
      %vm425 = vcmp.gt.f32.partialorder %v393, -1e+38
      %vm426 = vcmp.gt.f32.partialorder %v394, -1e+38
      %vm427 = vcmp.gt.f32.partialorder %v395, -1e+38
      %vm428 = vcmp.gt.f32.partialorder %v396, -1e+38
      %vm429 = vcmp.gt.f32.partialorder %v397, -1e+38
      %vm430 = vcmp.gt.f32.partialorder %v398, -1e+38
      %vm431 = vcmp.gt.f32.partialorder %v399, -1e+38
      %vm432 = vcmp.gt.f32.partialorder %v400, -1e+38
      %vm433 = vcmp.gt.f32.partialorder %v401, -1e+38
      %vm434 = vcmp.gt.f32.partialorder %v402, -1e+38
      %vm435 = vcmp.gt.f32.partialorder %v403, -1e+38
      %vm436 = vcmp.gt.f32.partialorder %v404, -1e+38
      %vm437 = vcmp.gt.f32.partialorder %v405, -1e+38
      %vm438 = vcmp.gt.f32.partialorder %v406, -1e+38
      %vm439 = vcmp.gt.f32.partialorder %v407, -1e+38
      %vm440 = vcmp.gt.f32.partialorder %v408, -1e+38
      %vm441 = vcmp.gt.f32.partialorder %v409, -1e+38
      %vm442 = vcmp.gt.f32.partialorder %v410, -1e+38
      %vm443 = vcmp.gt.f32.partialorder %v411, -1e+38
      %vm444 = vcmp.gt.f32.partialorder %v412, -1e+38
      %vm445 = vcmp.gt.f32.partialorder %v413, -1e+38
      %vm446 = vcmp.gt.f32.partialorder %v414, -1e+38
      %vm447 = vcmp.gt.f32.partialorder %v415, -1e+38
      %vm448 = vcmp.gt.f32.partialorder %v416, -1e+38
      %vm449 = vcmp.gt.f32.partialorder %v417, -1e+38
      %v450 = vsel %vm418, %v386, 0.0
      %v451 = vsel %vm419, %v387, 0.0
      %v452 = vsel %vm420, %v388, 0.0
      %v453 = vsel %vm421, %v389, 0.0
      %v454 = vsel %vm422, %v390, 0.0
      %v455 = vsel %vm423, %v391, 0.0
      %v456 = vsel %vm424, %v392, 0.0
      %v457 = vsel %vm425, %v393, 0.0
      %v458 = vsel %vm426, %v394, 0.0
      %v459 = vsel %vm427, %v395, 0.0
      %v460 = vsel %vm428, %v396, 0.0
      %v461 = vsel %vm429, %v397, 0.0
      %v462 = vsel %vm430, %v398, 0.0
      %v463 = vsel %vm431, %v399, 0.0
      %v464 = vsel %vm432, %v400, 0.0
      %v465 = vsel %vm433, %v401, 0.0
      %v466 = vsel %vm434, %v402, 0.0
      %v467 = vsel %vm435, %v403, 0.0
      %v468 = vsel %vm436, %v404, 0.0
      %v469 = vsel %vm437, %v405, 0.0
      %v470 = vsel %vm438, %v406, 0.0
      %v471 = vsel %vm439, %v407, 0.0
      %v472 = vsel %vm440, %v408, 0.0
      %v473 = vsel %vm441, %v409, 0.0
      %v474 = vsel %vm442, %v410, 0.0
      %v475 = vsel %vm443, %v411, 0.0
      %v476 = vsel %vm444, %v412, 0.0
      %v477 = vsel %vm445, %v413, 0.0
      %v478 = vsel %vm446, %v414, 0.0
      %v479 = vsel %vm447, %v415, 0.0
      %v480 = vsel %vm448, %v416, 0.0
      %v481 = vsel %vm449, %v417, 0.0
      %v482 = vld [vmem:[%s5] sm:$0xf]
      %v483 = vld [vmem:[%s5 + $0x4] sm:$0xf]
      %v484 = vld [vmem:[%s5 + $0x8] sm:$0xf]
      %v485 = vld [vmem:[%s5 + $0xc] sm:$0xf]
      %v486 = vld [vmem:[%s5 + $0x10] sm:$0xf]
      %v487 = vld [vmem:[%s5 + $0x14] sm:$0xf]
      %v488 = vld [vmem:[%s5 + $0x18] sm:$0xf]
      %v489 = vld [vmem:[%s5 + $0x1c] sm:$0xf]
      %v490 = vld [vmem:[%s5 + $0x20] sm:$0xf]
      %v491 = vld [vmem:[%s5 + $0x24] sm:$0xf]
      %v492 = vld [vmem:[%s5 + $0x28] sm:$0xf]
      %v493 = vld [vmem:[%s5 + $0x2c] sm:$0xf]
      %v494 = vld [vmem:[%s5 + $0x30] sm:$0xf]
      %v495 = vld [vmem:[%s5 + $0x34] sm:$0xf]
      %v496 = vld [vmem:[%s5 + $0x38] sm:$0xf]
      %v497 = vld [vmem:[%s5 + $0x3c] sm:$0xf]
      %v514 = vunpack.c.l.b16 %v354
      %v515 = vunpack.c.l.b16 %v355
      %v516 = vunpack.c.l.b16 %v356
      %v517 = vunpack.c.l.b16 %v357
      %v518 = vunpack.c.l.b16 %v358
      %v519 = vunpack.c.l.b16 %v359
      %v520 = vunpack.c.l.b16 %v360
      %v521 = vunpack.c.l.b16 %v361
      %v522 = vunpack.c.l.b16 %v362
      %v523 = vunpack.c.l.b16 %v363
      %v524 = vunpack.c.l.b16 %v364
      %v525 = vunpack.c.l.b16 %v365
      %v526 = vunpack.c.l.b16 %v366
      %v527 = vunpack.c.l.b16 %v367
      %v528 = vunpack.c.l.b16 %v368
      %v529 = vunpack.c.l.b16 %v369
      %v530 = vpack.c.b16 %v515, %v514
      %v531 = vpack.c.b16 %v517, %v516
      %v532 = vpack.c.b16 %v519, %v518
      %v533 = vpack.c.b16 %v521, %v520
      %v534 = vpack.c.b16 %v523, %v522
      %v535 = vpack.c.b16 %v525, %v524
      %v536 = vpack.c.b16 %v527, %v526
      %v537 = vpack.c.b16 %v529, %v528
      %v562 = vunpack.c.l.b16 %v482
      %v563 = vunpack.c.l.b16 %v483
      %v564 = vunpack.c.l.b16 %v484
      %v565 = vunpack.c.l.b16 %v485
      %v566 = vunpack.c.l.b16 %v486
      %v567 = vunpack.c.l.b16 %v487
      %v568 = vunpack.c.l.b16 %v488
      %v569 = vunpack.c.l.b16 %v489
      %v570 = vunpack.c.l.b16 %v490
      %v571 = vunpack.c.l.b16 %v491
      %v572 = vunpack.c.l.b16 %v492
      %v573 = vunpack.c.l.b16 %v493
      %v574 = vunpack.c.l.b16 %v494
      %v575 = vunpack.c.l.b16 %v495
      %v576 = vunpack.c.l.b16 %v496
      %v577 = vunpack.c.l.b16 %v497
      %v578 = vpack.c.b16 %v563, %v562
      %v579 = vpack.c.b16 %v565, %v564
      %v580 = vpack.c.b16 %v567, %v566
      %v581 = vpack.c.b16 %v569, %v568
      %v582 = vpack.c.b16 %v571, %v570
      %v583 = vpack.c.b16 %v573, %v572
      %v584 = vpack.c.b16 %v575, %v574
      %v585 = vpack.c.b16 %v577, %v576
      %594 = vmatpush.bf16.msra.mxu0 %v585
      %595 = vmatpush.bf16.msra.mxu0 %v584
      %596 = vmatpush.bf16.msra.mxu0 %v583
      %597 = vmatpush.bf16.msra.mxu0 %v582
      %598 = vmatpush.bf16.msra.mxu0 %v581
      %599 = vmatpush.bf16.msra.mxu0 %v580
      %600 = vmatpush.bf16.msra.mxu0 %v579
      %601 = vmatpush.bf16.msra.mxu0 %v578
      %602 = vmatmul.bf16.gmra.mxu0 %v530
      %v603 = vpop.f32.mrf.mxu0
      %v604 = vadd.f32 0.0, %v603
      %v605 = vpop.f32.mrf.mxu0
      %v606 = vadd.f32 0.0, %v605
      %607 = vmatmul.bf16.gmra.mxu0 %v531
      %v608 = vpop.f32.mrf.mxu0
      %v609 = vadd.f32 0.0, %v608
      %v610 = vpop.f32.mrf.mxu0
      %v611 = vadd.f32 0.0, %v610
      %612 = vmatmul.bf16.gmra.mxu0 %v532
      %v613 = vpop.f32.mrf.mxu0
      %v614 = vadd.f32 0.0, %v613
      %v615 = vpop.f32.mrf.mxu0
      %v616 = vadd.f32 0.0, %v615
      %617 = vmatmul.bf16.gmra.mxu0 %v533
      %v618 = vpop.f32.mrf.mxu0
      %v619 = vadd.f32 0.0, %v618
      %v620 = vpop.f32.mrf.mxu0
      %v621 = vadd.f32 0.0, %v620
      %622 = vmatmul.bf16.gmra.mxu0 %v534
      %v623 = vpop.f32.mrf.mxu0
      %v624 = vadd.f32 0.0, %v623
      %v625 = vpop.f32.mrf.mxu0
      %v626 = vadd.f32 0.0, %v625
      %627 = vmatmul.bf16.gmra.mxu0 %v535
      %v628 = vpop.f32.mrf.mxu0
      %v629 = vadd.f32 0.0, %v628
      %v630 = vpop.f32.mrf.mxu0
      %v631 = vadd.f32 0.0, %v630
      %632 = vmatmul.bf16.gmra.mxu0 %v536
      %v633 = vpop.f32.mrf.mxu0
      %v634 = vadd.f32 0.0, %v633
      %v635 = vpop.f32.mrf.mxu0
      %v636 = vadd.f32 0.0, %v635
      %637 = vmatmul.bf16.gmra.mxu0 %v537
      %v638 = vpop.f32.mrf.mxu0
      %v639 = vadd.f32 0.0, %v638
      %v640 = vpop.f32.mrf.mxu0
      %v641 = vadd.f32 0.0, %v640
      %642 = vdwg.mxu0
      %v643 = vld [vmem:[%s4] sm:$0x1]
      %v644 = vld [vmem:[%s1] sm:$0xff]
      %v645 = vld [vmem:[%s1 + $0x8] sm:$0xff]
      %v646 = vld [vmem:[%s1 + $0x10] sm:$0xff]
      %v647 = vld [vmem:[%s1 + $0x18] sm:$0xff]
      %v648 = vld [vmem:[%s1 + $0x20] sm:$0xff]
      %v649 = vld [vmem:[%s1 + $0x28] sm:$0xff]
      %v650 = vld [vmem:[%s1 + $0x30] sm:$0xff]
      %v651 = vld [vmem:[%s1 + $0x38] sm:$0xff]
      %v652 = vld [vmem:[%s2] sm:$0xf]
      %v653 = vld [vmem:[%s2 + $0x4] sm:$0xf]
      %v654 = vld [vmem:[%s2 + $0x8] sm:$0xf]
      %v655 = vld [vmem:[%s2 + $0xc] sm:$0xf]
      %v656 = vld [vmem:[%s2 + $0x10] sm:$0xf]
      %v657 = vld [vmem:[%s2 + $0x14] sm:$0xf]
      %v658 = vld [vmem:[%s2 + $0x18] sm:$0xf]
      %v659 = vld [vmem:[%s2 + $0x1c] sm:$0xf]
      %v660 = vld [vmem:[%s2 + $0x20] sm:$0xf]
      %v661 = vld [vmem:[%s2 + $0x24] sm:$0xf]
      %v662 = vld [vmem:[%s2 + $0x28] sm:$0xf]
      %v663 = vld [vmem:[%s2 + $0x2c] sm:$0xf]
      %v664 = vld [vmem:[%s2 + $0x30] sm:$0xf]
      %v665 = vld [vmem:[%s2 + $0x34] sm:$0xf]
      %v666 = vld [vmem:[%s2 + $0x38] sm:$0xf]
      %v667 = vld [vmem:[%s2 + $0x3c] sm:$0xf]
      %v668 = vld [vmem:[%s2 + $0x40] sm:$0xf]
      %v669 = vld [vmem:[%s2 + $0x44] sm:$0xf]
      %v670 = vld [vmem:[%s2 + $0x48] sm:$0xf]
      %v671 = vld [vmem:[%s2 + $0x4c] sm:$0xf]
      %v672 = vld [vmem:[%s2 + $0x50] sm:$0xf]
      %v673 = vld [vmem:[%s2 + $0x54] sm:$0xf]
      %v674 = vld [vmem:[%s2 + $0x58] sm:$0xf]
      %v675 = vld [vmem:[%s2 + $0x5c] sm:$0xf]
      %v676 = vld [vmem:[%s2 + $0x60] sm:$0xf]
      %v677 = vld [vmem:[%s2 + $0x64] sm:$0xf]
      %v678 = vld [vmem:[%s2 + $0x68] sm:$0xf]
      %v679 = vld [vmem:[%s2 + $0x6c] sm:$0xf]
      %v680 = vld [vmem:[%s2 + $0x70] sm:$0xf]
      %v681 = vld [vmem:[%s2 + $0x74] sm:$0xf]
      %v682 = vld [vmem:[%s2 + $0x78] sm:$0xf]
      %v683 = vld [vmem:[%s2 + $0x7c] sm:$0xf]
      %685 = vset.pattern.permute.xlu0 0
      %686 = vperm.xlu0 %685, %v604
      %v687 = vpop.permute.xlu0 %686
      %690 = vset.pattern.permute.xlu0 0
      %691 = vperm.xlu0 %690, %v606
      %v692 = vpop.permute.xlu0 %691
      %695 = vset.pattern.permute.xlu0 0
      %696 = vperm.xlu0 %695, %v609
      %v697 = vpop.permute.xlu0 %696
      %700 = vset.pattern.permute.xlu0 0
      %701 = vperm.xlu0 %700, %v611
      %v702 = vpop.permute.xlu0 %701
      %705 = vset.pattern.permute.xlu0 0
      %706 = vperm.xlu0 %705, %v614
      %v707 = vpop.permute.xlu0 %706
      %710 = vset.pattern.permute.xlu0 0
      %711 = vperm.xlu0 %710, %v616
      %v712 = vpop.permute.xlu0 %711
      %715 = vset.pattern.permute.xlu0 0
      %716 = vperm.xlu0 %715, %v619
      %v717 = vpop.permute.xlu0 %716
      %720 = vset.pattern.permute.xlu0 0
      %721 = vperm.xlu0 %720, %v621
      %v722 = vpop.permute.xlu0 %721
      %725 = vset.pattern.permute.xlu0 0
      %726 = vperm.xlu0 %725, %v624
      %v727 = vpop.permute.xlu0 %726
      %730 = vset.pattern.permute.xlu0 0
      %731 = vperm.xlu0 %730, %v626
      %v732 = vpop.permute.xlu0 %731
      %735 = vset.pattern.permute.xlu0 0
      %736 = vperm.xlu0 %735, %v629
      %v737 = vpop.permute.xlu0 %736
      %740 = vset.pattern.permute.xlu0 0
      %741 = vperm.xlu0 %740, %v631
      %v742 = vpop.permute.xlu0 %741
      %745 = vset.pattern.permute.xlu0 0
      %746 = vperm.xlu0 %745, %v634
      %v747 = vpop.permute.xlu0 %746
      %750 = vset.pattern.permute.xlu0 0
      %751 = vperm.xlu0 %750, %v636
      %v752 = vpop.permute.xlu0 %751
      %755 = vset.pattern.permute.xlu0 0
      %756 = vperm.xlu0 %755, %v639
      %v757 = vpop.permute.xlu0 %756
      %760 = vset.pattern.permute.xlu0 0
      %761 = vperm.xlu0 %760, %v641
      %v762 = vpop.permute.xlu0 %761
      %v764 = vmul.f32 %v450, %v687
      %v765 = vmul.f32 %v451, %v687
      %v766 = vmul.f32 %v452, %v692
      %v767 = vmul.f32 %v453, %v692
      %v768 = vmul.f32 %v454, %v697
      %v769 = vmul.f32 %v455, %v697
      %v770 = vmul.f32 %v456, %v702
      %v771 = vmul.f32 %v457, %v702
      %v772 = vmul.f32 %v458, %v707
      %v773 = vmul.f32 %v459, %v707
      %v774 = vmul.f32 %v460, %v712
      %v775 = vmul.f32 %v461, %v712
      %v776 = vmul.f32 %v462, %v717
      %v777 = vmul.f32 %v463, %v717
      %v778 = vmul.f32 %v464, %v722
      %v779 = vmul.f32 %v465, %v722
      %v780 = vmul.f32 %v466, %v727
      %v781 = vmul.f32 %v467, %v727
      %v782 = vmul.f32 %v468, %v732
      %v783 = vmul.f32 %v469, %v732
      %v784 = vmul.f32 %v470, %v737
      %v785 = vmul.f32 %v471, %v737
      %v786 = vmul.f32 %v472, %v742
      %v787 = vmul.f32 %v473, %v742
      %v788 = vmul.f32 %v474, %v747
      %v789 = vmul.f32 %v475, %v747
      %v790 = vmul.f32 %v476, %v752
      %v791 = vmul.f32 %v477, %v752
      %v792 = vmul.f32 %v478, %v757
      %v793 = vmul.f32 %v479, %v757
      %v794 = vmul.f32 %v480, %v762
      %v795 = vmul.f32 %v481, %v762
      %v804 = vunpack.c.l.b16 %v644
      %v805 = vunpack.c.h.b16 %v644
      %v806 = vunpack.c.l.b16 %v645
      %v807 = vunpack.c.h.b16 %v645
      %v808 = vunpack.c.l.b16 %v646
      %v809 = vunpack.c.h.b16 %v646
      %v810 = vunpack.c.l.b16 %v647
      %v811 = vunpack.c.h.b16 %v647
      %v812 = vunpack.c.l.b16 %v648
      %v813 = vunpack.c.h.b16 %v648
      %v814 = vunpack.c.l.b16 %v649
      %v815 = vunpack.c.h.b16 %v649
      %v816 = vunpack.c.l.b16 %v650
      %v817 = vunpack.c.h.b16 %v650
      %v818 = vunpack.c.l.b16 %v651
      %v819 = vunpack.c.h.b16 %v651
      %v820 = vpack.c.b16 %v806, %v804
      %v821 = vpack.c.b16 %v807, %v805
      %v822 = vpack.c.b16 %v810, %v808
      %v823 = vpack.c.b16 %v811, %v809
      %v824 = vpack.c.b16 %v814, %v812
      %v825 = vpack.c.b16 %v815, %v813
      %v826 = vpack.c.b16 %v818, %v816
      %v827 = vpack.c.b16 %v819, %v817
      %vm836 = vcmask 523264
      %v838 = vsel %vm836, %v530, 0
      %v841 = vsel %vm836, %v531, 0
      %v844 = vsel %vm836, %v532, 0
      %v847 = vsel %vm836, %v533, 0
      %v850 = vsel %vm836, %v534, 0
      %v853 = vsel %vm836, %v535, 0
      %v856 = vsel %vm836, %v536, 0
      %v859 = vsel %vm836, %v537, 0
      %861 = vmatpush.bf16.msra.mxu0 0
      %862 = vmatpush.bf16.msra.mxu0 0
      %863 = vmatpush.bf16.msra.mxu0 0
      %864 = vmatpush.bf16.msra.mxu0 0
      %865 = vmatpush.bf16.msra.mxu0 %v826
      %866 = vmatpush.bf16.msra.mxu0 %v824
      %867 = vmatpush.bf16.msra.mxu0 %v822
      %868 = vmatpush.bf16.msra.mxu0 %v820
      %869 = vmatmul.bf16.gmra.mxu0 %v838
      %v870 = vpop.f32.mrf.mxu0
      %v871 = vadd.f32 %v764, %v870
      %v872 = vpop.f32.mrf.mxu0
      %v873 = vadd.f32 %v766, %v872
      %874 = vmatmul.bf16.gmra.mxu0 %v841
      %v875 = vpop.f32.mrf.mxu0
      %v876 = vadd.f32 %v768, %v875
      %v877 = vpop.f32.mrf.mxu0
      %v878 = vadd.f32 %v770, %v877
      %879 = vmatmul.bf16.gmra.mxu0 %v844
      %v880 = vpop.f32.mrf.mxu0
      %v881 = vadd.f32 %v772, %v880
      %v882 = vpop.f32.mrf.mxu0
      %v883 = vadd.f32 %v774, %v882
      %884 = vmatmul.bf16.gmra.mxu0 %v847
      %v885 = vpop.f32.mrf.mxu0
      %v886 = vadd.f32 %v776, %v885
      %v887 = vpop.f32.mrf.mxu0
      %v888 = vadd.f32 %v778, %v887
      %889 = vmatmul.bf16.gmra.mxu0 %v850
      %v890 = vpop.f32.mrf.mxu0
      %v891 = vadd.f32 %v780, %v890
      %v892 = vpop.f32.mrf.mxu0
      %v893 = vadd.f32 %v782, %v892
      %894 = vmatmul.bf16.gmra.mxu0 %v853
      %v895 = vpop.f32.mrf.mxu0
      %v896 = vadd.f32 %v784, %v895
      %v897 = vpop.f32.mrf.mxu0
      %v898 = vadd.f32 %v786, %v897
      %899 = vmatmul.bf16.gmra.mxu0 %v856
      %v900 = vpop.f32.mrf.mxu0
      %v901 = vadd.f32 %v788, %v900
      %v902 = vpop.f32.mrf.mxu0
      %v903 = vadd.f32 %v790, %v902
      %904 = vmatmul.bf16.gmra.mxu0 %v859
      %v905 = vpop.f32.mrf.mxu0
      %v906 = vadd.f32 %v792, %v905
      %v907 = vpop.f32.mrf.mxu0
      %v908 = vadd.f32 %v794, %v907
      %909 = vdwg.mxu0
      %910 = vmatpush.bf16.msra.mxu0 0
      %911 = vmatpush.bf16.msra.mxu0 0
      %912 = vmatpush.bf16.msra.mxu0 0
      %913 = vmatpush.bf16.msra.mxu0 0
      %914 = vmatpush.bf16.msra.mxu0 %v827
      %915 = vmatpush.bf16.msra.mxu0 %v825
      %916 = vmatpush.bf16.msra.mxu0 %v823
      %917 = vmatpush.bf16.msra.mxu0 %v821
      %918 = vmatmul.bf16.gmra.mxu0 %v838
      %v919 = vpop.f32.mrf.mxu0
      %v920 = vadd.f32 %v765, %v919
      %v921 = vpop.f32.mrf.mxu0
      %v922 = vadd.f32 %v767, %v921
      %923 = vmatmul.bf16.gmra.mxu0 %v841
      %v924 = vpop.f32.mrf.mxu0
      %v925 = vadd.f32 %v769, %v924
      %v926 = vpop.f32.mrf.mxu0
      %v927 = vadd.f32 %v771, %v926
      %928 = vmatmul.bf16.gmra.mxu0 %v844
      %v929 = vpop.f32.mrf.mxu0
      %v930 = vadd.f32 %v773, %v929
      %v931 = vpop.f32.mrf.mxu0
      %v932 = vadd.f32 %v775, %v931
      %933 = vmatmul.bf16.gmra.mxu0 %v847
      %v934 = vpop.f32.mrf.mxu0
      %v935 = vadd.f32 %v777, %v934
      %v936 = vpop.f32.mrf.mxu0
      %v937 = vadd.f32 %v779, %v936
      %938 = vmatmul.bf16.gmra.mxu0 %v850
      %v939 = vpop.f32.mrf.mxu0
      %v940 = vadd.f32 %v781, %v939
      %v941 = vpop.f32.mrf.mxu0
      %v942 = vadd.f32 %v783, %v941
      %943 = vmatmul.bf16.gmra.mxu0 %v853
      %v944 = vpop.f32.mrf.mxu0
      %v945 = vadd.f32 %v785, %v944
      %v946 = vpop.f32.mrf.mxu0
      %v947 = vadd.f32 %v787, %v946
      %948 = vmatmul.bf16.gmra.mxu0 %v856
      %v949 = vpop.f32.mrf.mxu0
      %v950 = vadd.f32 %v789, %v949
      %v951 = vpop.f32.mrf.mxu0
      %v952 = vadd.f32 %v791, %v951
      %953 = vmatmul.bf16.gmra.mxu0 %v859
      %v954 = vpop.f32.mrf.mxu0
      %v955 = vadd.f32 %v793, %v954
      %v956 = vpop.f32.mrf.mxu0
      %v957 = vadd.f32 %v795, %v956
      %958 = vdwg.mxu0
      %v959 = vsel %vm418, %v871, -1e+30
      %v960 = vsel %vm419, %v920, -1e+30
      %v961 = vsel %vm420, %v873, -1e+30
      %v962 = vsel %vm421, %v922, -1e+30
      %v963 = vsel %vm422, %v876, -1e+30
      %v964 = vsel %vm423, %v925, -1e+30
      %v965 = vsel %vm424, %v878, -1e+30
      %v966 = vsel %vm425, %v927, -1e+30
      %v967 = vsel %vm426, %v881, -1e+30
      %v968 = vsel %vm427, %v930, -1e+30
      %v969 = vsel %vm428, %v883, -1e+30
      %v970 = vsel %vm429, %v932, -1e+30
      %v971 = vsel %vm430, %v886, -1e+30
      %v972 = vsel %vm431, %v935, -1e+30
      %v973 = vsel %vm432, %v888, -1e+30
      %v974 = vsel %vm433, %v937, -1e+30
      %v975 = vsel %vm434, %v891, -1e+30
      %v976 = vsel %vm435, %v940, -1e+30
      %v977 = vsel %vm436, %v893, -1e+30
      %v978 = vsel %vm437, %v942, -1e+30
      %v979 = vsel %vm438, %v896, -1e+30
      %v980 = vsel %vm439, %v945, -1e+30
      %v981 = vsel %vm440, %v898, -1e+30
      %v982 = vsel %vm441, %v947, -1e+30
      %v983 = vsel %vm442, %v901, -1e+30
      %v984 = vsel %vm443, %v950, -1e+30
      %v985 = vsel %vm444, %v903, -1e+30
      %v986 = vsel %vm445, %v952, -1e+30
      %v987 = vsel %vm446, %v906, -1e+30
      %v988 = vsel %vm447, %v955, -1e+30
      %v989 = vsel %vm448, %v908, -1e+30
      %v990 = vsel %vm449, %v957, -1e+30
      %v991 = vmax.f32 %v959, %v960
      %992 = vmax.xlane.f32.xlu0 %v991
      %v993 = vpop.xlane.xlu0 %992
      %v994 = vmax.f32 %v961, %v962
      %995 = vmax.xlane.f32.xlu0 %v994
      %v996 = vpop.xlane.xlu0 %995
      %v997 = vmax.f32 %v963, %v964
      %998 = vmax.xlane.f32.xlu0 %v997
      %v999 = vpop.xlane.xlu0 %998
      %v1000 = vmax.f32 %v965, %v966
      %1001 = vmax.xlane.f32.xlu0 %v1000
      %v1002 = vpop.xlane.xlu0 %1001
      %v1003 = vmax.f32 %v967, %v968
      %1004 = vmax.xlane.f32.xlu0 %v1003
      %v1005 = vpop.xlane.xlu0 %1004
      %v1006 = vmax.f32 %v969, %v970
      %1007 = vmax.xlane.f32.xlu0 %v1006
      %v1008 = vpop.xlane.xlu0 %1007
      %v1009 = vmax.f32 %v971, %v972
      %1010 = vmax.xlane.f32.xlu0 %v1009
      %v1011 = vpop.xlane.xlu0 %1010
      %v1012 = vmax.f32 %v973, %v974
      %1013 = vmax.xlane.f32.xlu0 %v1012
      %v1014 = vpop.xlane.xlu0 %1013
      %v1015 = vmax.f32 %v975, %v976
      %1016 = vmax.xlane.f32.xlu0 %v1015
      %v1017 = vpop.xlane.xlu0 %1016
      %v1018 = vmax.f32 %v977, %v978
      %1019 = vmax.xlane.f32.xlu0 %v1018
      %v1020 = vpop.xlane.xlu0 %1019
      %v1021 = vmax.f32 %v979, %v980
      %1022 = vmax.xlane.f32.xlu0 %v1021
      %v1023 = vpop.xlane.xlu0 %1022
      %v1024 = vmax.f32 %v981, %v982
      %1025 = vmax.xlane.f32.xlu0 %v1024
      %v1026 = vpop.xlane.xlu0 %1025
      %v1027 = vmax.f32 %v983, %v984
      %1028 = vmax.xlane.f32.xlu0 %v1027
      %v1029 = vpop.xlane.xlu0 %1028
      %v1030 = vmax.f32 %v985, %v986
      %1031 = vmax.xlane.f32.xlu0 %v1030
      %v1032 = vpop.xlane.xlu0 %1031
      %v1033 = vmax.f32 %v987, %v988
      %1034 = vmax.xlane.f32.xlu0 %v1033
      %v1035 = vpop.xlane.xlu0 %1034
      %v1036 = vmax.f32 %v989, %v990
      %1037 = vmax.xlane.f32.xlu0 %v1036
      %v1038 = vpop.xlane.xlu0 %1037
      %v1039 = vsub.f32 %v959, %v993
      %v1040 = vsub.f32 %v960, %v993
      %v1041 = vsub.f32 %v961, %v996
      %v1042 = vsub.f32 %v962, %v996
      %v1043 = vsub.f32 %v963, %v999
      %v1044 = vsub.f32 %v964, %v999
      %v1045 = vsub.f32 %v965, %v1002
      %v1046 = vsub.f32 %v966, %v1002
      %v1047 = vsub.f32 %v967, %v1005
      %v1048 = vsub.f32 %v968, %v1005
      %v1049 = vsub.f32 %v969, %v1008
      %v1050 = vsub.f32 %v970, %v1008
      %v1051 = vsub.f32 %v971, %v1011
      %v1052 = vsub.f32 %v972, %v1011
      %v1053 = vsub.f32 %v973, %v1014
      %v1054 = vsub.f32 %v974, %v1014
      %v1055 = vsub.f32 %v975, %v1017
      %v1056 = vsub.f32 %v976, %v1017
      %v1057 = vsub.f32 %v977, %v1020
      %v1058 = vsub.f32 %v978, %v1020
      %v1059 = vsub.f32 %v979, %v1023
      %v1060 = vsub.f32 %v980, %v1023
      %v1061 = vsub.f32 %v981, %v1026
      %v1062 = vsub.f32 %v982, %v1026
      %v1063 = vsub.f32 %v983, %v1029
      %v1064 = vsub.f32 %v984, %v1029
      %v1065 = vsub.f32 %v985, %v1032
      %v1066 = vsub.f32 %v986, %v1032
      %v1067 = vsub.f32 %v987, %v1035
      %v1068 = vsub.f32 %v988, %v1035
      %v1069 = vsub.f32 %v989, %v1038
      %v1070 = vsub.f32 %v990, %v1038
      %v1071 = vmul.f32 %v1039, 1.442695
      %v1072 = vpow.pop %v1071
      %v1073 = vmul.f32 %v1040, 1.442695
      %v1074 = vpow.pop %v1073
      %v1075 = vmul.f32 %v1041, 1.442695
      %v1076 = vpow.pop %v1075
      %v1077 = vmul.f32 %v1042, 1.442695
      %v1078 = vpow.pop %v1077
      %v1079 = vmul.f32 %v1043, 1.442695
      %v1080 = vpow.pop %v1079
      %v1081 = vmul.f32 %v1044, 1.442695
      %v1082 = vpow.pop %v1081
      %v1083 = vmul.f32 %v1045, 1.442695
      %v1084 = vpow.pop %v1083
      %v1085 = vmul.f32 %v1046, 1.442695
      %v1086 = vpow.pop %v1085
      %v1087 = vmul.f32 %v1047, 1.442695
      %v1088 = vpow.pop %v1087
      %v1089 = vmul.f32 %v1048, 1.442695
      %v1090 = vpow.pop %v1089
      %v1091 = vmul.f32 %v1049, 1.442695
      %v1092 = vpow.pop %v1091
      %v1093 = vmul.f32 %v1050, 1.442695
      %v1094 = vpow.pop %v1093
      %v1095 = vmul.f32 %v1051, 1.442695
      %v1096 = vpow.pop %v1095
      %v1097 = vmul.f32 %v1052, 1.442695
      %v1098 = vpow.pop %v1097
      %v1099 = vmul.f32 %v1053, 1.442695
      %v1100 = vpow.pop %v1099
      %v1101 = vmul.f32 %v1054, 1.442695
      %v1102 = vpow.pop %v1101
      %v1103 = vmul.f32 %v1055, 1.442695
      %v1104 = vpow.pop %v1103
      %v1105 = vmul.f32 %v1056, 1.442695
      %v1106 = vpow.pop %v1105
      %v1107 = vmul.f32 %v1057, 1.442695
      %v1108 = vpow.pop %v1107
      %v1109 = vmul.f32 %v1058, 1.442695
      %v1110 = vpow.pop %v1109
      %v1111 = vmul.f32 %v1059, 1.442695
      %v1112 = vpow.pop %v1111
      %v1113 = vmul.f32 %v1060, 1.442695
      %v1114 = vpow.pop %v1113
      %v1115 = vmul.f32 %v1061, 1.442695
      %v1116 = vpow.pop %v1115
      %v1117 = vmul.f32 %v1062, 1.442695
      %v1118 = vpow.pop %v1117
      %v1119 = vmul.f32 %v1063, 1.442695
      %v1120 = vpow.pop %v1119
      %v1121 = vmul.f32 %v1064, 1.442695
      %v1122 = vpow.pop %v1121
      %v1123 = vmul.f32 %v1065, 1.442695
      %v1124 = vpow.pop %v1123
      %v1125 = vmul.f32 %v1066, 1.442695
      %v1126 = vpow.pop %v1125
      %v1127 = vmul.f32 %v1067, 1.442695
      %v1128 = vpow.pop %v1127
      %v1129 = vmul.f32 %v1068, 1.442695
      %v1130 = vpow.pop %v1129
      %v1131 = vmul.f32 %v1069, 1.442695
      %v1132 = vpow.pop %v1131
      %v1133 = vmul.f32 %v1070, 1.442695
      %v1134 = vpow.pop %v1133
      %v1135 = vadd.f32 %v1072, %v1074
      %1136 = vadd.xlane.f32.xlu0 %v1135
      %v1137 = vpop.xlane.xlu0 %1136
      %v1138 = vadd.f32 %v1076, %v1078
      %1139 = vadd.xlane.f32.xlu0 %v1138
      %v1140 = vpop.xlane.xlu0 %1139
      %v1141 = vadd.f32 %v1080, %v1082
      %1142 = vadd.xlane.f32.xlu0 %v1141
      %v1143 = vpop.xlane.xlu0 %1142
      %v1144 = vadd.f32 %v1084, %v1086
      %1145 = vadd.xlane.f32.xlu0 %v1144
      %v1146 = vpop.xlane.xlu0 %1145
      %v1147 = vadd.f32 %v1088, %v1090
      %1148 = vadd.xlane.f32.xlu0 %v1147
      %v1149 = vpop.xlane.xlu0 %1148
      %v1150 = vadd.f32 %v1092, %v1094
      %1151 = vadd.xlane.f32.xlu0 %v1150
      %v1152 = vpop.xlane.xlu0 %1151
      %v1153 = vadd.f32 %v1096, %v1098
      %1154 = vadd.xlane.f32.xlu0 %v1153
      %v1155 = vpop.xlane.xlu0 %1154
      %v1156 = vadd.f32 %v1100, %v1102
      %1157 = vadd.xlane.f32.xlu0 %v1156
      %v1158 = vpop.xlane.xlu0 %1157
      %v1159 = vadd.f32 %v1104, %v1106
      %1160 = vadd.xlane.f32.xlu0 %v1159
      %v1161 = vpop.xlane.xlu0 %1160
      %v1162 = vadd.f32 %v1108, %v1110
      %1163 = vadd.xlane.f32.xlu0 %v1162
      %v1164 = vpop.xlane.xlu0 %1163
      %v1165 = vadd.f32 %v1112, %v1114
      %1166 = vadd.xlane.f32.xlu0 %v1165
      %v1167 = vpop.xlane.xlu0 %1166
      %v1168 = vadd.f32 %v1116, %v1118
      %1169 = vadd.xlane.f32.xlu0 %v1168
      %v1170 = vpop.xlane.xlu0 %1169
      %v1171 = vadd.f32 %v1120, %v1122
      %1172 = vadd.xlane.f32.xlu0 %v1171
      %v1173 = vpop.xlane.xlu0 %1172
      %v1174 = vadd.f32 %v1124, %v1126
      %1175 = vadd.xlane.f32.xlu0 %v1174
      %v1176 = vpop.xlane.xlu0 %1175
      %v1177 = vadd.f32 %v1128, %v1130
      %1178 = vadd.xlane.f32.xlu0 %v1177
      %v1179 = vpop.xlane.xlu0 %1178
      %v1180 = vadd.f32 %v1132, %v1134
      %1181 = vadd.xlane.f32.xlu0 %v1180
      %v1182 = vpop.xlane.xlu0 %1181
      %vm1183 = vcmp.gt.f32.partialorder %v993, -5e+29
      %vm1184 = vcmp.gt.f32.partialorder %v996, -5e+29
      %vm1185 = vcmp.gt.f32.partialorder %v999, -5e+29
      %vm1186 = vcmp.gt.f32.partialorder %v1002, -5e+29
      %vm1187 = vcmp.gt.f32.partialorder %v1005, -5e+29
      %vm1188 = vcmp.gt.f32.partialorder %v1008, -5e+29
      %vm1189 = vcmp.gt.f32.partialorder %v1011, -5e+29
      %vm1190 = vcmp.gt.f32.partialorder %v1014, -5e+29
      %vm1191 = vcmp.gt.f32.partialorder %v1017, -5e+29
      %vm1192 = vcmp.gt.f32.partialorder %v1020, -5e+29
      %vm1193 = vcmp.gt.f32.partialorder %v1023, -5e+29
      %vm1194 = vcmp.gt.f32.partialorder %v1026, -5e+29
      %vm1195 = vcmp.gt.f32.partialorder %v1029, -5e+29
      %vm1196 = vcmp.gt.f32.partialorder %v1032, -5e+29
      %vm1197 = vcmp.gt.f32.partialorder %v1035, -5e+29
      %vm1198 = vcmp.gt.f32.partialorder %v1038, -5e+29
      %v1199 = vrcp.pop %v1137
      %v1200 = vrcp.pop %v1140
      %v1201 = vrcp.pop %v1143
      %v1202 = vrcp.pop %v1146
      %v1203 = vrcp.pop %v1149
      %v1204 = vrcp.pop %v1152
      %v1205 = vrcp.pop %v1155
      %v1206 = vrcp.pop %v1158
      %v1207 = vrcp.pop %v1161
      %v1208 = vrcp.pop %v1164
      %v1209 = vrcp.pop %v1167
      %v1210 = vrcp.pop %v1170
      %v1211 = vrcp.pop %v1173
      %v1212 = vrcp.pop %v1176
      %v1213 = vrcp.pop %v1179
      %v1214 = vrcp.pop %v1182
      %v1215 = vsel %vm1183, %v1199, 0.0
      %v1216 = vsel %vm1184, %v1200, 0.0
      %v1217 = vsel %vm1185, %v1201, 0.0
      %v1218 = vsel %vm1186, %v1202, 0.0
      %v1219 = vsel %vm1187, %v1203, 0.0
      %v1220 = vsel %vm1188, %v1204, 0.0
      %v1221 = vsel %vm1189, %v1205, 0.0
      %v1222 = vsel %vm1190, %v1206, 0.0
      %v1223 = vsel %vm1191, %v1207, 0.0
      %v1224 = vsel %vm1192, %v1208, 0.0
      %v1225 = vsel %vm1193, %v1209, 0.0
      %v1226 = vsel %vm1194, %v1210, 0.0
      %v1227 = vsel %vm1195, %v1211, 0.0
      %v1228 = vsel %vm1196, %v1212, 0.0
      %v1229 = vsel %vm1197, %v1213, 0.0
      %v1230 = vsel %vm1198, %v1214, 0.0
      %v1231 = vmul.f32 %v1072, %v1215
      %v1232 = vmul.f32 %v1074, %v1215
      %v1233 = vmul.f32 %v1076, %v1216
      %v1234 = vmul.f32 %v1078, %v1216
      %v1235 = vmul.f32 %v1080, %v1217
      %v1236 = vmul.f32 %v1082, %v1217
      %v1237 = vmul.f32 %v1084, %v1218
      %v1238 = vmul.f32 %v1086, %v1218
      %v1239 = vmul.f32 %v1088, %v1219
      %v1240 = vmul.f32 %v1090, %v1219
      %v1241 = vmul.f32 %v1092, %v1220
      %v1242 = vmul.f32 %v1094, %v1220
      %v1243 = vmul.f32 %v1096, %v1221
      %v1244 = vmul.f32 %v1098, %v1221
      %v1245 = vmul.f32 %v1100, %v1222
      %v1246 = vmul.f32 %v1102, %v1222
      %v1247 = vmul.f32 %v1104, %v1223
      %v1248 = vmul.f32 %v1106, %v1223
      %v1249 = vmul.f32 %v1108, %v1224
      %v1250 = vmul.f32 %v1110, %v1224
      %v1251 = vmul.f32 %v1112, %v1225
      %v1252 = vmul.f32 %v1114, %v1225
      %v1253 = vmul.f32 %v1116, %v1226
      %v1254 = vmul.f32 %v1118, %v1226
      %v1255 = vmul.f32 %v1120, %v1227
      %v1256 = vmul.f32 %v1122, %v1227
      %v1257 = vmul.f32 %v1124, %v1228
      %v1258 = vmul.f32 %v1126, %v1228
      %v1259 = vmul.f32 %v1128, %v1229
      %v1260 = vmul.f32 %v1130, %v1229
      %v1261 = vmul.f32 %v1132, %v1230
      %v1262 = vmul.f32 %v1134, %v1230
      %v1263 = vpack.c.bf16 %v1233, %v1231
      %v1264 = vpack.c.bf16 %v1234, %v1232
      %v1265 = vpack.c.bf16 %v1237, %v1235
      %v1266 = vpack.c.bf16 %v1238, %v1236
      %v1267 = vpack.c.bf16 %v1241, %v1239
      %v1268 = vpack.c.bf16 %v1242, %v1240
      %v1269 = vpack.c.bf16 %v1245, %v1243
      %v1270 = vpack.c.bf16 %v1246, %v1244
      %v1271 = vpack.c.bf16 %v1249, %v1247
      %v1272 = vpack.c.bf16 %v1250, %v1248
      %v1273 = vpack.c.bf16 %v1253, %v1251
      %v1274 = vpack.c.bf16 %v1254, %v1252
      %v1275 = vpack.c.bf16 %v1257, %v1255
      %v1276 = vpack.c.bf16 %v1258, %v1256
      %v1277 = vpack.c.bf16 %v1261, %v1259
      %v1278 = vpack.c.bf16 %v1262, %v1260
      %v1279 = vmul.f32 %v1231, %v450
      %v1280 = vmul.f32 %v1232, %v451
      %v1281 = vmul.f32 %v1233, %v452
      %v1282 = vmul.f32 %v1234, %v453
      %v1283 = vmul.f32 %v1235, %v454
      %v1284 = vmul.f32 %v1236, %v455
      %v1285 = vmul.f32 %v1237, %v456
      %v1286 = vmul.f32 %v1238, %v457
      %v1287 = vmul.f32 %v1239, %v458
      %v1288 = vmul.f32 %v1240, %v459
      %v1289 = vmul.f32 %v1241, %v460
      %v1290 = vmul.f32 %v1242, %v461
      %v1291 = vmul.f32 %v1243, %v462
      %v1292 = vmul.f32 %v1244, %v463
      %v1293 = vmul.f32 %v1245, %v464
      %v1294 = vmul.f32 %v1246, %v465
      %v1295 = vmul.f32 %v1247, %v466
      %v1296 = vmul.f32 %v1248, %v467
      %v1297 = vmul.f32 %v1249, %v468
      %v1298 = vmul.f32 %v1250, %v469
      %v1299 = vmul.f32 %v1251, %v470
      %v1300 = vmul.f32 %v1252, %v471
      %v1301 = vmul.f32 %v1253, %v472
      %v1302 = vmul.f32 %v1254, %v473
      %v1303 = vmul.f32 %v1255, %v474
      %v1304 = vmul.f32 %v1256, %v475
      %v1305 = vmul.f32 %v1257, %v476
      %v1306 = vmul.f32 %v1258, %v477
      %v1307 = vmul.f32 %v1259, %v478
      %v1308 = vmul.f32 %v1260, %v479
      %v1309 = vmul.f32 %v1261, %v480
      %v1310 = vmul.f32 %v1262, %v481
      %v1311 = vadd.f32 %v1279, %v1280
      %1312 = vadd.xlane.f32.xlu0 %v1311
      %v1313 = vpop.xlane.xlu0 %1312
      %v1314 = vadd.f32 %v1281, %v1282
      %1315 = vadd.xlane.f32.xlu0 %v1314
      %v1316 = vpop.xlane.xlu0 %1315
      %v1317 = vadd.f32 %v1283, %v1284
      %1318 = vadd.xlane.f32.xlu0 %v1317
      %v1319 = vpop.xlane.xlu0 %1318
      %v1320 = vadd.f32 %v1285, %v1286
      %1321 = vadd.xlane.f32.xlu0 %v1320
      %v1322 = vpop.xlane.xlu0 %1321
      %v1323 = vadd.f32 %v1287, %v1288
      %1324 = vadd.xlane.f32.xlu0 %v1323
      %v1325 = vpop.xlane.xlu0 %1324
      %v1326 = vadd.f32 %v1289, %v1290
      %1327 = vadd.xlane.f32.xlu0 %v1326
      %v1328 = vpop.xlane.xlu0 %1327
      %v1329 = vadd.f32 %v1291, %v1292
      %1330 = vadd.xlane.f32.xlu0 %v1329
      %v1331 = vpop.xlane.xlu0 %1330
      %v1332 = vadd.f32 %v1293, %v1294
      %1333 = vadd.xlane.f32.xlu0 %v1332
      %v1334 = vpop.xlane.xlu0 %1333
      %v1335 = vadd.f32 %v1295, %v1296
      %1336 = vadd.xlane.f32.xlu0 %v1335
      %v1337 = vpop.xlane.xlu0 %1336
      %v1338 = vadd.f32 %v1297, %v1298
      %1339 = vadd.xlane.f32.xlu0 %v1338
      %v1340 = vpop.xlane.xlu0 %1339
      %v1341 = vadd.f32 %v1299, %v1300
      %1342 = vadd.xlane.f32.xlu0 %v1341
      %v1343 = vpop.xlane.xlu0 %1342
      %v1344 = vadd.f32 %v1301, %v1302
      %1345 = vadd.xlane.f32.xlu0 %v1344
      %v1346 = vpop.xlane.xlu0 %1345
      %v1347 = vadd.f32 %v1303, %v1304
      %1348 = vadd.xlane.f32.xlu0 %v1347
      %v1349 = vpop.xlane.xlu0 %1348
      %v1350 = vadd.f32 %v1305, %v1306
      %1351 = vadd.xlane.f32.xlu0 %v1350
      %v1352 = vpop.xlane.xlu0 %1351
      %v1353 = vadd.f32 %v1307, %v1308
      %1354 = vadd.xlane.f32.xlu0 %v1353
      %v1355 = vpop.xlane.xlu0 %1354
      %v1356 = vadd.f32 %v1309, %v1310
      %1357 = vadd.xlane.f32.xlu0 %v1356
      %v1358 = vpop.xlane.xlu0 %1357
      %v1360 = vperm.slane %v643, 0
      %v1362 = vmul.f32 %v1313, %v1360
      %v1363 = vmul.f32 %v1316, %v1360
      %v1364 = vmul.f32 %v1319, %v1360
      %v1365 = vmul.f32 %v1322, %v1360
      %v1366 = vmul.f32 %v1325, %v1360
      %v1367 = vmul.f32 %v1328, %v1360
      %v1368 = vmul.f32 %v1331, %v1360
      %v1369 = vmul.f32 %v1334, %v1360
      %v1370 = vmul.f32 %v1337, %v1360
      %v1371 = vmul.f32 %v1340, %v1360
      %v1372 = vmul.f32 %v1343, %v1360
      %v1373 = vmul.f32 %v1346, %v1360
      %v1374 = vmul.f32 %v1349, %v1360
      %v1375 = vmul.f32 %v1352, %v1360
      %v1376 = vmul.f32 %v1355, %v1360
      %v1377 = vmul.f32 %v1358, %v1360
      %v1410 = vunpack.c.l.b16 %v652
      %v1411 = vunpack.c.l.b16 %v653
      %v1412 = vunpack.c.l.b16 %v654
      %v1413 = vunpack.c.l.b16 %v655
      %v1414 = vunpack.c.l.b16 %v656
      %v1415 = vunpack.c.l.b16 %v657
      %v1416 = vunpack.c.l.b16 %v658
      %v1417 = vunpack.c.l.b16 %v659
      %v1418 = vunpack.c.l.b16 %v660
      %v1419 = vunpack.c.l.b16 %v661
      %v1420 = vunpack.c.l.b16 %v662
      %v1421 = vunpack.c.l.b16 %v663
      %v1422 = vunpack.c.l.b16 %v664
      %v1423 = vunpack.c.l.b16 %v665
      %v1424 = vunpack.c.l.b16 %v666
      %v1425 = vunpack.c.l.b16 %v667
      %v1426 = vunpack.c.l.b16 %v668
      %v1427 = vunpack.c.l.b16 %v669
      %v1428 = vunpack.c.l.b16 %v670
      %v1429 = vunpack.c.l.b16 %v671
      %v1430 = vunpack.c.l.b16 %v672
      %v1431 = vunpack.c.l.b16 %v673
      %v1432 = vunpack.c.l.b16 %v674
      %v1433 = vunpack.c.l.b16 %v675
      %v1434 = vunpack.c.l.b16 %v676
      %v1435 = vunpack.c.l.b16 %v677
      %v1436 = vunpack.c.l.b16 %v678
      %v1437 = vunpack.c.l.b16 %v679
      %v1438 = vunpack.c.l.b16 %v680
      %v1439 = vunpack.c.l.b16 %v681
      %v1440 = vunpack.c.l.b16 %v682
      %v1441 = vunpack.c.l.b16 %v683
      %v1442 = vpack.c.b16 %v1411, %v1410
      %v1443 = vpack.c.b16 %v1413, %v1412
      %v1444 = vpack.c.b16 %v1415, %v1414
      %v1445 = vpack.c.b16 %v1417, %v1416
      %v1446 = vpack.c.b16 %v1419, %v1418
      %v1447 = vpack.c.b16 %v1421, %v1420
      %v1448 = vpack.c.b16 %v1423, %v1422
      %v1449 = vpack.c.b16 %v1425, %v1424
      %v1450 = vpack.c.b16 %v1427, %v1426
      %v1451 = vpack.c.b16 %v1429, %v1428
      %v1452 = vpack.c.b16 %v1431, %v1430
      %v1453 = vpack.c.b16 %v1433, %v1432
      %v1454 = vpack.c.b16 %v1435, %v1434
      %v1455 = vpack.c.b16 %v1437, %v1436
      %v1456 = vpack.c.b16 %v1439, %v1438
      %v1457 = vpack.c.b16 %v1441, %v1440
      %1474 = vmatpush.bf16.msra.mxu0 %v1449
      %1475 = vmatpush.bf16.msra.mxu0 %v1448
      %1476 = vmatpush.bf16.msra.mxu0 %v1447
      %1477 = vmatpush.bf16.msra.mxu0 %v1446
      %1478 = vmatpush.bf16.msra.mxu0 %v1445
      %1479 = vmatpush.bf16.msra.mxu0 %v1444
      %1480 = vmatpush.bf16.msra.mxu0 %v1443
      %1481 = vmatpush.bf16.msra.mxu0 %v1442
      %1482 = vmatmul.bf16.gmra.mxu0 %v1263
      %v1483 = vpop.f32.mrf.mxu0
      %v1484 = vadd.f32 %v1362, %v1483
      %v1485 = vpop.f32.mrf.mxu0
      %v1486 = vadd.f32 %v1363, %v1485
      %1487 = vmatmul.bf16.gmra.mxu0 %v1265
      %v1488 = vpop.f32.mrf.mxu0
      %v1489 = vadd.f32 %v1364, %v1488
      %v1490 = vpop.f32.mrf.mxu0
      %v1491 = vadd.f32 %v1365, %v1490
      %1492 = vmatmul.bf16.gmra.mxu0 %v1267
      %v1493 = vpop.f32.mrf.mxu0
      %v1494 = vadd.f32 %v1366, %v1493
      %v1495 = vpop.f32.mrf.mxu0
      %v1496 = vadd.f32 %v1367, %v1495
      %1497 = vmatmul.bf16.gmra.mxu0 %v1269
      %v1498 = vpop.f32.mrf.mxu0
      %v1499 = vadd.f32 %v1368, %v1498
      %v1500 = vpop.f32.mrf.mxu0
      %v1501 = vadd.f32 %v1369, %v1500
      %1502 = vmatmul.bf16.gmra.mxu0 %v1271
      %v1503 = vpop.f32.mrf.mxu0
      %v1504 = vadd.f32 %v1370, %v1503
      %v1505 = vpop.f32.mrf.mxu0
      %v1506 = vadd.f32 %v1371, %v1505
      %1507 = vmatmul.bf16.gmra.mxu0 %v1273
      %v1508 = vpop.f32.mrf.mxu0
      %v1509 = vadd.f32 %v1372, %v1508
      %v1510 = vpop.f32.mrf.mxu0
      %v1511 = vadd.f32 %v1373, %v1510
      %1512 = vmatmul.bf16.gmra.mxu0 %v1275
      %v1513 = vpop.f32.mrf.mxu0
      %v1514 = vadd.f32 %v1374, %v1513
      %v1515 = vpop.f32.mrf.mxu0
      %v1516 = vadd.f32 %v1375, %v1515
      %1517 = vmatmul.bf16.gmra.mxu0 %v1277
      %v1518 = vpop.f32.mrf.mxu0
      %v1519 = vadd.f32 %v1376, %v1518
      %v1520 = vpop.f32.mrf.mxu0
      %v1521 = vadd.f32 %v1377, %v1520
      %1522 = vdwg.mxu0
      %1523 = vmatpush.bf16.msra.mxu0 %v1457
      %1524 = vmatpush.bf16.msra.mxu0 %v1456
      %1525 = vmatpush.bf16.msra.mxu0 %v1455
      %1526 = vmatpush.bf16.msra.mxu0 %v1454
      %1527 = vmatpush.bf16.msra.mxu0 %v1453
      %1528 = vmatpush.bf16.msra.mxu0 %v1452
      %1529 = vmatpush.bf16.msra.mxu0 %v1451
      %1530 = vmatpush.bf16.msra.mxu0 %v1450
      %1531 = vmatmul.bf16.gmra.mxu0 %v1264
      %v1532 = vpop.f32.mrf.mxu0
      %v1533 = vadd.f32 %v1484, %v1532
      %v1534 = vpop.f32.mrf.mxu0
      %v1535 = vadd.f32 %v1486, %v1534
      %1536 = vmatmul.bf16.gmra.mxu0 %v1266
      %v1537 = vpop.f32.mrf.mxu0
      %v1538 = vadd.f32 %v1489, %v1537
      %v1539 = vpop.f32.mrf.mxu0
      %v1540 = vadd.f32 %v1491, %v1539
      %1541 = vmatmul.bf16.gmra.mxu0 %v1268
      %v1542 = vpop.f32.mrf.mxu0
      %v1543 = vadd.f32 %v1494, %v1542
      %v1544 = vpop.f32.mrf.mxu0
      %v1545 = vadd.f32 %v1496, %v1544
      %1546 = vmatmul.bf16.gmra.mxu0 %v1270
      %v1547 = vpop.f32.mrf.mxu0
      %v1548 = vadd.f32 %v1499, %v1547
      %v1549 = vpop.f32.mrf.mxu0
      %v1550 = vadd.f32 %v1501, %v1549
      %1551 = vmatmul.bf16.gmra.mxu0 %v1272
      %v1552 = vpop.f32.mrf.mxu0
      %v1553 = vadd.f32 %v1504, %v1552
      %v1554 = vpop.f32.mrf.mxu0
      %v1555 = vadd.f32 %v1506, %v1554
      %1556 = vmatmul.bf16.gmra.mxu0 %v1274
      %v1557 = vpop.f32.mrf.mxu0
      %v1558 = vadd.f32 %v1509, %v1557
      %v1559 = vpop.f32.mrf.mxu0
      %v1560 = vadd.f32 %v1511, %v1559
      %1561 = vmatmul.bf16.gmra.mxu0 %v1276
      %v1562 = vpop.f32.mrf.mxu0
      %v1563 = vadd.f32 %v1514, %v1562
      %v1564 = vpop.f32.mrf.mxu0
      %v1565 = vadd.f32 %v1516, %v1564
      %1566 = vmatmul.bf16.gmra.mxu0 %v1278
      %v1567 = vpop.f32.mrf.mxu0
      %v1568 = vadd.f32 %v1519, %v1567
      %v1569 = vpop.f32.mrf.mxu0
      %v1570 = vadd.f32 %v1521, %v1569
      %1571 = vdwg.mxu0
      %s1572 = scalar_lea.vmem %s1, 64
      %v1573 = vld [vmem:[%s1572] sm:$0xff]
      %v1574 = vld [vmem:[%s1572 + $0x8] sm:$0xff]
      %v1575 = vld [vmem:[%s1572 + $0x10] sm:$0xff]
      %v1576 = vld [vmem:[%s1572 + $0x18] sm:$0xff]
      %v1577 = vld [vmem:[%s1572 + $0x20] sm:$0xff]
      %v1578 = vld [vmem:[%s1572 + $0x28] sm:$0xff]
      %v1579 = vld [vmem:[%s1572 + $0x30] sm:$0xff]
      %v1580 = vld [vmem:[%s1572 + $0x38] sm:$0xff]
      %s1581 = scalar_lea.vmem %s2, 128
      %v1582 = vld [vmem:[%s1581] sm:$0xf]
      %v1583 = vld [vmem:[%s1581 + $0x4] sm:$0xf]
      %v1584 = vld [vmem:[%s1581 + $0x8] sm:$0xf]
      %v1585 = vld [vmem:[%s1581 + $0xc] sm:$0xf]
      %v1586 = vld [vmem:[%s1581 + $0x10] sm:$0xf]
      %v1587 = vld [vmem:[%s1581 + $0x14] sm:$0xf]
      %v1588 = vld [vmem:[%s1581 + $0x18] sm:$0xf]
      %v1589 = vld [vmem:[%s1581 + $0x1c] sm:$0xf]
      %v1590 = vld [vmem:[%s1581 + $0x20] sm:$0xf]
      %v1591 = vld [vmem:[%s1581 + $0x24] sm:$0xf]
      %v1592 = vld [vmem:[%s1581 + $0x28] sm:$0xf]
      %v1593 = vld [vmem:[%s1581 + $0x2c] sm:$0xf]
      %v1594 = vld [vmem:[%s1581 + $0x30] sm:$0xf]
      %v1595 = vld [vmem:[%s1581 + $0x34] sm:$0xf]
      %v1596 = vld [vmem:[%s1581 + $0x38] sm:$0xf]
      %v1597 = vld [vmem:[%s1581 + $0x3c] sm:$0xf]
      %v1598 = vld [vmem:[%s1581 + $0x40] sm:$0xf]
      %v1599 = vld [vmem:[%s1581 + $0x44] sm:$0xf]
      %v1600 = vld [vmem:[%s1581 + $0x48] sm:$0xf]
      %v1601 = vld [vmem:[%s1581 + $0x4c] sm:$0xf]
      %v1602 = vld [vmem:[%s1581 + $0x50] sm:$0xf]
      %v1603 = vld [vmem:[%s1581 + $0x54] sm:$0xf]
      %v1604 = vld [vmem:[%s1581 + $0x58] sm:$0xf]
      %v1605 = vld [vmem:[%s1581 + $0x5c] sm:$0xf]
      %v1606 = vld [vmem:[%s1581 + $0x60] sm:$0xf]
      %v1607 = vld [vmem:[%s1581 + $0x64] sm:$0xf]
      %v1608 = vld [vmem:[%s1581 + $0x68] sm:$0xf]
      %v1609 = vld [vmem:[%s1581 + $0x6c] sm:$0xf]
      %v1610 = vld [vmem:[%s1581 + $0x70] sm:$0xf]
      %v1611 = vld [vmem:[%s1581 + $0x74] sm:$0xf]
      %v1612 = vld [vmem:[%s1581 + $0x78] sm:$0xf]
      %v1613 = vld [vmem:[%s1581 + $0x7c] sm:$0xf]
      %1614 = vset.pattern.permute.xlu0 1
      %1615 = vperm.xlu0 %1614, %v604
      %v1616 = vpop.permute.xlu0 %1615
      %1618 = vset.pattern.permute.xlu0 1
      %1619 = vperm.xlu0 %1618, %v606
      %v1620 = vpop.permute.xlu0 %1619
      %1622 = vset.pattern.permute.xlu0 1
      %1623 = vperm.xlu0 %1622, %v609
      %v1624 = vpop.permute.xlu0 %1623
      %1626 = vset.pattern.permute.xlu0 1
      %1627 = vperm.xlu0 %1626, %v611
      %v1628 = vpop.permute.xlu0 %1627
      %1630 = vset.pattern.permute.xlu0 1
      %1631 = vperm.xlu0 %1630, %v614
      %v1632 = vpop.permute.xlu0 %1631
      %1634 = vset.pattern.permute.xlu0 1
      %1635 = vperm.xlu0 %1634, %v616
      %v1636 = vpop.permute.xlu0 %1635
      %1638 = vset.pattern.permute.xlu0 1
      %1639 = vperm.xlu0 %1638, %v619
      %v1640 = vpop.permute.xlu0 %1639
      %1642 = vset.pattern.permute.xlu0 1
      %1643 = vperm.xlu0 %1642, %v621
      %v1644 = vpop.permute.xlu0 %1643
      %1646 = vset.pattern.permute.xlu0 1
      %1647 = vperm.xlu0 %1646, %v624
      %v1648 = vpop.permute.xlu0 %1647
      %1650 = vset.pattern.permute.xlu0 1
      %1651 = vperm.xlu0 %1650, %v626
      %v1652 = vpop.permute.xlu0 %1651
      %1654 = vset.pattern.permute.xlu0 1
      %1655 = vperm.xlu0 %1654, %v629
      %v1656 = vpop.permute.xlu0 %1655
      %1658 = vset.pattern.permute.xlu0 1
      %1659 = vperm.xlu0 %1658, %v631
      %v1660 = vpop.permute.xlu0 %1659
      %1662 = vset.pattern.permute.xlu0 1
      %1663 = vperm.xlu0 %1662, %v634
      %v1664 = vpop.permute.xlu0 %1663
      %1666 = vset.pattern.permute.xlu0 1
      %1667 = vperm.xlu0 %1666, %v636
      %v1668 = vpop.permute.xlu0 %1667
      %1670 = vset.pattern.permute.xlu0 1
      %1671 = vperm.xlu0 %1670, %v639
      %v1672 = vpop.permute.xlu0 %1671
      %1674 = vset.pattern.permute.xlu0 1
      %1675 = vperm.xlu0 %1674, %v641
      %v1676 = vpop.permute.xlu0 %1675
      %v1678 = vmul.f32 %v450, %v1616
      %v1679 = vmul.f32 %v451, %v1616
      %v1680 = vmul.f32 %v452, %v1620
      %v1681 = vmul.f32 %v453, %v1620
      %v1682 = vmul.f32 %v454, %v1624
      %v1683 = vmul.f32 %v455, %v1624
      %v1684 = vmul.f32 %v456, %v1628
      %v1685 = vmul.f32 %v457, %v1628
      %v1686 = vmul.f32 %v458, %v1632
      %v1687 = vmul.f32 %v459, %v1632
      %v1688 = vmul.f32 %v460, %v1636
      %v1689 = vmul.f32 %v461, %v1636
      %v1690 = vmul.f32 %v462, %v1640
      %v1691 = vmul.f32 %v463, %v1640
      %v1692 = vmul.f32 %v464, %v1644
      %v1693 = vmul.f32 %v465, %v1644
      %v1694 = vmul.f32 %v466, %v1648
      %v1695 = vmul.f32 %v467, %v1648
      %v1696 = vmul.f32 %v468, %v1652
      %v1697 = vmul.f32 %v469, %v1652
      %v1698 = vmul.f32 %v470, %v1656
      %v1699 = vmul.f32 %v471, %v1656
      %v1700 = vmul.f32 %v472, %v1660
      %v1701 = vmul.f32 %v473, %v1660
      %v1702 = vmul.f32 %v474, %v1664
      %v1703 = vmul.f32 %v475, %v1664
      %v1704 = vmul.f32 %v476, %v1668
      %v1705 = vmul.f32 %v477, %v1668
      %v1706 = vmul.f32 %v478, %v1672
      %v1707 = vmul.f32 %v479, %v1672
      %v1708 = vmul.f32 %v480, %v1676
      %v1709 = vmul.f32 %v481, %v1676
      %1710 = vrot.lane.b32.xlu0 %v530, 64
      %v1711 = vpop.permute.xlu0 %1710
      %1712 = vrot.lane.b32.xlu0 %v531, 64
      %v1713 = vpop.permute.xlu0 %1712
      %1714 = vrot.lane.b32.xlu0 %v532, 64
      %v1715 = vpop.permute.xlu0 %1714
      %1716 = vrot.lane.b32.xlu0 %v533, 64
      %v1717 = vpop.permute.xlu0 %1716
      %1718 = vrot.lane.b32.xlu0 %v534, 64
      %v1719 = vpop.permute.xlu0 %1718
      %1720 = vrot.lane.b32.xlu0 %v535, 64
      %v1721 = vpop.permute.xlu0 %1720
      %1722 = vrot.lane.b32.xlu0 %v536, 64
      %v1723 = vpop.permute.xlu0 %1722
      %1724 = vrot.lane.b32.xlu0 %v537, 64
      %v1725 = vpop.permute.xlu0 %1724
      %v1734 = vunpack.c.l.b16 %v1573
      %v1735 = vunpack.c.h.b16 %v1573
      %v1736 = vunpack.c.l.b16 %v1574
      %v1737 = vunpack.c.h.b16 %v1574
      %v1738 = vunpack.c.l.b16 %v1575
      %v1739 = vunpack.c.h.b16 %v1575
      %v1740 = vunpack.c.l.b16 %v1576
      %v1741 = vunpack.c.h.b16 %v1576
      %v1742 = vunpack.c.l.b16 %v1577
      %v1743 = vunpack.c.h.b16 %v1577
      %v1744 = vunpack.c.l.b16 %v1578
      %v1745 = vunpack.c.h.b16 %v1578
      %v1746 = vunpack.c.l.b16 %v1579
      %v1747 = vunpack.c.h.b16 %v1579
      %v1748 = vunpack.c.l.b16 %v1580
      %v1749 = vunpack.c.h.b16 %v1580
      %v1750 = vpack.c.b16 %v1736, %v1734
      %v1751 = vpack.c.b16 %v1737, %v1735
      %v1752 = vpack.c.b16 %v1740, %v1738
      %v1753 = vpack.c.b16 %v1741, %v1739
      %v1754 = vpack.c.b16 %v1744, %v1742
      %v1755 = vpack.c.b16 %v1745, %v1743
      %v1756 = vpack.c.b16 %v1748, %v1746
      %v1757 = vpack.c.b16 %v1749, %v1747
      %v1767 = vsel %vm836, %v1711, 0
      %v1770 = vsel %vm836, %v1713, 0
      %v1773 = vsel %vm836, %v1715, 0
      %v1776 = vsel %vm836, %v1717, 0
      %v1779 = vsel %vm836, %v1719, 0
      %v1782 = vsel %vm836, %v1721, 0
      %v1785 = vsel %vm836, %v1723, 0
      %v1788 = vsel %vm836, %v1725, 0
      %1790 = vmatpush.bf16.msra.mxu0 0
      %1791 = vmatpush.bf16.msra.mxu0 0
      %1792 = vmatpush.bf16.msra.mxu0 0
      %1793 = vmatpush.bf16.msra.mxu0 0
      %1794 = vmatpush.bf16.msra.mxu0 %v1756
      %1795 = vmatpush.bf16.msra.mxu0 %v1754
      %1796 = vmatpush.bf16.msra.mxu0 %v1752
      %1797 = vmatpush.bf16.msra.mxu0 %v1750
      %1798 = vmatmul.bf16.gmra.mxu0 %v1767
      %v1799 = vpop.f32.mrf.mxu0
      %v1800 = vadd.f32 %v1678, %v1799
      %v1801 = vpop.f32.mrf.mxu0
      %v1802 = vadd.f32 %v1680, %v1801
      %1803 = vmatmul.bf16.gmra.mxu0 %v1770
      %v1804 = vpop.f32.mrf.mxu0
      %v1805 = vadd.f32 %v1682, %v1804
      %v1806 = vpop.f32.mrf.mxu0
      %v1807 = vadd.f32 %v1684, %v1806
      %1808 = vmatmul.bf16.gmra.mxu0 %v1773
      %v1809 = vpop.f32.mrf.mxu0
      %v1810 = vadd.f32 %v1686, %v1809
      %v1811 = vpop.f32.mrf.mxu0
      %v1812 = vadd.f32 %v1688, %v1811
      %1813 = vmatmul.bf16.gmra.mxu0 %v1776
      %v1814 = vpop.f32.mrf.mxu0
      %v1815 = vadd.f32 %v1690, %v1814
      %v1816 = vpop.f32.mrf.mxu0
      %v1817 = vadd.f32 %v1692, %v1816
      %1818 = vmatmul.bf16.gmra.mxu0 %v1779
      %v1819 = vpop.f32.mrf.mxu0
      %v1820 = vadd.f32 %v1694, %v1819
      %v1821 = vpop.f32.mrf.mxu0
      %v1822 = vadd.f32 %v1696, %v1821
      %1823 = vmatmul.bf16.gmra.mxu0 %v1782
      %v1824 = vpop.f32.mrf.mxu0
      %v1825 = vadd.f32 %v1698, %v1824
      %v1826 = vpop.f32.mrf.mxu0
      %v1827 = vadd.f32 %v1700, %v1826
      %1828 = vmatmul.bf16.gmra.mxu0 %v1785
      %v1829 = vpop.f32.mrf.mxu0
      %v1830 = vadd.f32 %v1702, %v1829
      %v1831 = vpop.f32.mrf.mxu0
      %v1832 = vadd.f32 %v1704, %v1831
      %1833 = vmatmul.bf16.gmra.mxu0 %v1788
      %v1834 = vpop.f32.mrf.mxu0
      %v1835 = vadd.f32 %v1706, %v1834
      %v1836 = vpop.f32.mrf.mxu0
      %v1837 = vadd.f32 %v1708, %v1836
      %1838 = vdwg.mxu0
      %1839 = vmatpush.bf16.msra.mxu0 0
      %1840 = vmatpush.bf16.msra.mxu0 0
      %1841 = vmatpush.bf16.msra.mxu0 0
      %1842 = vmatpush.bf16.msra.mxu0 0
      %1843 = vmatpush.bf16.msra.mxu0 %v1757
      %1844 = vmatpush.bf16.msra.mxu0 %v1755
      %1845 = vmatpush.bf16.msra.mxu0 %v1753
      %1846 = vmatpush.bf16.msra.mxu0 %v1751
      %1847 = vmatmul.bf16.gmra.mxu0 %v1767
      %v1848 = vpop.f32.mrf.mxu0
      %v1849 = vadd.f32 %v1679, %v1848
      %v1850 = vpop.f32.mrf.mxu0
      %v1851 = vadd.f32 %v1681, %v1850
      %1852 = vmatmul.bf16.gmra.mxu0 %v1770
      %v1853 = vpop.f32.mrf.mxu0
      %v1854 = vadd.f32 %v1683, %v1853
      %v1855 = vpop.f32.mrf.mxu0
      %v1856 = vadd.f32 %v1685, %v1855
      %1857 = vmatmul.bf16.gmra.mxu0 %v1773
      %v1858 = vpop.f32.mrf.mxu0
      %v1859 = vadd.f32 %v1687, %v1858
      %v1860 = vpop.f32.mrf.mxu0
      %v1861 = vadd.f32 %v1689, %v1860
      %1862 = vmatmul.bf16.gmra.mxu0 %v1776
      %v1863 = vpop.f32.mrf.mxu0
      %v1864 = vadd.f32 %v1691, %v1863
      %v1865 = vpop.f32.mrf.mxu0
      %v1866 = vadd.f32 %v1693, %v1865
      %1867 = vmatmul.bf16.gmra.mxu0 %v1779
      %v1868 = vpop.f32.mrf.mxu0
      %v1869 = vadd.f32 %v1695, %v1868
      %v1870 = vpop.f32.mrf.mxu0
      %v1871 = vadd.f32 %v1697, %v1870
      %1872 = vmatmul.bf16.gmra.mxu0 %v1782
      %v1873 = vpop.f32.mrf.mxu0
      %v1874 = vadd.f32 %v1699, %v1873
      %v1875 = vpop.f32.mrf.mxu0
      %v1876 = vadd.f32 %v1701, %v1875
      %1877 = vmatmul.bf16.gmra.mxu0 %v1785
      %v1878 = vpop.f32.mrf.mxu0
      %v1879 = vadd.f32 %v1703, %v1878
      %v1880 = vpop.f32.mrf.mxu0
      %v1881 = vadd.f32 %v1705, %v1880
      %1882 = vmatmul.bf16.gmra.mxu0 %v1788
      %v1883 = vpop.f32.mrf.mxu0
      %v1884 = vadd.f32 %v1707, %v1883
      %v1885 = vpop.f32.mrf.mxu0
      %v1886 = vadd.f32 %v1709, %v1885
      %1887 = vdwg.mxu0
      %v1888 = vsel %vm418, %v1800, -1e+30
      %v1889 = vsel %vm419, %v1849, -1e+30
      %v1890 = vsel %vm420, %v1802, -1e+30
      %v1891 = vsel %vm421, %v1851, -1e+30
      %v1892 = vsel %vm422, %v1805, -1e+30
      %v1893 = vsel %vm423, %v1854, -1e+30
      %v1894 = vsel %vm424, %v1807, -1e+30
      %v1895 = vsel %vm425, %v1856, -1e+30
      %v1896 = vsel %vm426, %v1810, -1e+30
      %v1897 = vsel %vm427, %v1859, -1e+30
      %v1898 = vsel %vm428, %v1812, -1e+30
      %v1899 = vsel %vm429, %v1861, -1e+30
      %v1900 = vsel %vm430, %v1815, -1e+30
      %v1901 = vsel %vm431, %v1864, -1e+30
      %v1902 = vsel %vm432, %v1817, -1e+30
      %v1903 = vsel %vm433, %v1866, -1e+30
      %v1904 = vsel %vm434, %v1820, -1e+30
      %v1905 = vsel %vm435, %v1869, -1e+30
      %v1906 = vsel %vm436, %v1822, -1e+30
      %v1907 = vsel %vm437, %v1871, -1e+30
      %v1908 = vsel %vm438, %v1825, -1e+30
      %v1909 = vsel %vm439, %v1874, -1e+30
      %v1910 = vsel %vm440, %v1827, -1e+30
      %v1911 = vsel %vm441, %v1876, -1e+30
      %v1912 = vsel %vm442, %v1830, -1e+30
      %v1913 = vsel %vm443, %v1879, -1e+30
      %v1914 = vsel %vm444, %v1832, -1e+30
      %v1915 = vsel %vm445, %v1881, -1e+30
      %v1916 = vsel %vm446, %v1835, -1e+30
      %v1917 = vsel %vm447, %v1884, -1e+30
      %v1918 = vsel %vm448, %v1837, -1e+30
      %v1919 = vsel %vm449, %v1886, -1e+30
      %v1920 = vmax.f32 %v1888, %v1889
      %1921 = vmax.xlane.f32.xlu0 %v1920
      %v1922 = vpop.xlane.xlu0 %1921
      %v1923 = vmax.f32 %v1890, %v1891
      %1924 = vmax.xlane.f32.xlu0 %v1923
      %v1925 = vpop.xlane.xlu0 %1924
      %v1926 = vmax.f32 %v1892, %v1893
      %1927 = vmax.xlane.f32.xlu0 %v1926
      %v1928 = vpop.xlane.xlu0 %1927
      %v1929 = vmax.f32 %v1894, %v1895
      %1930 = vmax.xlane.f32.xlu0 %v1929
      %v1931 = vpop.xlane.xlu0 %1930
      %v1932 = vmax.f32 %v1896, %v1897
      %1933 = vmax.xlane.f32.xlu0 %v1932
      %v1934 = vpop.xlane.xlu0 %1933
      %v1935 = vmax.f32 %v1898, %v1899
      %1936 = vmax.xlane.f32.xlu0 %v1935
      %v1937 = vpop.xlane.xlu0 %1936
      %v1938 = vmax.f32 %v1900, %v1901
      %1939 = vmax.xlane.f32.xlu0 %v1938
      %v1940 = vpop.xlane.xlu0 %1939
      %v1941 = vmax.f32 %v1902, %v1903
      %1942 = vmax.xlane.f32.xlu0 %v1941
      %v1943 = vpop.xlane.xlu0 %1942
      %v1944 = vmax.f32 %v1904, %v1905
      %1945 = vmax.xlane.f32.xlu0 %v1944
      %v1946 = vpop.xlane.xlu0 %1945
      %v1947 = vmax.f32 %v1906, %v1907
      %1948 = vmax.xlane.f32.xlu0 %v1947
      %v1949 = vpop.xlane.xlu0 %1948
      %v1950 = vmax.f32 %v1908, %v1909
      %1951 = vmax.xlane.f32.xlu0 %v1950
      %v1952 = vpop.xlane.xlu0 %1951
      %v1953 = vmax.f32 %v1910, %v1911
      %1954 = vmax.xlane.f32.xlu0 %v1953
      %v1955 = vpop.xlane.xlu0 %1954
      %v1956 = vmax.f32 %v1912, %v1913
      %1957 = vmax.xlane.f32.xlu0 %v1956
      %v1958 = vpop.xlane.xlu0 %1957
      %v1959 = vmax.f32 %v1914, %v1915
      %1960 = vmax.xlane.f32.xlu0 %v1959
      %v1961 = vpop.xlane.xlu0 %1960
      %v1962 = vmax.f32 %v1916, %v1917
      %1963 = vmax.xlane.f32.xlu0 %v1962
      %v1964 = vpop.xlane.xlu0 %1963
      %v1965 = vmax.f32 %v1918, %v1919
      %1966 = vmax.xlane.f32.xlu0 %v1965
      %v1967 = vpop.xlane.xlu0 %1966
      %v1968 = vsub.f32 %v1888, %v1922
      %v1969 = vsub.f32 %v1889, %v1922
      %v1970 = vsub.f32 %v1890, %v1925
      %v1971 = vsub.f32 %v1891, %v1925
      %v1972 = vsub.f32 %v1892, %v1928
      %v1973 = vsub.f32 %v1893, %v1928
      %v1974 = vsub.f32 %v1894, %v1931
      %v1975 = vsub.f32 %v1895, %v1931
      %v1976 = vsub.f32 %v1896, %v1934
      %v1977 = vsub.f32 %v1897, %v1934
      %v1978 = vsub.f32 %v1898, %v1937
      %v1979 = vsub.f32 %v1899, %v1937
      %v1980 = vsub.f32 %v1900, %v1940
      %v1981 = vsub.f32 %v1901, %v1940
      %v1982 = vsub.f32 %v1902, %v1943
      %v1983 = vsub.f32 %v1903, %v1943
      %v1984 = vsub.f32 %v1904, %v1946
      %v1985 = vsub.f32 %v1905, %v1946
      %v1986 = vsub.f32 %v1906, %v1949
      %v1987 = vsub.f32 %v1907, %v1949
      %v1988 = vsub.f32 %v1908, %v1952
      %v1989 = vsub.f32 %v1909, %v1952
      %v1990 = vsub.f32 %v1910, %v1955
      %v1991 = vsub.f32 %v1911, %v1955
      %v1992 = vsub.f32 %v1912, %v1958
      %v1993 = vsub.f32 %v1913, %v1958
      %v1994 = vsub.f32 %v1914, %v1961
      %v1995 = vsub.f32 %v1915, %v1961
      %v1996 = vsub.f32 %v1916, %v1964
      %v1997 = vsub.f32 %v1917, %v1964
      %v1998 = vsub.f32 %v1918, %v1967
      %v1999 = vsub.f32 %v1919, %v1967
      %v2000 = vmul.f32 %v1968, 1.442695
      %v2001 = vpow.pop %v2000
      %v2002 = vmul.f32 %v1969, 1.442695
      %v2003 = vpow.pop %v2002
      %v2004 = vmul.f32 %v1970, 1.442695
      %v2005 = vpow.pop %v2004
      %v2006 = vmul.f32 %v1971, 1.442695
      %v2007 = vpow.pop %v2006
      %v2008 = vmul.f32 %v1972, 1.442695
      %v2009 = vpow.pop %v2008
      %v2010 = vmul.f32 %v1973, 1.442695
      %v2011 = vpow.pop %v2010
      %v2012 = vmul.f32 %v1974, 1.442695
      %v2013 = vpow.pop %v2012
      %v2014 = vmul.f32 %v1975, 1.442695
      %v2015 = vpow.pop %v2014
      %v2016 = vmul.f32 %v1976, 1.442695
      %v2017 = vpow.pop %v2016
      %v2018 = vmul.f32 %v1977, 1.442695
      %v2019 = vpow.pop %v2018
      %v2020 = vmul.f32 %v1978, 1.442695
      %v2021 = vpow.pop %v2020
      %v2022 = vmul.f32 %v1979, 1.442695
      %v2023 = vpow.pop %v2022
      %v2024 = vmul.f32 %v1980, 1.442695
      %v2025 = vpow.pop %v2024
      %v2026 = vmul.f32 %v1981, 1.442695
      %v2027 = vpow.pop %v2026
      %v2028 = vmul.f32 %v1982, 1.442695
      %v2029 = vpow.pop %v2028
      %v2030 = vmul.f32 %v1983, 1.442695
      %v2031 = vpow.pop %v2030
      %v2032 = vmul.f32 %v1984, 1.442695
      %v2033 = vpow.pop %v2032
      %v2034 = vmul.f32 %v1985, 1.442695
      %v2035 = vpow.pop %v2034
      %v2036 = vmul.f32 %v1986, 1.442695
      %v2037 = vpow.pop %v2036
      %v2038 = vmul.f32 %v1987, 1.442695
      %v2039 = vpow.pop %v2038
      %v2040 = vmul.f32 %v1988, 1.442695
      %v2041 = vpow.pop %v2040
      %v2042 = vmul.f32 %v1989, 1.442695
      %v2043 = vpow.pop %v2042
      %v2044 = vmul.f32 %v1990, 1.442695
      %v2045 = vpow.pop %v2044
      %v2046 = vmul.f32 %v1991, 1.442695
      %v2047 = vpow.pop %v2046
      %v2048 = vmul.f32 %v1992, 1.442695
      %v2049 = vpow.pop %v2048
      %v2050 = vmul.f32 %v1993, 1.442695
      %v2051 = vpow.pop %v2050
      %v2052 = vmul.f32 %v1994, 1.442695
      %v2053 = vpow.pop %v2052
      %v2054 = vmul.f32 %v1995, 1.442695
      %v2055 = vpow.pop %v2054
      %v2056 = vmul.f32 %v1996, 1.442695
      %v2057 = vpow.pop %v2056
      %v2058 = vmul.f32 %v1997, 1.442695
      %v2059 = vpow.pop %v2058
      %v2060 = vmul.f32 %v1998, 1.442695
      %v2061 = vpow.pop %v2060
      %v2062 = vmul.f32 %v1999, 1.442695
      %v2063 = vpow.pop %v2062
      %v2064 = vadd.f32 %v2001, %v2003
      %2065 = vadd.xlane.f32.xlu0 %v2064
      %v2066 = vpop.xlane.xlu0 %2065
      %v2067 = vadd.f32 %v2005, %v2007
      %2068 = vadd.xlane.f32.xlu0 %v2067
      %v2069 = vpop.xlane.xlu0 %2068
      %v2070 = vadd.f32 %v2009, %v2011
      %2071 = vadd.xlane.f32.xlu0 %v2070
      %v2072 = vpop.xlane.xlu0 %2071
      %v2073 = vadd.f32 %v2013, %v2015
      %2074 = vadd.xlane.f32.xlu0 %v2073
      %v2075 = vpop.xlane.xlu0 %2074
      %v2076 = vadd.f32 %v2017, %v2019
      %2077 = vadd.xlane.f32.xlu0 %v2076
      %v2078 = vpop.xlane.xlu0 %2077
      %v2079 = vadd.f32 %v2021, %v2023
      %2080 = vadd.xlane.f32.xlu0 %v2079
      %v2081 = vpop.xlane.xlu0 %2080
      %v2082 = vadd.f32 %v2025, %v2027
      %2083 = vadd.xlane.f32.xlu0 %v2082
      %v2084 = vpop.xlane.xlu0 %2083
      %v2085 = vadd.f32 %v2029, %v2031
      %2086 = vadd.xlane.f32.xlu0 %v2085
      %v2087 = vpop.xlane.xlu0 %2086
      %v2088 = vadd.f32 %v2033, %v2035
      %2089 = vadd.xlane.f32.xlu0 %v2088
      %v2090 = vpop.xlane.xlu0 %2089
      %v2091 = vadd.f32 %v2037, %v2039
      %2092 = vadd.xlane.f32.xlu0 %v2091
      %v2093 = vpop.xlane.xlu0 %2092
      %v2094 = vadd.f32 %v2041, %v2043
      %2095 = vadd.xlane.f32.xlu0 %v2094
      %v2096 = vpop.xlane.xlu0 %2095
      %v2097 = vadd.f32 %v2045, %v2047
      %2098 = vadd.xlane.f32.xlu0 %v2097
      %v2099 = vpop.xlane.xlu0 %2098
      %v2100 = vadd.f32 %v2049, %v2051
      %2101 = vadd.xlane.f32.xlu0 %v2100
      %v2102 = vpop.xlane.xlu0 %2101
      %v2103 = vadd.f32 %v2053, %v2055
      %2104 = vadd.xlane.f32.xlu0 %v2103
      %v2105 = vpop.xlane.xlu0 %2104
      %v2106 = vadd.f32 %v2057, %v2059
      %2107 = vadd.xlane.f32.xlu0 %v2106
      %v2108 = vpop.xlane.xlu0 %2107
      %v2109 = vadd.f32 %v2061, %v2063
      %2110 = vadd.xlane.f32.xlu0 %v2109
      %v2111 = vpop.xlane.xlu0 %2110
      %vm2112 = vcmp.gt.f32.partialorder %v1922, -5e+29
      %vm2113 = vcmp.gt.f32.partialorder %v1925, -5e+29
      %vm2114 = vcmp.gt.f32.partialorder %v1928, -5e+29
      %vm2115 = vcmp.gt.f32.partialorder %v1931, -5e+29
      %vm2116 = vcmp.gt.f32.partialorder %v1934, -5e+29
      %vm2117 = vcmp.gt.f32.partialorder %v1937, -5e+29
      %vm2118 = vcmp.gt.f32.partialorder %v1940, -5e+29
      %vm2119 = vcmp.gt.f32.partialorder %v1943, -5e+29
      %vm2120 = vcmp.gt.f32.partialorder %v1946, -5e+29
      %vm2121 = vcmp.gt.f32.partialorder %v1949, -5e+29
      %vm2122 = vcmp.gt.f32.partialorder %v1952, -5e+29
      %vm2123 = vcmp.gt.f32.partialorder %v1955, -5e+29
      %vm2124 = vcmp.gt.f32.partialorder %v1958, -5e+29
      %vm2125 = vcmp.gt.f32.partialorder %v1961, -5e+29
      %vm2126 = vcmp.gt.f32.partialorder %v1964, -5e+29
      %vm2127 = vcmp.gt.f32.partialorder %v1967, -5e+29
      %v2128 = vrcp.pop %v2066
      %v2129 = vrcp.pop %v2069
      %v2130 = vrcp.pop %v2072
      %v2131 = vrcp.pop %v2075
      %v2132 = vrcp.pop %v2078
      %v2133 = vrcp.pop %v2081
      %v2134 = vrcp.pop %v2084
      %v2135 = vrcp.pop %v2087
      %v2136 = vrcp.pop %v2090
      %v2137 = vrcp.pop %v2093
      %v2138 = vrcp.pop %v2096
      %v2139 = vrcp.pop %v2099
      %v2140 = vrcp.pop %v2102
      %v2141 = vrcp.pop %v2105
      %v2142 = vrcp.pop %v2108
      %v2143 = vrcp.pop %v2111
      %v2144 = vsel %vm2112, %v2128, 0.0
      %v2145 = vsel %vm2113, %v2129, 0.0
      %v2146 = vsel %vm2114, %v2130, 0.0
      %v2147 = vsel %vm2115, %v2131, 0.0
      %v2148 = vsel %vm2116, %v2132, 0.0
      %v2149 = vsel %vm2117, %v2133, 0.0
      %v2150 = vsel %vm2118, %v2134, 0.0
      %v2151 = vsel %vm2119, %v2135, 0.0
      %v2152 = vsel %vm2120, %v2136, 0.0
      %v2153 = vsel %vm2121, %v2137, 0.0
      %v2154 = vsel %vm2122, %v2138, 0.0
      %v2155 = vsel %vm2123, %v2139, 0.0
      %v2156 = vsel %vm2124, %v2140, 0.0
      %v2157 = vsel %vm2125, %v2141, 0.0
      %v2158 = vsel %vm2126, %v2142, 0.0
      %v2159 = vsel %vm2127, %v2143, 0.0
      %v2160 = vmul.f32 %v2001, %v2144
      %v2161 = vmul.f32 %v2003, %v2144
      %v2162 = vmul.f32 %v2005, %v2145
      %v2163 = vmul.f32 %v2007, %v2145
      %v2164 = vmul.f32 %v2009, %v2146
      %v2165 = vmul.f32 %v2011, %v2146
      %v2166 = vmul.f32 %v2013, %v2147
      %v2167 = vmul.f32 %v2015, %v2147
      %v2168 = vmul.f32 %v2017, %v2148
      %v2169 = vmul.f32 %v2019, %v2148
      %v2170 = vmul.f32 %v2021, %v2149
      %v2171 = vmul.f32 %v2023, %v2149
      %v2172 = vmul.f32 %v2025, %v2150
      %v2173 = vmul.f32 %v2027, %v2150
      %v2174 = vmul.f32 %v2029, %v2151
      %v2175 = vmul.f32 %v2031, %v2151
      %v2176 = vmul.f32 %v2033, %v2152
      %v2177 = vmul.f32 %v2035, %v2152
      %v2178 = vmul.f32 %v2037, %v2153
      %v2179 = vmul.f32 %v2039, %v2153
      %v2180 = vmul.f32 %v2041, %v2154
      %v2181 = vmul.f32 %v2043, %v2154
      %v2182 = vmul.f32 %v2045, %v2155
      %v2183 = vmul.f32 %v2047, %v2155
      %v2184 = vmul.f32 %v2049, %v2156
      %v2185 = vmul.f32 %v2051, %v2156
      %v2186 = vmul.f32 %v2053, %v2157
      %v2187 = vmul.f32 %v2055, %v2157
      %v2188 = vmul.f32 %v2057, %v2158
      %v2189 = vmul.f32 %v2059, %v2158
      %v2190 = vmul.f32 %v2061, %v2159
      %v2191 = vmul.f32 %v2063, %v2159
      %v2192 = vpack.c.bf16 %v2162, %v2160
      %v2193 = vpack.c.bf16 %v2163, %v2161
      %v2194 = vpack.c.bf16 %v2166, %v2164
      %v2195 = vpack.c.bf16 %v2167, %v2165
      %v2196 = vpack.c.bf16 %v2170, %v2168
      %v2197 = vpack.c.bf16 %v2171, %v2169
      %v2198 = vpack.c.bf16 %v2174, %v2172
      %v2199 = vpack.c.bf16 %v2175, %v2173
      %v2200 = vpack.c.bf16 %v2178, %v2176
      %v2201 = vpack.c.bf16 %v2179, %v2177
      %v2202 = vpack.c.bf16 %v2182, %v2180
      %v2203 = vpack.c.bf16 %v2183, %v2181
      %v2204 = vpack.c.bf16 %v2186, %v2184
      %v2205 = vpack.c.bf16 %v2187, %v2185
      %v2206 = vpack.c.bf16 %v2190, %v2188
      %v2207 = vpack.c.bf16 %v2191, %v2189
      %v2208 = vmul.f32 %v2160, %v450
      %v2209 = vmul.f32 %v2161, %v451
      %v2210 = vmul.f32 %v2162, %v452
      %v2211 = vmul.f32 %v2163, %v453
      %v2212 = vmul.f32 %v2164, %v454
      %v2213 = vmul.f32 %v2165, %v455
      %v2214 = vmul.f32 %v2166, %v456
      %v2215 = vmul.f32 %v2167, %v457
      %v2216 = vmul.f32 %v2168, %v458
      %v2217 = vmul.f32 %v2169, %v459
      %v2218 = vmul.f32 %v2170, %v460
      %v2219 = vmul.f32 %v2171, %v461
      %v2220 = vmul.f32 %v2172, %v462
      %v2221 = vmul.f32 %v2173, %v463
      %v2222 = vmul.f32 %v2174, %v464
      %v2223 = vmul.f32 %v2175, %v465
      %v2224 = vmul.f32 %v2176, %v466
      %v2225 = vmul.f32 %v2177, %v467
      %v2226 = vmul.f32 %v2178, %v468
      %v2227 = vmul.f32 %v2179, %v469
      %v2228 = vmul.f32 %v2180, %v470
      %v2229 = vmul.f32 %v2181, %v471
      %v2230 = vmul.f32 %v2182, %v472
      %v2231 = vmul.f32 %v2183, %v473
      %v2232 = vmul.f32 %v2184, %v474
      %v2233 = vmul.f32 %v2185, %v475
      %v2234 = vmul.f32 %v2186, %v476
      %v2235 = vmul.f32 %v2187, %v477
      %v2236 = vmul.f32 %v2188, %v478
      %v2237 = vmul.f32 %v2189, %v479
      %v2238 = vmul.f32 %v2190, %v480
      %v2239 = vmul.f32 %v2191, %v481
      %v2240 = vadd.f32 %v2208, %v2209
      %2241 = vadd.xlane.f32.xlu0 %v2240
      %v2242 = vpop.xlane.xlu0 %2241
      %v2243 = vadd.f32 %v2210, %v2211
      %2244 = vadd.xlane.f32.xlu0 %v2243
      %v2245 = vpop.xlane.xlu0 %2244
      %v2246 = vadd.f32 %v2212, %v2213
      %2247 = vadd.xlane.f32.xlu0 %v2246
      %v2248 = vpop.xlane.xlu0 %2247
      %v2249 = vadd.f32 %v2214, %v2215
      %2250 = vadd.xlane.f32.xlu0 %v2249
      %v2251 = vpop.xlane.xlu0 %2250
      %v2252 = vadd.f32 %v2216, %v2217
      %2253 = vadd.xlane.f32.xlu0 %v2252
      %v2254 = vpop.xlane.xlu0 %2253
      %v2255 = vadd.f32 %v2218, %v2219
      %2256 = vadd.xlane.f32.xlu0 %v2255
      %v2257 = vpop.xlane.xlu0 %2256
      %v2258 = vadd.f32 %v2220, %v2221
      %2259 = vadd.xlane.f32.xlu0 %v2258
      %v2260 = vpop.xlane.xlu0 %2259
      %v2261 = vadd.f32 %v2222, %v2223
      %2262 = vadd.xlane.f32.xlu0 %v2261
      %v2263 = vpop.xlane.xlu0 %2262
      %v2264 = vadd.f32 %v2224, %v2225
      %2265 = vadd.xlane.f32.xlu0 %v2264
      %v2266 = vpop.xlane.xlu0 %2265
      %v2267 = vadd.f32 %v2226, %v2227
      %2268 = vadd.xlane.f32.xlu0 %v2267
      %v2269 = vpop.xlane.xlu0 %2268
      %v2270 = vadd.f32 %v2228, %v2229
      %2271 = vadd.xlane.f32.xlu0 %v2270
      %v2272 = vpop.xlane.xlu0 %2271
      %v2273 = vadd.f32 %v2230, %v2231
      %2274 = vadd.xlane.f32.xlu0 %v2273
      %v2275 = vpop.xlane.xlu0 %2274
      %v2276 = vadd.f32 %v2232, %v2233
      %2277 = vadd.xlane.f32.xlu0 %v2276
      %v2278 = vpop.xlane.xlu0 %2277
      %v2279 = vadd.f32 %v2234, %v2235
      %2280 = vadd.xlane.f32.xlu0 %v2279
      %v2281 = vpop.xlane.xlu0 %2280
      %v2282 = vadd.f32 %v2236, %v2237
      %2283 = vadd.xlane.f32.xlu0 %v2282
      %v2284 = vpop.xlane.xlu0 %2283
      %v2285 = vadd.f32 %v2238, %v2239
      %2286 = vadd.xlane.f32.xlu0 %v2285
      %v2287 = vpop.xlane.xlu0 %2286
      %v2288 = vmul.f32 %v2242, %v1360
      %v2289 = vmul.f32 %v2245, %v1360
      %v2290 = vmul.f32 %v2248, %v1360
      %v2291 = vmul.f32 %v2251, %v1360
      %v2292 = vmul.f32 %v2254, %v1360
      %v2293 = vmul.f32 %v2257, %v1360
      %v2294 = vmul.f32 %v2260, %v1360
      %v2295 = vmul.f32 %v2263, %v1360
      %v2296 = vmul.f32 %v2266, %v1360
      %v2297 = vmul.f32 %v2269, %v1360
      %v2298 = vmul.f32 %v2272, %v1360
      %v2299 = vmul.f32 %v2275, %v1360
      %v2300 = vmul.f32 %v2278, %v1360
      %v2301 = vmul.f32 %v2281, %v1360
      %v2302 = vmul.f32 %v2284, %v1360
      %v2303 = vmul.f32 %v2287, %v1360
      %v2336 = vunpack.c.l.b16 %v1582
      %v2337 = vunpack.c.l.b16 %v1583
      %v2338 = vunpack.c.l.b16 %v1584
      %v2339 = vunpack.c.l.b16 %v1585
      %v2340 = vunpack.c.l.b16 %v1586
      %v2341 = vunpack.c.l.b16 %v1587
      %v2342 = vunpack.c.l.b16 %v1588
      %v2343 = vunpack.c.l.b16 %v1589
      %v2344 = vunpack.c.l.b16 %v1590
      %v2345 = vunpack.c.l.b16 %v1591
      %v2346 = vunpack.c.l.b16 %v1592
      %v2347 = vunpack.c.l.b16 %v1593
      %v2348 = vunpack.c.l.b16 %v1594
      %v2349 = vunpack.c.l.b16 %v1595
      %v2350 = vunpack.c.l.b16 %v1596
      %v2351 = vunpack.c.l.b16 %v1597
      %v2352 = vunpack.c.l.b16 %v1598
      %v2353 = vunpack.c.l.b16 %v1599
      %v2354 = vunpack.c.l.b16 %v1600
      %v2355 = vunpack.c.l.b16 %v1601
      %v2356 = vunpack.c.l.b16 %v1602
      %v2357 = vunpack.c.l.b16 %v1603
      %v2358 = vunpack.c.l.b16 %v1604
      %v2359 = vunpack.c.l.b16 %v1605
      %v2360 = vunpack.c.l.b16 %v1606
      %v2361 = vunpack.c.l.b16 %v1607
      %v2362 = vunpack.c.l.b16 %v1608
      %v2363 = vunpack.c.l.b16 %v1609
      %v2364 = vunpack.c.l.b16 %v1610
      %v2365 = vunpack.c.l.b16 %v1611
      %v2366 = vunpack.c.l.b16 %v1612
      %v2367 = vunpack.c.l.b16 %v1613
      %v2368 = vpack.c.b16 %v2337, %v2336
      %v2369 = vpack.c.b16 %v2339, %v2338
      %v2370 = vpack.c.b16 %v2341, %v2340
      %v2371 = vpack.c.b16 %v2343, %v2342
      %v2372 = vpack.c.b16 %v2345, %v2344
      %v2373 = vpack.c.b16 %v2347, %v2346
      %v2374 = vpack.c.b16 %v2349, %v2348
      %v2375 = vpack.c.b16 %v2351, %v2350
      %v2376 = vpack.c.b16 %v2353, %v2352
      %v2377 = vpack.c.b16 %v2355, %v2354
      %v2378 = vpack.c.b16 %v2357, %v2356
      %v2379 = vpack.c.b16 %v2359, %v2358
      %v2380 = vpack.c.b16 %v2361, %v2360
      %v2381 = vpack.c.b16 %v2363, %v2362
      %v2382 = vpack.c.b16 %v2365, %v2364
      %v2383 = vpack.c.b16 %v2367, %v2366
      %2416 = vrot.lane.b32.xlu0 %v2288, 64
      %v2417 = vpop.permute.xlu0 %2416
      %2418 = vrot.lane.b32.xlu0 %v2289, 64
      %v2419 = vpop.permute.xlu0 %2418
      %2420 = vrot.lane.b32.xlu0 %v2290, 64
      %v2421 = vpop.permute.xlu0 %2420
      %2422 = vrot.lane.b32.xlu0 %v2291, 64
      %v2423 = vpop.permute.xlu0 %2422
      %2424 = vrot.lane.b32.xlu0 %v2292, 64
      %v2425 = vpop.permute.xlu0 %2424
      %2426 = vrot.lane.b32.xlu0 %v2293, 64
      %v2427 = vpop.permute.xlu0 %2426
      %2428 = vrot.lane.b32.xlu0 %v2294, 64
      %v2429 = vpop.permute.xlu0 %2428
      %2430 = vrot.lane.b32.xlu0 %v2295, 64
      %v2431 = vpop.permute.xlu0 %2430
      %2432 = vrot.lane.b32.xlu0 %v2296, 64
      %v2433 = vpop.permute.xlu0 %2432
      %2434 = vrot.lane.b32.xlu0 %v2297, 64
      %v2435 = vpop.permute.xlu0 %2434
      %2436 = vrot.lane.b32.xlu0 %v2298, 64
      %v2437 = vpop.permute.xlu0 %2436
      %2438 = vrot.lane.b32.xlu0 %v2299, 64
      %v2439 = vpop.permute.xlu0 %2438
      %2440 = vrot.lane.b32.xlu0 %v2300, 64
      %v2441 = vpop.permute.xlu0 %2440
      %2442 = vrot.lane.b32.xlu0 %v2301, 64
      %v2443 = vpop.permute.xlu0 %2442
      %2444 = vrot.lane.b32.xlu0 %v2302, 64
      %v2445 = vpop.permute.xlu0 %2444
      %2446 = vrot.lane.b32.xlu0 %v2303, 64
      %v2447 = vpop.permute.xlu0 %2446
      %2464 = vmatpush.bf16.msra.mxu0 %v2375
      %2465 = vmatpush.bf16.msra.mxu0 %v2374
      %2466 = vmatpush.bf16.msra.mxu0 %v2373
      %2467 = vmatpush.bf16.msra.mxu0 %v2372
      %2468 = vmatpush.bf16.msra.mxu0 %v2371
      %2469 = vmatpush.bf16.msra.mxu0 %v2370
      %2470 = vmatpush.bf16.msra.mxu0 %v2369
      %2471 = vmatpush.bf16.msra.mxu0 %v2368
      %2472 = vmatmul.bf16.gmra.mxu0 %v2192
      %v2473 = vpop.f32.mrf.mxu0
      %v2474 = vadd.f32 %v2417, %v2473
      %v2475 = vpop.f32.mrf.mxu0
      %v2476 = vadd.f32 %v2419, %v2475
      %2477 = vmatmul.bf16.gmra.mxu0 %v2194
      %v2478 = vpop.f32.mrf.mxu0
      %v2479 = vadd.f32 %v2421, %v2478
      %v2480 = vpop.f32.mrf.mxu0
      %v2481 = vadd.f32 %v2423, %v2480
      %2482 = vmatmul.bf16.gmra.mxu0 %v2196
      %v2483 = vpop.f32.mrf.mxu0
      %v2484 = vadd.f32 %v2425, %v2483
      %v2485 = vpop.f32.mrf.mxu0
      %v2486 = vadd.f32 %v2427, %v2485
      %2487 = vmatmul.bf16.gmra.mxu0 %v2198
      %v2488 = vpop.f32.mrf.mxu0
      %v2489 = vadd.f32 %v2429, %v2488
      %v2490 = vpop.f32.mrf.mxu0
      %v2491 = vadd.f32 %v2431, %v2490
      %2492 = vmatmul.bf16.gmra.mxu0 %v2200
      %v2493 = vpop.f32.mrf.mxu0
      %v2494 = vadd.f32 %v2433, %v2493
      %v2495 = vpop.f32.mrf.mxu0
      %v2496 = vadd.f32 %v2435, %v2495
      %2497 = vmatmul.bf16.gmra.mxu0 %v2202
      %v2498 = vpop.f32.mrf.mxu0
      %v2499 = vadd.f32 %v2437, %v2498
      %v2500 = vpop.f32.mrf.mxu0
      %v2501 = vadd.f32 %v2439, %v2500
      %2502 = vmatmul.bf16.gmra.mxu0 %v2204
      %v2503 = vpop.f32.mrf.mxu0
      %v2504 = vadd.f32 %v2441, %v2503
      %v2505 = vpop.f32.mrf.mxu0
      %v2506 = vadd.f32 %v2443, %v2505
      %2507 = vmatmul.bf16.gmra.mxu0 %v2206
      %v2508 = vpop.f32.mrf.mxu0
      %v2509 = vadd.f32 %v2445, %v2508
      %v2510 = vpop.f32.mrf.mxu0
      %v2511 = vadd.f32 %v2447, %v2510
      %2512 = vdwg.mxu0
      %2513 = vmatpush.bf16.msra.mxu0 %v2383
      %2514 = vmatpush.bf16.msra.mxu0 %v2382
      %2515 = vmatpush.bf16.msra.mxu0 %v2381
      %2516 = vmatpush.bf16.msra.mxu0 %v2380
      %2517 = vmatpush.bf16.msra.mxu0 %v2379
      %2518 = vmatpush.bf16.msra.mxu0 %v2378
      %2519 = vmatpush.bf16.msra.mxu0 %v2377
      %2520 = vmatpush.bf16.msra.mxu0 %v2376
      %2521 = vmatmul.bf16.gmra.mxu0 %v2193
      %v2522 = vpop.f32.mrf.mxu0
      %v2523 = vadd.f32 %v2474, %v2522
      %v2524 = vpop.f32.mrf.mxu0
      %v2525 = vadd.f32 %v2476, %v2524
      %2526 = vmatmul.bf16.gmra.mxu0 %v2195
      %v2527 = vpop.f32.mrf.mxu0
      %v2528 = vadd.f32 %v2479, %v2527
      %v2529 = vpop.f32.mrf.mxu0
      %v2530 = vadd.f32 %v2481, %v2529
      %2531 = vmatmul.bf16.gmra.mxu0 %v2197
      %v2532 = vpop.f32.mrf.mxu0
      %v2533 = vadd.f32 %v2484, %v2532
      %v2534 = vpop.f32.mrf.mxu0
      %v2535 = vadd.f32 %v2486, %v2534
      %2536 = vmatmul.bf16.gmra.mxu0 %v2199
      %v2537 = vpop.f32.mrf.mxu0
      %v2538 = vadd.f32 %v2489, %v2537
      %v2539 = vpop.f32.mrf.mxu0
      %v2540 = vadd.f32 %v2491, %v2539
      %2541 = vmatmul.bf16.gmra.mxu0 %v2201
      %v2542 = vpop.f32.mrf.mxu0
      %v2543 = vadd.f32 %v2494, %v2542
      %v2544 = vpop.f32.mrf.mxu0
      %v2545 = vadd.f32 %v2496, %v2544
      %2546 = vmatmul.bf16.gmra.mxu0 %v2203
      %v2547 = vpop.f32.mrf.mxu0
      %v2548 = vadd.f32 %v2499, %v2547
      %v2549 = vpop.f32.mrf.mxu0
      %v2550 = vadd.f32 %v2501, %v2549
      %2551 = vmatmul.bf16.gmra.mxu0 %v2205
      %v2552 = vpop.f32.mrf.mxu0
      %v2553 = vadd.f32 %v2504, %v2552
      %v2554 = vpop.f32.mrf.mxu0
      %v2555 = vadd.f32 %v2506, %v2554
      %2556 = vmatmul.bf16.gmra.mxu0 %v2207
      %v2557 = vpop.f32.mrf.mxu0
      %v2558 = vadd.f32 %v2509, %v2557
      %v2559 = vpop.f32.mrf.mxu0
      %v2560 = vadd.f32 %v2511, %v2559
      %2561 = vdwg.mxu0
      %2578 = vrot.lane.b32.xlu0 %v2523, 64
      %v2579 = vpop.permute.xlu0 %2578
      %2580 = vrot.lane.b32.xlu0 %v2525, 64
      %v2581 = vpop.permute.xlu0 %2580
      %2582 = vrot.lane.b32.xlu0 %v2528, 64
      %v2583 = vpop.permute.xlu0 %2582
      %2584 = vrot.lane.b32.xlu0 %v2530, 64
      %v2585 = vpop.permute.xlu0 %2584
      %2586 = vrot.lane.b32.xlu0 %v2533, 64
      %v2587 = vpop.permute.xlu0 %2586
      %2588 = vrot.lane.b32.xlu0 %v2535, 64
      %v2589 = vpop.permute.xlu0 %2588
      %2590 = vrot.lane.b32.xlu0 %v2538, 64
      %v2591 = vpop.permute.xlu0 %2590
      %2592 = vrot.lane.b32.xlu0 %v2540, 64
      %v2593 = vpop.permute.xlu0 %2592
      %2594 = vrot.lane.b32.xlu0 %v2543, 64
      %v2595 = vpop.permute.xlu0 %2594
      %2596 = vrot.lane.b32.xlu0 %v2545, 64
      %v2597 = vpop.permute.xlu0 %2596
      %2598 = vrot.lane.b32.xlu0 %v2548, 64
      %v2599 = vpop.permute.xlu0 %2598
      %2600 = vrot.lane.b32.xlu0 %v2550, 64
      %v2601 = vpop.permute.xlu0 %2600
      %2602 = vrot.lane.b32.xlu0 %v2553, 64
      %v2603 = vpop.permute.xlu0 %2602
      %2604 = vrot.lane.b32.xlu0 %v2555, 64
      %v2605 = vpop.permute.xlu0 %2604
      %2606 = vrot.lane.b32.xlu0 %v2558, 64
      %v2607 = vpop.permute.xlu0 %2606
      %2608 = vrot.lane.b32.xlu0 %v2560, 64
      %v2609 = vpop.permute.xlu0 %2608
      %v2626 = vsel %vm836, %v1533, %v2579
      %v2627 = vsel %vm836, %v1535, %v2581
      %v2628 = vsel %vm836, %v1538, %v2583
      %v2629 = vsel %vm836, %v1540, %v2585
      %v2630 = vsel %vm836, %v1543, %v2587
      %v2631 = vsel %vm836, %v1545, %v2589
      %v2632 = vsel %vm836, %v1548, %v2591
      %v2633 = vsel %vm836, %v1550, %v2593
      %v2634 = vsel %vm836, %v1553, %v2595
      %v2635 = vsel %vm836, %v1555, %v2597
      %v2636 = vsel %vm836, %v1558, %v2599
      %v2637 = vsel %vm836, %v1560, %v2601
      %v2638 = vsel %vm836, %v1563, %v2603
      %v2639 = vsel %vm836, %v1565, %v2605
      %v2640 = vsel %vm836, %v1568, %v2607
      %v2641 = vsel %vm836, %v1570, %v2609
      %v2642 = vadd.f32 %v2626, %v323
      %v2643 = vadd.f32 %v2627, %v325
      %v2644 = vadd.f32 %v2628, %v327
      %v2645 = vadd.f32 %v2629, %v329
      %v2646 = vadd.f32 %v2630, %v331
      %v2647 = vadd.f32 %v2631, %v333
      %v2648 = vadd.f32 %v2632, %v335
      %v2649 = vadd.f32 %v2633, %v337
      %v2650 = vadd.f32 %v2634, %v339
      %v2651 = vadd.f32 %v2635, %v341
      %v2652 = vadd.f32 %v2636, %v343
      %v2653 = vadd.f32 %v2637, %v345
      %v2654 = vadd.f32 %v2638, %v347
      %v2655 = vadd.f32 %v2639, %v349
      %v2656 = vadd.f32 %v2640, %v351
      %v2657 = vadd.f32 %v2641, %v353
      %2658 = vst [vmem:[%s315] sm:$0xff] %v2642
      %2659 = vst [vmem:[%s315 + $0x8] sm:$0xff] %v2643
      %2660 = vst [vmem:[%s315 + $0x10] sm:$0xff] %v2644
      %2661 = vst [vmem:[%s315 + $0x18] sm:$0xff] %v2645
      %2662 = vst [vmem:[%s315 + $0x20] sm:$0xff] %v2646
      %2663 = vst [vmem:[%s315 + $0x28] sm:$0xff] %v2647
      %2664 = vst [vmem:[%s315 + $0x30] sm:$0xff] %v2648
      %2665 = vst [vmem:[%s315 + $0x38] sm:$0xff] %v2649
      %2666 = vst [vmem:[%s315 + $0x40] sm:$0xff] %v2650
      %2667 = vst [vmem:[%s315 + $0x48] sm:$0xff] %v2651
      %2668 = vst [vmem:[%s315 + $0x50] sm:$0xff] %v2652
      %2669 = vst [vmem:[%s315 + $0x58] sm:$0xff] %v2653
      %2670 = vst [vmem:[%s315 + $0x60] sm:$0xff] %v2654
      %2671 = vst [vmem:[%s315 + $0x68] sm:$0xff] %v2655
      %2672 = vst [vmem:[%s315 + $0x70] sm:$0xff] %v2656
      %2673 = vst [vmem:[%s315 + $0x78] sm:$0xff] %v2657
      %s2674 = smul.u32 %s19, 128
      %v2675 = vlaneseq
      %v2676 = vshrl.u32 %v2675, 7
      %v2677 = vadd.s32 %v2676, 8
      %v2678 = vadd.s32 %v2676, 16
      %v2679 = vadd.s32 %v2676, 24
      %v2680 = vadd.s32 %v2676, 32
      %v2681 = vadd.s32 %v2676, 40
      %v2682 = vadd.s32 %v2676, 48
      %v2683 = vadd.s32 %v2676, 56
      %v2684 = vadd.s32 %v2676, 64
      %v2685 = vadd.s32 %v2676, 72
      %v2686 = vadd.s32 %v2676, 80
      %v2687 = vadd.s32 %v2676, 88
      %v2688 = vadd.s32 %v2676, 96
      %v2689 = vadd.s32 %v2676, 104
      %v2690 = vadd.s32 %v2676, 112
      %v2691 = vadd.s32 %v2676, 120
      %v2692 = vstv %s2674
      %v2693 = vadd.s32 %v2692, %v2676
      %v2694 = vadd.s32 %v2692, %v2677
      %v2695 = vadd.s32 %v2692, %v2678
      %v2696 = vadd.s32 %v2692, %v2679
      %v2697 = vadd.s32 %v2692, %v2680
      %v2698 = vadd.s32 %v2692, %v2681
      %v2699 = vadd.s32 %v2692, %v2682
      %v2700 = vadd.s32 %v2692, %v2683
      %v2701 = vadd.s32 %v2692, %v2684
      %v2702 = vadd.s32 %v2692, %v2685
      %v2703 = vadd.s32 %v2692, %v2686
      %v2704 = vadd.s32 %v2692, %v2687
      %v2705 = vadd.s32 %v2692, %v2688
      %v2706 = vadd.s32 %v2692, %v2689
      %v2707 = vadd.s32 %v2692, %v2690
      %v2708 = vadd.s32 %v2692, %v2691
      %vm2709 = vcmp.lt.s32.totalorder %v2693, 200
      %vm2710 = vcmp.lt.s32.totalorder %v2694, 200
      %vm2711 = vcmp.lt.s32.totalorder %v2695, 200
      %vm2712 = vcmp.lt.s32.totalorder %v2696, 200
      %vm2713 = vcmp.lt.s32.totalorder %v2697, 200
      %vm2714 = vcmp.lt.s32.totalorder %v2698, 200
      %vm2715 = vcmp.lt.s32.totalorder %v2699, 200
      %vm2716 = vcmp.lt.s32.totalorder %v2700, 200
      %vm2717 = vcmp.lt.s32.totalorder %v2701, 200
      %vm2718 = vcmp.lt.s32.totalorder %v2702, 200
      %vm2719 = vcmp.lt.s32.totalorder %v2703, 200
      %vm2720 = vcmp.lt.s32.totalorder %v2704, 200
      %vm2721 = vcmp.lt.s32.totalorder %v2705, 200
      %vm2722 = vcmp.lt.s32.totalorder %v2706, 200
      %vm2723 = vcmp.lt.s32.totalorder %v2707, 200
      %vm2724 = vcmp.lt.s32.totalorder %v2708, 200
      %v2725 = vsel %vm2709, 1, 0
      %v2726 = vsel %vm2710, 1, 0
      %v2727 = vsel %vm2711, 1, 0
      %v2728 = vsel %vm2712, 1, 0
      %v2729 = vsel %vm2713, 1, 0
      %v2730 = vsel %vm2714, 1, 0
      %v2731 = vsel %vm2715, 1, 0
      %v2732 = vsel %vm2716, 1, 0
      %v2733 = vsel %vm2717, 1, 0
      %v2734 = vsel %vm2718, 1, 0
      %v2735 = vsel %vm2719, 1, 0
      %v2736 = vsel %vm2720, 1, 0
      %v2737 = vsel %vm2721, 1, 0
      %v2738 = vsel %vm2722, 1, 0
      %v2739 = vsel %vm2723, 1, 0
      %v2740 = vsel %vm2724, 1, 0
      %v2741 = vcvt.s32.f32 %v2725
      %v2742 = vcvt.s32.f32 %v2726
      %v2743 = vcvt.s32.f32 %v2727
      %v2744 = vcvt.s32.f32 %v2728
      %v2745 = vcvt.s32.f32 %v2729
      %v2746 = vcvt.s32.f32 %v2730
      %v2747 = vcvt.s32.f32 %v2731
      %v2748 = vcvt.s32.f32 %v2732
      %v2749 = vcvt.s32.f32 %v2733
      %v2750 = vcvt.s32.f32 %v2734
      %v2751 = vcvt.s32.f32 %v2735
      %v2752 = vcvt.s32.f32 %v2736
      %v2753 = vcvt.s32.f32 %v2737
      %v2754 = vcvt.s32.f32 %v2738
      %v2755 = vcvt.s32.f32 %v2739
      %v2756 = vcvt.s32.f32 %v2740
      %v2757 = vmul.f32 %v2642, %v2741
      %v2758 = vmul.f32 %v2643, %v2742
      %v2759 = vmul.f32 %v2644, %v2743
      %v2760 = vmul.f32 %v2645, %v2744
      %v2761 = vmul.f32 %v2646, %v2745
      %v2762 = vmul.f32 %v2647, %v2746
      %v2763 = vmul.f32 %v2648, %v2747
      %v2764 = vmul.f32 %v2649, %v2748
      %v2765 = vmul.f32 %v2650, %v2749
      %v2766 = vmul.f32 %v2651, %v2750
      %v2767 = vmul.f32 %v2652, %v2751
      %v2768 = vmul.f32 %v2653, %v2752
      %v2769 = vmul.f32 %v2654, %v2753
      %v2770 = vmul.f32 %v2655, %v2754
      %v2771 = vmul.f32 %v2656, %v2755
      %v2772 = vmul.f32 %v2657, %v2756
      %v2773 = vadd.f32 %v2757, %v2758
      %v2774 = vadd.f32 %v2773, %v2759
      %v2775 = vadd.f32 %v2774, %v2760
      %v2776 = vadd.f32 %v2775, %v2761
      %v2777 = vadd.f32 %v2776, %v2762
      %v2778 = vadd.f32 %v2777, %v2763
      %v2779 = vadd.f32 %v2778, %v2764
      %v2780 = vadd.f32 %v2779, %v2765
      %v2781 = vadd.f32 %v2780, %v2766
      %v2782 = vadd.f32 %v2781, %v2767
      %v2783 = vadd.f32 %v2782, %v2768
      %v2784 = vadd.f32 %v2783, %v2769
      %v2785 = vadd.f32 %v2784, %v2770
      %v2786 = vadd.f32 %v2785, %v2771
      %v2787 = vadd.f32 %v2786, %v2772
      %v2788 = vrot.slane %v2787, 4
      %v2789 = vadd.f32 %v2787, %v2788
      %v2790 = vrot.slane %v2789, 2
      %v2791 = vadd.f32 %v2789, %v2790
      %v2792 = vrot.slane %v2791, 1
      %v2793 = vadd.f32 %v2791, %v2792
      %v2794 = vmul.f32 %v2642, %v2642
      %v2795 = vmul.f32 %v2643, %v2643
      %v2796 = vmul.f32 %v2644, %v2644
      %v2797 = vmul.f32 %v2645, %v2645
      %v2798 = vmul.f32 %v2646, %v2646
      %v2799 = vmul.f32 %v2647, %v2647
      %v2800 = vmul.f32 %v2648, %v2648
      %v2801 = vmul.f32 %v2649, %v2649
      %v2802 = vmul.f32 %v2650, %v2650
      %v2803 = vmul.f32 %v2651, %v2651
      %v2804 = vmul.f32 %v2652, %v2652
      %v2805 = vmul.f32 %v2653, %v2653
      %v2806 = vmul.f32 %v2654, %v2654
      %v2807 = vmul.f32 %v2655, %v2655
      %v2808 = vmul.f32 %v2656, %v2656
      %v2809 = vmul.f32 %v2657, %v2657
      %v2810 = vmul.f32 %v2794, %v2741
      %v2811 = vmul.f32 %v2795, %v2742
      %v2812 = vmul.f32 %v2796, %v2743
      %v2813 = vmul.f32 %v2797, %v2744
      %v2814 = vmul.f32 %v2798, %v2745
      %v2815 = vmul.f32 %v2799, %v2746
      %v2816 = vmul.f32 %v2800, %v2747
      %v2817 = vmul.f32 %v2801, %v2748
      %v2818 = vmul.f32 %v2802, %v2749
      %v2819 = vmul.f32 %v2803, %v2750
      %v2820 = vmul.f32 %v2804, %v2751
      %v2821 = vmul.f32 %v2805, %v2752
      %v2822 = vmul.f32 %v2806, %v2753
      %v2823 = vmul.f32 %v2807, %v2754
      %v2824 = vmul.f32 %v2808, %v2755
      %v2825 = vmul.f32 %v2809, %v2756
      %v2826 = vadd.f32 %v2810, %v2811
      %v2827 = vadd.f32 %v2826, %v2812
      %v2828 = vadd.f32 %v2827, %v2813
      %v2829 = vadd.f32 %v2828, %v2814
      %v2830 = vadd.f32 %v2829, %v2815
      %v2831 = vadd.f32 %v2830, %v2816
      %v2832 = vadd.f32 %v2831, %v2817
      %v2833 = vadd.f32 %v2832, %v2818
      %v2834 = vadd.f32 %v2833, %v2819
      %v2835 = vadd.f32 %v2834, %v2820
      %v2836 = vadd.f32 %v2835, %v2821
      %v2837 = vadd.f32 %v2836, %v2822
      %v2838 = vadd.f32 %v2837, %v2823
      %v2839 = vadd.f32 %v2838, %v2824
      %v2840 = vadd.f32 %v2839, %v2825
      %v2841 = vrot.slane %v2840, 4
      %v2842 = vadd.f32 %v2840, %v2841
      %v2843 = vrot.slane %v2842, 2
      %v2844 = vadd.f32 %v2842, %v2843
      %v2845 = vrot.slane %v2844, 1
      %v2846 = vadd.f32 %v2844, %v2845
      %vm2847 = vcmask 1040384
      %v2848 = vsel %vm2847, %v2793, %v2846
      %2849 = vst [vmem:[%s320] sm:$0x3] %v2848
      %s2850 = smul.u32 16, %s19
      %p2851 = scmp.lt.s32.totalorder %s2850, 31
      %s2852 = scalar_select %p2851, %s2850, 31
      %s2853 = smul.addr %s2852, 8
      %s2854 = scalar_lea.vmem %s6, %s2853
      %p2855 = scmp.lt.s32.totalorder %s19, 1
      %s2856 = scalar_select %p2855, %s19, 1
      %s2857 = smul.addr %s2856, 2
      %s2858 = scalar_lea.vmem %s7, %s2857
      // Predicated region
      $region45: #{_lambda_.11} parent=43 // pred_check
        %p2859 = pneg %p173
      $region46: #{_lambda_.11} parent=43 // pred_check_branch
        %2861 = sbr.rel (%p2859) target = $region48
      $region47: #{_lambda_.11} parent=43 // pred_region
        %s2862 = smul.u32 16, %s19
      $region48: #{_lambda_.11} parent=43 // pred_fallthru
        _
      // Predicated region
      $region49: #{_lambda_.11} parent=43 // pred_check
        %p2863 = pneg %p199
      $region50: #{_lambda_.11} parent=43 // pred_check_branch
        %2865 = sbr.rel (%p2863) target = $region52
      $region51: #{_lambda_.11} parent=43 // pred_region
        _
      $region52: #{_lambda_.11} parent=43 // pred_fallthru
        _
    $region44: #{_lambda_.11} parent=5 // pred_fallthru
      _
    %p2866 = scmp.le.s32.totalorder 2, %s14
    // Predicated region
    $region53: #{_lambda_.11} parent=5 // pred_check
      %p2867 = pneg %p2866
    $region54: #{_lambda_.11} parent=5 // pred_check_branch
      %2869 = sbr.rel (%p2867) target = $region56
    $region55: #{_lambda_.11} parent=5 // pred_region
      %s2870 = ssub.s32 %s14, 2
      // Predicated region
      $region57: #{_lambda_.11} parent=55 // pred_check
        %p2871 = pneg %p179
      $region58: #{_lambda_.11} parent=55 // pred_check_branch
        %2873 = sbr.rel (%p2871) target = $region60
      $region59: #{_lambda_.11} parent=55 // pred_region
        %s2874 = smul.u32 16, %s20
        %p2875 = scmp.lt.s32.totalorder %s2874, 31
        %s2876 = scalar_select %p2875, %s2874, 31
        %s2877 = smul.addr %s2876, 8
        %s2878 = scalar_lea.vmem %s6, %s2877
      $region60: #{_lambda_.11} parent=55 // pred_fallthru
        _
      // Predicated region
      $region61: #{_lambda_.11} parent=55 // pred_check
        %p2879 = pneg %p205
      $region62: #{_lambda_.11} parent=55 // pred_check_branch
        %2881 = sbr.rel (%p2879) target = $region64
      $region63: #{_lambda_.11} parent=55 // pred_region
        %p2882 = scmp.lt.s32.totalorder %s20, 1
        %s2883 = scalar_select %p2882, %s20, 1
        %s2884 = smul.addr %s2883, 2
        %s2885 = scalar_lea.vmem %s7, %s2884
      $region64: #{_lambda_.11} parent=55 // pred_fallthru
        _
    $region56: #{_lambda_.11} parent=5 // pred_fallthru
      _
  $region6: #{_lambda_.11} parent=0 // loop_footer
    %s18 = sadd.s32 1, %s14
  $region7: #{_lambda_.11} parent=0 // loop_footer_branch
    %13 = sbr.rel target = $region3
  $region8: #{_lambda_.11} parent=0 // loop_exit
    _

</llo_original>
